<compile_context>
chip_gen: v7x
topology: tpu7x:2x2x1
jax: 0.10.0
libtpu: 0.0.40
codegen_flags: <defaults>
</compile_context>

<pallas_src>
import functools

import jax
import jax.numpy as jnp
from jax.experimental import pallas as pl
from jax.experimental.pallas import tpu as pltpu

INPUT_SIZE = 8
HIDDEN_SIZE = 5
NUM_LAYERS = 2
GATE_PITCH = 128   # lane-aligned stride of each gate inside the fused 4*GP axis


def lstm_kernel(x_ref, wx0_ref, wh0_ref, b0_ref, wx1_ref, wh1_ref, b1_ref,
                hid_ref, cell_ref, xp_ref, hseq_ref, *, T, B):
    """Fused 2-layer LSTM. x_ref is (T*B, I), time-major flattened.

    Weights are pre-packed so gate g of a layer occupies lanes
    [g*GP, g*GP + H) of a (in_dim_pad, 4*GP) matrix; padded lanes carry zero
    weights and zero bias, so padded lanes of h/c remain exactly zero and
    never pollute the valid lanes.
    """
    H = hid_ref.shape[2]
    GP = GATE_PITCH

    # Loop-invariant loads hoisted out of the unrolled recurrences.
    wh0 = wh0_ref[...]
    wh1 = wh1_ref[...]

    def recurrence(wh, record_ref):
        # xp_ref holds the precomputed input projection (+bias) for this layer.
        # Only the h @ wh dot and the elementwise gate math stay on the serial
        # critical path; the loop is fully unrolled (T is static).
        h = jnp.zeros((B, GP), jnp.float32)
        c = jnp.zeros((B, GP), jnp.float32)
        for t in range(T):
            gates = xp_ref[t * B:(t + 1) * B, :] + jnp.dot(
                h, wh, preferred_element_type=jnp.float32)      # (B, 4*GP)
            i = jax.nn.sigmoid(gates[:, 0 * GP:1 * GP])          # lane-aligned
            f = jax.nn.sigmoid(gates[:, 1 * GP:2 * GP])          # whole-vreg
            g = jnp.tanh(gates[:, 2 * GP:3 * GP])                # slices
            o = jax.nn.sigmoid(gates[:, 3 * GP:4 * GP])
            c = f * c + i * g
            h = o * jnp.tanh(c)
            if record_ref is not None:
                record_ref[t * B:(t + 1) * B, :] = h
        return h, c

    # Layer 0: whole input projection as ONE batched MXU call, bias folded once.
    xp_ref[...] = jnp.dot(x_ref[...], wx0_ref[...],
                          preferred_element_type=jnp.float32) + b0_ref[...]
    h0, c0 = recurrence(wh0, hseq_ref)

    # Layer 1: its input projection is ONE batched MXU call over the recorded
    # layer-0 hidden sequence (xp scratch is reused).
    xp_ref[...] = jnp.dot(hseq_ref[...], wx1_ref[...],
                          preferred_element_type=jnp.float32) + b1_ref[...]
    h1, c1 = recurrence(wh1, None)

    hid_ref[0] = h0[:, :H]
    hid_ref[1] = h1[:, :H]
    cell_ref[0] = c0[:, :H]
    cell_ref[1] = c1[:, :H]


def lstm_autoencoder_forward(x, params):
    """x: (B, T, INPUT_SIZE) float32, batch_first. Returns (hidden, cell),
    each (NUM_LAYERS, B, HIDDEN_SIZE) float32, like PyTorch nn.LSTM."""
    B, T, _ = x.shape
    H = HIDDEN_SIZE
    # Time-major, flattened to (T*B, I): the layer-0 input projection becomes
    # a single well-shaped MXU matmul inside the kernel.
    x_tm = jnp.transpose(x, (1, 0, 2)).reshape(T * B, -1).astype(jnp.float32)
    wx0, wh0, b0, wx1, wh1, b1 = params

    vmem = pl.BlockSpec(memory_space=pltpu.MemorySpace.VMEM)
    out_shape = (jax.ShapeDtypeStruct((NUM_LAYERS, B, H), jnp.float32),
                 jax.ShapeDtypeStruct((NUM_LAYERS, B, H), jnp.float32))

    hidden, cell = pl.pallas_call(
        functools.partial(lstm_kernel, T=T, B=B),
        out_shape=out_shape,
        in_specs=[vmem] * 7,
        out_specs=(vmem, vmem),
        scratch_shapes=[
            pltpu.VMEM((T * B, 4 * GATE_PITCH), jnp.float32),  # input projection
            pltpu.VMEM((T * B, GATE_PITCH), jnp.float32),      # layer-0 h sequence
        ],
        # Note: at toy batch sizes a single program is fine; a grid over B with
        # dimension_semantics=("parallel",) would be needed to use both v7x TCs.
    )(x_tm, wx0, wh0, b0, wx1, wh1, b1)
    return hidden, cell


def convert_layer(w_ih, w_hh, b_ih, b_hh, in_pad):
    """PyTorch-layout LSTM layer params -> fused, lane-aligned kernel layout.

    Returns wx (in_pad, 4*GP), wh (GP, 4*GP), b (1, 4*GP): gate g (order
    i,f,g,o) lives in lanes [g*GP, g*GP + H); all padded lanes/rows are zero.
    """
    H = HIDDEN_SIZE
    GP = GATE_PITCH
    in_dim = w_ih.shape[1]

    w_ih_g = w_ih.reshape(4, H, in_dim)    # per-gate (H, in_dim)
    w_hh_g = w_hh.reshape(4, H, H)
    b_g = (b_ih + b_hh).reshape(4, H)

    wx = jnp.zeros((in_pad, 4 * GP), jnp.float32)
    wh = jnp.zeros((GP, 4 * GP), jnp.float32)
    b = jnp.zeros((1, 4 * GP), jnp.float32)
    for g in range(4):
        wx = wx.at[:in_dim, g * GP:g * GP + H].set(jnp.transpose(w_ih_g[g]))
        wh = wh.at[:H, g * GP:g * GP + H].set(jnp.transpose(w_hh_g[g]))
        b = b.at[0, g * GP:g * GP + H].set(b_g[g])
    return wx, wh, b


def reference_lstm(x, torch_params):
    """Pure-JAX reference reproducing PyTorch nn.LSTM forward (batch_first)."""
    B, T, _ = x.shape
    H = HIDDEN_SIZE
    hs, cs = [], []
    inp = x
    for (w_ih, w_hh, b_ih, b_hh) in torch_params:
        h = jnp.zeros((B, H), jnp.float32)
        c = jnp.zeros((B, H), jnp.float32)
        outs = []
        for t in range(T):
            gates = inp[:, t, :] @ w_ih.T + h @ w_hh.T + b_ih + b_hh
            i, f, g, o = jnp.split(gates, 4, axis=-1)
            i = jax.nn.sigmoid(i)
            f = jax.nn.sigmoid(f)
            g = jnp.tanh(g)
            o = jax.nn.sigmoid(o)
            c = f * c + i * g
            h = o * jnp.tanh(c)
            outs.append(h)
        inp = jnp.stack(outs, axis=1)
        hs.append(h)
        cs.append(c)
    return jnp.stack(hs), jnp.stack(cs)


if __name__ == "__main__":
    B, T = 2, 8
    key = jax.random.PRNGKey(0)
    keys = jax.random.split(key, 9)
    bound = 1.0 / (HIDDEN_SIZE ** 0.5)

    def u(k, shape):
        return jax.random.uniform(k, shape, jnp.float32, -bound, bound)

    # Deterministic parameter init, same shapes as PyTorch nn.LSTM(8, 5, 2).
    w_ih0 = u(keys[0], (4 * HIDDEN_SIZE, INPUT_SIZE))
    w_hh0 = u(keys[1], (4 * HIDDEN_SIZE, HIDDEN_SIZE))
    b_ih0 = u(keys[2], (4 * HIDDEN_SIZE,))
    b_hh0 = u(keys[3], (4 * HIDDEN_SIZE,))
    w_ih1 = u(keys[4], (4 * HIDDEN_SIZE, HIDDEN_SIZE))
    w_hh1 = u(keys[5], (4 * HIDDEN_SIZE, HIDDEN_SIZE))
    b_ih1 = u(keys[6], (4 * HIDDEN_SIZE,))
    b_hh1 = u(keys[7], (4 * HIDDEN_SIZE,))

    x = jax.random.normal(keys[8], (B, T, INPUT_SIZE), jnp.float32)

    wx0, wh0, b0 = convert_layer(w_ih0, w_hh0, b_ih0, b_hh0, in_pad=INPUT_SIZE)
    wx1, wh1, b1 = convert_layer(w_ih1, w_hh1, b_ih1, b_hh1, in_pad=GATE_PITCH)
    params = (wx0, wh0, b0, wx1, wh1, b1)

    hidden, cell = jax.jit(lstm_autoencoder_forward)(x, params)
    jax.block_until_ready((hidden, cell))

    ref_hidden, ref_cell = reference_lstm(
        x, [(w_ih0, w_hh0, b_ih0, b_hh0), (w_ih1, w_hh1, b_ih1, b_hh1)])

    assert hidden.shape == (NUM_LAYERS, B, HIDDEN_SIZE)
    assert cell.shape == (NUM_LAYERS, B, HIDDEN_SIZE)
    assert jnp.allclose(hidden, ref_hidden, atol=1e-4, rtol=1e-4), \
        f"hidden mismatch, max err {jnp.max(jnp.abs(hidden - ref_hidden))}"
    assert jnp.allclose(cell, ref_cell, atol=1e-4, rtol=1e-4), \
        f"cell mismatch, max err {jnp.max(jnp.abs(cell - ref_cell))}"

    print("KERNEL_OK")
</pallas_src>

<mosaic_0001>
module attributes {stable_mosaic.version = 11 : i64} {
  func.func @lstm_kernel(%arg0: memref<16x8xf32, #tpu.memory_space<vmem>>, %arg1: memref<8x512xf32, #tpu.memory_space<vmem>>, %arg2: memref<128x512xf32, #tpu.memory_space<vmem>>, %arg3: memref<1x512xf32, #tpu.memory_space<vmem>>, %arg4: memref<128x512xf32, #tpu.memory_space<vmem>>, %arg5: memref<128x512xf32, #tpu.memory_space<vmem>>, %arg6: memref<1x512xf32, #tpu.memory_space<vmem>>, %arg7: memref<2x2x5xf32, #tpu.memory_space<vmem>>, %arg8: memref<2x2x5xf32, #tpu.memory_space<vmem>>, %arg9: memref<16x512xf32, #tpu.memory_space<vmem>>, %arg10: memref<16x128xf32, #tpu.memory_space<vmem>>) attributes {dimension_semantics = [], scalar_prefetch = 0 : i64, scratch_operands = 2 : i64, tpu.core_type = #tpu.core_type<tc>} {
    %c0 = arith.constant 0 : index
    %c0_0 = arith.constant 0 : index
    %0 = vector.load %arg2[%c0, %c0_0] : memref<128x512xf32, #tpu.memory_space<vmem>>, vector<128x512xf32>
    %c0_1 = arith.constant 0 : index
    %c0_2 = arith.constant 0 : index
    %1 = vector.load %arg5[%c0_1, %c0_2] : memref<128x512xf32, #tpu.memory_space<vmem>>, vector<128x512xf32>
    %c0_3 = arith.constant 0 : index
    %c0_4 = arith.constant 0 : index
    %2 = vector.load %arg0[%c0_3, %c0_4] : memref<16x8xf32, #tpu.memory_space<vmem>>, vector<16x8xf32>
    %c0_5 = arith.constant 0 : index
    %c0_6 = arith.constant 0 : index
    %3 = vector.load %arg1[%c0_5, %c0_6] : memref<8x512xf32, #tpu.memory_space<vmem>>, vector<8x512xf32>
    %cst = arith.constant dense<0.000000e+00> : vector<16x512xf32>
    %4 = tpu.matmul %2, %3, %cst {dimension_numbers = #tpu.dot_dimension_numbers<[1], [0], [0], [1], [0, 0, 1, 1], [], []>} : vector<16x8xf32>, vector<8x512xf32>, vector<16x512xf32> -> vector<16x512xf32>
    %c0_7 = arith.constant 0 : index
    %c0_8 = arith.constant 0 : index
    %5 = vector.load %arg3[%c0_7, %c0_8] : memref<1x512xf32, #tpu.memory_space<vmem>>, vector<1x512xf32>
    %6 = vector.broadcast %5 : vector<1x512xf32> to vector<16x512xf32>
    %7 = arith.addf %4, %6 : vector<16x512xf32>
    %c0_9 = arith.constant 0 : index
    %c0_10 = arith.constant 0 : index
    %8 = vector.load %arg9[%c0_9, %c0_10] : memref<16x512xf32, #tpu.memory_space<vmem>>, vector<16x512xf32>
    tpu.vector_store %arg9[%c0_9, %c0_10], %7 {strides = array<i32>} : memref<16x512xf32, #tpu.memory_space<vmem>>, vector<16x512xf32>,
    %cst_11 = arith.constant 0.000000e+00 : f32
    %9 = vector.broadcast %cst_11 : f32 to vector<2x128xf32>
    %cst_12 = arith.constant 0.000000e+00 : f32
    %10 = vector.broadcast %cst_12 : f32 to vector<2x128xf32>
    %c0_13 = arith.constant 0 : index
    %c0_14 = arith.constant 0 : index
    %11 = vector.load %arg9[%c0_13, %c0_14] : memref<16x512xf32, #tpu.memory_space<vmem>>, vector<2x512xf32>
    %cst_15 = arith.constant dense<0.000000e+00> : vector<2x512xf32>
    %12 = tpu.matmul %9, %0, %cst_15 {dimension_numbers = #tpu.dot_dimension_numbers<[1], [0], [0], [1], [0, 0, 1, 1], [], []>} : vector<2x128xf32>, vector<128x512xf32>, vector<2x512xf32> -> vector<2x512xf32>
    %13 = arith.addf %11, %12 : vector<2x512xf32>
    %14 = vector.extract_strided_slice %13 {offsets = [0, 0], sizes = [2, 128], strides = [1, 1]} : vector<2x512xf32> to vector<2x128xf32>
    %15 = arith.negf %14 : vector<2x128xf32>
    %16 = math.exp %15 : vector<2x128xf32>
    %cst_16 = arith.constant 1.000000e+00 : f32
    %17 = vector.broadcast %cst_16 : f32 to vector<2x128xf32>
    %18 = arith.addf %17, %16 : vector<2x128xf32>
    %19 = arith.divf %17, %18 : vector<2x128xf32>
    %20 = vector.extract_strided_slice %13 {offsets = [0, 128], sizes = [2, 128], strides = [1, 1]} : vector<2x512xf32> to vector<2x128xf32>
    %21 = arith.negf %20 : vector<2x128xf32>
    %22 = math.exp %21 : vector<2x128xf32>
    %cst_17 = arith.constant 1.000000e+00 : f32
    %23 = vector.broadcast %cst_17 : f32 to vector<2x128xf32>
    %24 = arith.addf %23, %22 : vector<2x128xf32>
    %25 = arith.divf %23, %24 : vector<2x128xf32>
    %26 = vector.extract_strided_slice %13 {offsets = [0, 256], sizes = [2, 128], strides = [1, 1]} : vector<2x512xf32> to vector<2x128xf32>
    %27 = math.tanh %26 : vector<2x128xf32>
    %28 = vector.extract_strided_slice %13 {offsets = [0, 384], sizes = [2, 128], strides = [1, 1]} : vector<2x512xf32> to vector<2x128xf32>
    %29 = arith.negf %28 : vector<2x128xf32>
    %30 = math.exp %29 : vector<2x128xf32>
    %cst_18 = arith.constant 1.000000e+00 : f32
    %31 = vector.broadcast %cst_18 : f32 to vector<2x128xf32>
    %32 = arith.addf %31, %30 : vector<2x128xf32>
    %33 = arith.divf %31, %32 : vector<2x128xf32>
    %34 = arith.mulf %25, %10 : vector<2x128xf32>
    %35 = arith.mulf %19, %27 : vector<2x128xf32>
    %36 = arith.addf %34, %35 : vector<2x128xf32>
    %37 = math.tanh %36 : vector<2x128xf32>
    %38 = arith.mulf %33, %37 : vector<2x128xf32>
    %c0_19 = arith.constant 0 : index
    %c0_20 = arith.constant 0 : index
    %39 = vector.load %arg10[%c0_19, %c0_20] : memref<16x128xf32, #tpu.memory_space<vmem>>, vector<2x128xf32>
    tpu.vector_store %arg10[%c0_19, %c0_20], %38 {strides = array<i32>} : memref<16x128xf32, #tpu.memory_space<vmem>>, vector<2x128xf32>,
    %c2 = arith.constant 2 : index
    %c0_21 = arith.constant 0 : index
    %40 = vector.load %arg9[%c2, %c0_21] : memref<16x512xf32, #tpu.memory_space<vmem>>, vector<2x512xf32>
    %cst_22 = arith.constant dense<0.000000e+00> : vector<2x512xf32>
    %41 = tpu.matmul %38, %0, %cst_22 {dimension_numbers = #tpu.dot_dimension_numbers<[1], [0], [0], [1], [0, 0, 1, 1], [], []>} : vector<2x128xf32>, vector<128x512xf32>, vector<2x512xf32> -> vector<2x512xf32>
    %42 = arith.addf %40, %41 : vector<2x512xf32>
    %43 = vector.extract_strided_slice %42 {offsets = [0, 0], sizes = [2, 128], strides = [1, 1]} : vector<2x512xf32> to vector<2x128xf32>
    %44 = arith.negf %43 : vector<2x128xf32>
    %45 = math.exp %44 : vector<2x128xf32>
    %cst_23 = arith.constant 1.000000e+00 : f32
    %46 = vector.broadcast %cst_23 : f32 to vector<2x128xf32>
    %47 = arith.addf %46, %45 : vector<2x128xf32>
    %48 = arith.divf %46, %47 : vector<2x128xf32>
    %49 = vector.extract_strided_slice %42 {offsets = [0, 128], sizes = [2, 128], strides = [1, 1]} : vector<2x512xf32> to vector<2x128xf32>
    %50 = arith.negf %49 : vector<2x128xf32>
    %51 = math.exp %50 : vector<2x128xf32>
    %cst_24 = arith.constant 1.000000e+00 : f32
    %52 = vector.broadcast %cst_24 : f32 to vector<2x128xf32>
    %53 = arith.addf %52, %51 : vector<2x128xf32>
    %54 = arith.divf %52, %53 : vector<2x128xf32>
    %55 = vector.extract_strided_slice %42 {offsets = [0, 256], sizes = [2, 128], strides = [1, 1]} : vector<2x512xf32> to vector<2x128xf32>
    %56 = math.tanh %55 : vector<2x128xf32>
    %57 = vector.extract_strided_slice %42 {offsets = [0, 384], sizes = [2, 128], strides = [1, 1]} : vector<2x512xf32> to vector<2x128xf32>
    %58 = arith.negf %57 : vector<2x128xf32>
    %59 = math.exp %58 : vector<2x128xf32>
    %cst_25 = arith.constant 1.000000e+00 : f32
    %60 = vector.broadcast %cst_25 : f32 to vector<2x128xf32>
    %61 = arith.addf %60, %59 : vector<2x128xf32>
    %62 = arith.divf %60, %61 : vector<2x128xf32>
    %63 = arith.mulf %54, %36 : vector<2x128xf32>
    %64 = arith.mulf %48, %56 : vector<2x128xf32>
    %65 = arith.addf %63, %64 : vector<2x128xf32>
    %66 = math.tanh %65 : vector<2x128xf32>
    %67 = arith.mulf %62, %66 : vector<2x128xf32>
    %c2_26 = arith.constant 2 : index
    %c0_27 = arith.constant 0 : index
    %68 = vector.load %arg10[%c2_26, %c0_27] : memref<16x128xf32, #tpu.memory_space<vmem>>, vector<2x128xf32>
    tpu.vector_store %arg10[%c2_26, %c0_27], %67 {strides = array<i32>} : memref<16x128xf32, #tpu.memory_space<vmem>>, vector<2x128xf32>,
    %c4 = arith.constant 4 : index
    %c0_28 = arith.constant 0 : index
    %69 = vector.load %arg9[%c4, %c0_28] : memref<16x512xf32, #tpu.memory_space<vmem>>, vector<2x512xf32>
    %cst_29 = arith.constant dense<0.000000e+00> : vector<2x512xf32>
    %70 = tpu.matmul %67, %0, %cst_29 {dimension_numbers = #tpu.dot_dimension_numbers<[1], [0], [0], [1], [0, 0, 1, 1], [], []>} : vector<2x128xf32>, vector<128x512xf32>, vector<2x512xf32> -> vector<2x512xf32>
    %71 = arith.addf %69, %70 : vector<2x512xf32>
    %72 = vector.extract_strided_slice %71 {offsets = [0, 0], sizes = [2, 128], strides = [1, 1]} : vector<2x512xf32> to vector<2x128xf32>
    %73 = arith.negf %72 : vector<2x128xf32>
    %74 = math.exp %73 : vector<2x128xf32>
    %cst_30 = arith.constant 1.000000e+00 : f32
    %75 = vector.broadcast %cst_30 : f32 to vector<2x128xf32>
    %76 = arith.addf %75, %74 : vector<2x128xf32>
    %77 = arith.divf %75, %76 : vector<2x128xf32>
    %78 = vector.extract_strided_slice %71 {offsets = [0, 128], sizes = [2, 128], strides = [1, 1]} : vector<2x512xf32> to vector<2x128xf32>
    %79 = arith.negf %78 : vector<2x128xf32>
    %80 = math.exp %79 : vector<2x128xf32>
    %cst_31 = arith.constant 1.000000e+00 : f32
    %81 = vector.broadcast %cst_31 : f32 to vector<2x128xf32>
    %82 = arith.addf %81, %80 : vector<2x128xf32>
    %83 = arith.divf %81, %82 : vector<2x128xf32>
    %84 = vector.extract_strided_slice %71 {offsets = [0, 256], sizes = [2, 128], strides = [1, 1]} : vector<2x512xf32> to vector<2x128xf32>
    %85 = math.tanh %84 : vector<2x128xf32>
    %86 = vector.extract_strided_slice %71 {offsets = [0, 384], sizes = [2, 128], strides = [1, 1]} : vector<2x512xf32> to vector<2x128xf32>
    %87 = arith.negf %86 : vector<2x128xf32>
    %88 = math.exp %87 : vector<2x128xf32>
    %cst_32 = arith.constant 1.000000e+00 : f32
    %89 = vector.broadcast %cst_32 : f32 to vector<2x128xf32>
    %90 = arith.addf %89, %88 : vector<2x128xf32>
    %91 = arith.divf %89, %90 : vector<2x128xf32>
    %92 = arith.mulf %83, %65 : vector<2x128xf32>
    %93 = arith.mulf %77, %85 : vector<2x128xf32>
    %94 = arith.addf %92, %93 : vector<2x128xf32>
    %95 = math.tanh %94 : vector<2x128xf32>
    %96 = arith.mulf %91, %95 : vector<2x128xf32>
    %c4_33 = arith.constant 4 : index
    %c0_34 = arith.constant 0 : index
    %97 = vector.load %arg10[%c4_33, %c0_34] : memref<16x128xf32, #tpu.memory_space<vmem>>, vector<2x128xf32>
    tpu.vector_store %arg10[%c4_33, %c0_34], %96 {strides = array<i32>} : memref<16x128xf32, #tpu.memory_space<vmem>>, vector<2x128xf32>,
    %c6 = arith.constant 6 : index
    %c0_35 = arith.constant 0 : index
    %98 = vector.load %arg9[%c6, %c0_35] : memref<16x512xf32, #tpu.memory_space<vmem>>, vector<2x512xf32>
    %cst_36 = arith.constant dense<0.000000e+00> : vector<2x512xf32>
    %99 = tpu.matmul %96, %0, %cst_36 {dimension_numbers = #tpu.dot_dimension_numbers<[1], [0], [0], [1], [0, 0, 1, 1], [], []>} : vector<2x128xf32>, vector<128x512xf32>, vector<2x512xf32> -> vector<2x512xf32>
    %100 = arith.addf %98, %99 : vector<2x512xf32>
    %101 = vector.extract_strided_slice %100 {offsets = [0, 0], sizes = [2, 128], strides = [1, 1]} : vector<2x512xf32> to vector<2x128xf32>
    %102 = arith.negf %101 : vector<2x128xf32>
    %103 = math.exp %102 : vector<2x128xf32>
    %cst_37 = arith.constant 1.000000e+00 : f32
    %104 = vector.broadcast %cst_37 : f32 to vector<2x128xf32>
    %105 = arith.addf %104, %103 : vector<2x128xf32>
    %106 = arith.divf %104, %105 : vector<2x128xf32>
    %107 = vector.extract_strided_slice %100 {offsets = [0, 128], sizes = [2, 128], strides = [1, 1]} : vector<2x512xf32> to vector<2x128xf32>
    %108 = arith.negf %107 : vector<2x128xf32>
    %109 = math.exp %108 : vector<2x128xf32>
    %cst_38 = arith.constant 1.000000e+00 : f32
    %110 = vector.broadcast %cst_38 : f32 to vector<2x128xf32>
    %111 = arith.addf %110, %109 : vector<2x128xf32>
    %112 = arith.divf %110, %111 : vector<2x128xf32>
    %113 = vector.extract_strided_slice %100 {offsets = [0, 256], sizes = [2, 128], strides = [1, 1]} : vector<2x512xf32> to vector<2x128xf32>
    %114 = math.tanh %113 : vector<2x128xf32>
    %115 = vector.extract_strided_slice %100 {offsets = [0, 384], sizes = [2, 128], strides = [1, 1]} : vector<2x512xf32> to vector<2x128xf32>
    %116 = arith.negf %115 : vector<2x128xf32>
    %117 = math.exp %116 : vector<2x128xf32>
    %cst_39 = arith.constant 1.000000e+00 : f32
    %118 = vector.broadcast %cst_39 : f32 to vector<2x128xf32>
    %119 = arith.addf %118, %117 : vector<2x128xf32>
    %120 = arith.divf %118, %119 : vector<2x128xf32>
    %121 = arith.mulf %112, %94 : vector<2x128xf32>
    %122 = arith.mulf %106, %114 : vector<2x128xf32>
    %123 = arith.addf %121, %122 : vector<2x128xf32>
    %124 = math.tanh %123 : vector<2x128xf32>
    %125 = arith.mulf %120, %124 : vector<2x128xf32>
    %c6_40 = arith.constant 6 : index
    %c0_41 = arith.constant 0 : index
    %126 = vector.load %arg10[%c6_40, %c0_41] : memref<16x128xf32, #tpu.memory_space<vmem>>, vector<2x128xf32>
    tpu.vector_store %arg10[%c6_40, %c0_41], %125 {strides = array<i32>} : memref<16x128xf32, #tpu.memory_space<vmem>>, vector<2x128xf32>,
    %c8 = arith.constant 8 : index
    %c0_42 = arith.constant 0 : index
    %127 = vector.load %arg9[%c8, %c0_42] : memref<16x512xf32, #tpu.memory_space<vmem>>, vector<2x512xf32>
    %cst_43 = arith.constant dense<0.000000e+00> : vector<2x512xf32>
    %128 = tpu.matmul %125, %0, %cst_43 {dimension_numbers = #tpu.dot_dimension_numbers<[1], [0], [0], [1], [0, 0, 1, 1], [], []>} : vector<2x128xf32>, vector<128x512xf32>, vector<2x512xf32> -> vector<2x512xf32>
    %129 = arith.addf %127, %128 : vector<2x512xf32>
    %130 = vector.extract_strided_slice %129 {offsets = [0, 0], sizes = [2, 128], strides = [1, 1]} : vector<2x512xf32> to vector<2x128xf32>
    %131 = arith.negf %130 : vector<2x128xf32>
    %132 = math.exp %131 : vector<2x128xf32>
    %cst_44 = arith.constant 1.000000e+00 : f32
    %133 = vector.broadcast %cst_44 : f32 to vector<2x128xf32>
    %134 = arith.addf %133, %132 : vector<2x128xf32>
    %135 = arith.divf %133, %134 : vector<2x128xf32>
    %136 = vector.extract_strided_slice %129 {offsets = [0, 128], sizes = [2, 128], strides = [1, 1]} : vector<2x512xf32> to vector<2x128xf32>
    %137 = arith.negf %136 : vector<2x128xf32>
    %138 = math.exp %137 : vector<2x128xf32>
    %cst_45 = arith.constant 1.000000e+00 : f32
    %139 = vector.broadcast %cst_45 : f32 to vector<2x128xf32>
    %140 = arith.addf %139, %138 : vector<2x128xf32>
    %141 = arith.divf %139, %140 : vector<2x128xf32>
    %142 = vector.extract_strided_slice %129 {offsets = [0, 256], sizes = [2, 128], strides = [1, 1]} : vector<2x512xf32> to vector<2x128xf32>
    %143 = math.tanh %142 : vector<2x128xf32>
    %144 = vector.extract_strided_slice %129 {offsets = [0, 384], sizes = [2, 128], strides = [1, 1]} : vector<2x512xf32> to vector<2x128xf32>
    %145 = arith.negf %144 : vector<2x128xf32>
    %146 = math.exp %145 : vector<2x128xf32>
    %cst_46 = arith.constant 1.000000e+00 : f32
    %147 = vector.broadcast %cst_46 : f32 to vector<2x128xf32>
    %148 = arith.addf %147, %146 : vector<2x128xf32>
    %149 = arith.divf %147, %148 : vector<2x128xf32>
    %150 = arith.mulf %141, %123 : vector<2x128xf32>
    %151 = arith.mulf %135, %143 : vector<2x128xf32>
    %152 = arith.addf %150, %151 : vector<2x128xf32>
    %153 = math.tanh %152 : vector<2x128xf32>
    %154 = arith.mulf %149, %153 : vector<2x128xf32>
    %c8_47 = arith.constant 8 : index
    %c0_48 = arith.constant 0 : index
    %155 = vector.load %arg10[%c8_47, %c0_48] : memref<16x128xf32, #tpu.memory_space<vmem>>, vector<2x128xf32>
    tpu.vector_store %arg10[%c8_47, %c0_48], %154 {strides = array<i32>} : memref<16x128xf32, #tpu.memory_space<vmem>>, vector<2x128xf32>,
    %c10 = arith.constant 10 : index
    %c0_49 = arith.constant 0 : index
    %156 = vector.load %arg9[%c10, %c0_49] : memref<16x512xf32, #tpu.memory_space<vmem>>, vector<2x512xf32>
    %cst_50 = arith.constant dense<0.000000e+00> : vector<2x512xf32>
    %157 = tpu.matmul %154, %0, %cst_50 {dimension_numbers = #tpu.dot_dimension_numbers<[1], [0], [0], [1], [0, 0, 1, 1], [], []>} : vector<2x128xf32>, vector<128x512xf32>, vector<2x512xf32> -> vector<2x512xf32>
    %158 = arith.addf %156, %157 : vector<2x512xf32>
    %159 = vector.extract_strided_slice %158 {offsets = [0, 0], sizes = [2, 128], strides = [1, 1]} : vector<2x512xf32> to vector<2x128xf32>
    %160 = arith.negf %159 : vector<2x128xf32>
    %161 = math.exp %160 : vector<2x128xf32>
    %cst_51 = arith.constant 1.000000e+00 : f32
    %162 = vector.broadcast %cst_51 : f32 to vector<2x128xf32>
    %163 = arith.addf %162, %161 : vector<2x128xf32>
    %164 = arith.divf %162, %163 : vector<2x128xf32>
    %165 = vector.extract_strided_slice %158 {offsets = [0, 128], sizes = [2, 128], strides = [1, 1]} : vector<2x512xf32> to vector<2x128xf32>
    %166 = arith.negf %165 : vector<2x128xf32>
    %167 = math.exp %166 : vector<2x128xf32>
    %cst_52 = arith.constant 1.000000e+00 : f32
    %168 = vector.broadcast %cst_52 : f32 to vector<2x128xf32>
    %169 = arith.addf %168, %167 : vector<2x128xf32>
    %170 = arith.divf %168, %169 : vector<2x128xf32>
    %171 = vector.extract_strided_slice %158 {offsets = [0, 256], sizes = [2, 128], strides = [1, 1]} : vector<2x512xf32> to vector<2x128xf32>
    %172 = math.tanh %171 : vector<2x128xf32>
    %173 = vector.extract_strided_slice %158 {offsets = [0, 384], sizes = [2, 128], strides = [1, 1]} : vector<2x512xf32> to vector<2x128xf32>
    %174 = arith.negf %173 : vector<2x128xf32>
    %175 = math.exp %174 : vector<2x128xf32>
    %cst_53 = arith.constant 1.000000e+00 : f32
    %176 = vector.broadcast %cst_53 : f32 to vector<2x128xf32>
    %177 = arith.addf %176, %175 : vector<2x128xf32>
    %178 = arith.divf %176, %177 : vector<2x128xf32>
    %179 = arith.mulf %170, %152 : vector<2x128xf32>
    %180 = arith.mulf %164, %172 : vector<2x128xf32>
    %181 = arith.addf %179, %180 : vector<2x128xf32>
    %182 = math.tanh %181 : vector<2x128xf32>
    %183 = arith.mulf %178, %182 : vector<2x128xf32>
    %c10_54 = arith.constant 10 : index
    %c0_55 = arith.constant 0 : index
    %184 = vector.load %arg10[%c10_54, %c0_55] : memref<16x128xf32, #tpu.memory_space<vmem>>, vector<2x128xf32>
    tpu.vector_store %arg10[%c10_54, %c0_55], %183 {strides = array<i32>} : memref<16x128xf32, #tpu.memory_space<vmem>>, vector<2x128xf32>,
    %c12 = arith.constant 12 : index
    %c0_56 = arith.constant 0 : index
    %185 = vector.load %arg9[%c12, %c0_56] : memref<16x512xf32, #tpu.memory_space<vmem>>, vector<2x512xf32>
    %cst_57 = arith.constant dense<0.000000e+00> : vector<2x512xf32>
    %186 = tpu.matmul %183, %0, %cst_57 {dimension_numbers = #tpu.dot_dimension_numbers<[1], [0], [0], [1], [0, 0, 1, 1], [], []>} : vector<2x128xf32>, vector<128x512xf32>, vector<2x512xf32> -> vector<2x512xf32>
    %187 = arith.addf %185, %186 : vector<2x512xf32>
    %188 = vector.extract_strided_slice %187 {offsets = [0, 0], sizes = [2, 128], strides = [1, 1]} : vector<2x512xf32> to vector<2x128xf32>
    %189 = arith.negf %188 : vector<2x128xf32>
    %190 = math.exp %189 : vector<2x128xf32>
    %cst_58 = arith.constant 1.000000e+00 : f32
    %191 = vector.broadcast %cst_58 : f32 to vector<2x128xf32>
    %192 = arith.addf %191, %190 : vector<2x128xf32>
    %193 = arith.divf %191, %192 : vector<2x128xf32>
    %194 = vector.extract_strided_slice %187 {offsets = [0, 128], sizes = [2, 128], strides = [1, 1]} : vector<2x512xf32> to vector<2x128xf32>
    %195 = arith.negf %194 : vector<2x128xf32>
    %196 = math.exp %195 : vector<2x128xf32>
    %cst_59 = arith.constant 1.000000e+00 : f32
    %197 = vector.broadcast %cst_59 : f32 to vector<2x128xf32>
    %198 = arith.addf %197, %196 : vector<2x128xf32>
    %199 = arith.divf %197, %198 : vector<2x128xf32>
    %200 = vector.extract_strided_slice %187 {offsets = [0, 256], sizes = [2, 128], strides = [1, 1]} : vector<2x512xf32> to vector<2x128xf32>
    %201 = math.tanh %200 : vector<2x128xf32>
    %202 = vector.extract_strided_slice %187 {offsets = [0, 384], sizes = [2, 128], strides = [1, 1]} : vector<2x512xf32> to vector<2x128xf32>
    %203 = arith.negf %202 : vector<2x128xf32>
    %204 = math.exp %203 : vector<2x128xf32>
    %cst_60 = arith.constant 1.000000e+00 : f32
    %205 = vector.broadcast %cst_60 : f32 to vector<2x128xf32>
    %206 = arith.addf %205, %204 : vector<2x128xf32>
    %207 = arith.divf %205, %206 : vector<2x128xf32>
    %208 = arith.mulf %199, %181 : vector<2x128xf32>
    %209 = arith.mulf %193, %201 : vector<2x128xf32>
    %210 = arith.addf %208, %209 : vector<2x128xf32>
    %211 = math.tanh %210 : vector<2x128xf32>
    %212 = arith.mulf %207, %211 : vector<2x128xf32>
    %c12_61 = arith.constant 12 : index
    %c0_62 = arith.constant 0 : index
    %213 = vector.load %arg10[%c12_61, %c0_62] : memref<16x128xf32, #tpu.memory_space<vmem>>, vector<2x128xf32>
    tpu.vector_store %arg10[%c12_61, %c0_62], %212 {strides = array<i32>} : memref<16x128xf32, #tpu.memory_space<vmem>>, vector<2x128xf32>,
    %c14 = arith.constant 14 : index
    %c0_63 = arith.constant 0 : index
    %214 = vector.load %arg9[%c14, %c0_63] : memref<16x512xf32, #tpu.memory_space<vmem>>, vector<2x512xf32>
    %cst_64 = arith.constant dense<0.000000e+00> : vector<2x512xf32>
    %215 = tpu.matmul %212, %0, %cst_64 {dimension_numbers = #tpu.dot_dimension_numbers<[1], [0], [0], [1], [0, 0, 1, 1], [], []>} : vector<2x128xf32>, vector<128x512xf32>, vector<2x512xf32> -> vector<2x512xf32>
    %216 = arith.addf %214, %215 : vector<2x512xf32>
    %217 = vector.extract_strided_slice %216 {offsets = [0, 0], sizes = [2, 128], strides = [1, 1]} : vector<2x512xf32> to vector<2x128xf32>
    %218 = arith.negf %217 : vector<2x128xf32>
    %219 = math.exp %218 : vector<2x128xf32>
    %cst_65 = arith.constant 1.000000e+00 : f32
    %220 = vector.broadcast %cst_65 : f32 to vector<2x128xf32>
    %221 = arith.addf %220, %219 : vector<2x128xf32>
    %222 = arith.divf %220, %221 : vector<2x128xf32>
    %223 = vector.extract_strided_slice %216 {offsets = [0, 128], sizes = [2, 128], strides = [1, 1]} : vector<2x512xf32> to vector<2x128xf32>
    %224 = arith.negf %223 : vector<2x128xf32>
    %225 = math.exp %224 : vector<2x128xf32>
    %cst_66 = arith.constant 1.000000e+00 : f32
    %226 = vector.broadcast %cst_66 : f32 to vector<2x128xf32>
    %227 = arith.addf %226, %225 : vector<2x128xf32>
    %228 = arith.divf %226, %227 : vector<2x128xf32>
    %229 = vector.extract_strided_slice %216 {offsets = [0, 256], sizes = [2, 128], strides = [1, 1]} : vector<2x512xf32> to vector<2x128xf32>
    %230 = math.tanh %229 : vector<2x128xf32>
    %231 = vector.extract_strided_slice %216 {offsets = [0, 384], sizes = [2, 128], strides = [1, 1]} : vector<2x512xf32> to vector<2x128xf32>
    %232 = arith.negf %231 : vector<2x128xf32>
    %233 = math.exp %232 : vector<2x128xf32>
    %cst_67 = arith.constant 1.000000e+00 : f32
    %234 = vector.broadcast %cst_67 : f32 to vector<2x128xf32>
    %235 = arith.addf %234, %233 : vector<2x128xf32>
    %236 = arith.divf %234, %235 : vector<2x128xf32>
    %237 = arith.mulf %228, %210 : vector<2x128xf32>
    %238 = arith.mulf %222, %230 : vector<2x128xf32>
    %239 = arith.addf %237, %238 : vector<2x128xf32>
    %240 = math.tanh %239 : vector<2x128xf32>
    %241 = arith.mulf %236, %240 : vector<2x128xf32>
    %c14_68 = arith.constant 14 : index
    %c0_69 = arith.constant 0 : index
    %242 = vector.load %arg10[%c14_68, %c0_69] : memref<16x128xf32, #tpu.memory_space<vmem>>, vector<2x128xf32>
    tpu.vector_store %arg10[%c14_68, %c0_69], %241 {strides = array<i32>} : memref<16x128xf32, #tpu.memory_space<vmem>>, vector<2x128xf32>,
    %c0_70 = arith.constant 0 : index
    %c0_71 = arith.constant 0 : index
    %243 = vector.load %arg10[%c0_70, %c0_71] : memref<16x128xf32, #tpu.memory_space<vmem>>, vector<16x128xf32>
    %c0_72 = arith.constant 0 : index
    %c0_73 = arith.constant 0 : index
    %244 = vector.load %arg4[%c0_72, %c0_73] : memref<128x512xf32, #tpu.memory_space<vmem>>, vector<128x512xf32>
    %cst_74 = arith.constant dense<0.000000e+00> : vector<16x512xf32>
    %245 = tpu.matmul %243, %244, %cst_74 {dimension_numbers = #tpu.dot_dimension_numbers<[1], [0], [0], [1], [0, 0, 1, 1], [], []>} : vector<16x128xf32>, vector<128x512xf32>, vector<16x512xf32> -> vector<16x512xf32>
    %c0_75 = arith.constant 0 : index
    %c0_76 = arith.constant 0 : index
    %246 = vector.load %arg6[%c0_75, %c0_76] : memref<1x512xf32, #tpu.memory_space<vmem>>, vector<1x512xf32>
    %247 = vector.broadcast %246 : vector<1x512xf32> to vector<16x512xf32>
    %248 = arith.addf %245, %247 : vector<16x512xf32>
    %c0_77 = arith.constant 0 : index
    %c0_78 = arith.constant 0 : index
    %249 = vector.load %arg9[%c0_77, %c0_78] : memref<16x512xf32, #tpu.memory_space<vmem>>, vector<16x512xf32>
    tpu.vector_store %arg9[%c0_77, %c0_78], %248 {strides = array<i32>} : memref<16x512xf32, #tpu.memory_space<vmem>>, vector<16x512xf32>,
    %cst_79 = arith.constant 0.000000e+00 : f32
    %250 = vector.broadcast %cst_79 : f32 to vector<2x128xf32>
    %cst_80 = arith.constant 0.000000e+00 : f32
    %251 = vector.broadcast %cst_80 : f32 to vector<2x128xf32>
    %c0_81 = arith.constant 0 : index
    %c0_82 = arith.constant 0 : index
    %252 = vector.load %arg9[%c0_81, %c0_82] : memref<16x512xf32, #tpu.memory_space<vmem>>, vector<2x512xf32>
    %cst_83 = arith.constant dense<0.000000e+00> : vector<2x512xf32>
    %253 = tpu.matmul %250, %1, %cst_83 {dimension_numbers = #tpu.dot_dimension_numbers<[1], [0], [0], [1], [0, 0, 1, 1], [], []>} : vector<2x128xf32>, vector<128x512xf32>, vector<2x512xf32> -> vector<2x512xf32>
    %254 = arith.addf %252, %253 : vector<2x512xf32>
    %255 = vector.extract_strided_slice %254 {offsets = [0, 0], sizes = [2, 128], strides = [1, 1]} : vector<2x512xf32> to vector<2x128xf32>
    %256 = arith.negf %255 : vector<2x128xf32>
    %257 = math.exp %256 : vector<2x128xf32>
    %cst_84 = arith.constant 1.000000e+00 : f32
    %258 = vector.broadcast %cst_84 : f32 to vector<2x128xf32>
    %259 = arith.addf %258, %257 : vector<2x128xf32>
    %260 = arith.divf %258, %259 : vector<2x128xf32>
    %261 = vector.extract_strided_slice %254 {offsets = [0, 128], sizes = [2, 128], strides = [1, 1]} : vector<2x512xf32> to vector<2x128xf32>
    %262 = arith.negf %261 : vector<2x128xf32>
    %263 = math.exp %262 : vector<2x128xf32>
    %cst_85 = arith.constant 1.000000e+00 : f32
    %264 = vector.broadcast %cst_85 : f32 to vector<2x128xf32>
    %265 = arith.addf %264, %263 : vector<2x128xf32>
    %266 = arith.divf %264, %265 : vector<2x128xf32>
    %267 = vector.extract_strided_slice %254 {offsets = [0, 256], sizes = [2, 128], strides = [1, 1]} : vector<2x512xf32> to vector<2x128xf32>
    %268 = math.tanh %267 : vector<2x128xf32>
    %269 = vector.extract_strided_slice %254 {offsets = [0, 384], sizes = [2, 128], strides = [1, 1]} : vector<2x512xf32> to vector<2x128xf32>
    %270 = arith.negf %269 : vector<2x128xf32>
    %271 = math.exp %270 : vector<2x128xf32>
    %cst_86 = arith.constant 1.000000e+00 : f32
    %272 = vector.broadcast %cst_86 : f32 to vector<2x128xf32>
    %273 = arith.addf %272, %271 : vector<2x128xf32>
    %274 = arith.divf %272, %273 : vector<2x128xf32>
    %275 = arith.mulf %266, %251 : vector<2x128xf32>
    %276 = arith.mulf %260, %268 : vector<2x128xf32>
    %277 = arith.addf %275, %276 : vector<2x128xf32>
    %278 = math.tanh %277 : vector<2x128xf32>
    %279 = arith.mulf %274, %278 : vector<2x128xf32>
    %c2_87 = arith.constant 2 : index
    %c0_88 = arith.constant 0 : index
    %280 = vector.load %arg9[%c2_87, %c0_88] : memref<16x512xf32, #tpu.memory_space<vmem>>, vector<2x512xf32>
    %cst_89 = arith.constant dense<0.000000e+00> : vector<2x512xf32>
    %281 = tpu.matmul %279, %1, %cst_89 {dimension_numbers = #tpu.dot_dimension_numbers<[1], [0], [0], [1], [0, 0, 1, 1], [], []>} : vector<2x128xf32>, vector<128x512xf32>, vector<2x512xf32> -> vector<2x512xf32>
    %282 = arith.addf %280, %281 : vector<2x512xf32>
    %283 = vector.extract_strided_slice %282 {offsets = [0, 0], sizes = [2, 128], strides = [1, 1]} : vector<2x512xf32> to vector<2x128xf32>
    %284 = arith.negf %283 : vector<2x128xf32>
    %285 = math.exp %284 : vector<2x128xf32>
    %cst_90 = arith.constant 1.000000e+00 : f32
    %286 = vector.broadcast %cst_90 : f32 to vector<2x128xf32>
    %287 = arith.addf %286, %285 : vector<2x128xf32>
    %288 = arith.divf %286, %287 : vector<2x128xf32>
    %289 = vector.extract_strided_slice %282 {offsets = [0, 128], sizes = [2, 128], strides = [1, 1]} : vector<2x512xf32> to vector<2x128xf32>
    %290 = arith.negf %289 : vector<2x128xf32>
    %291 = math.exp %290 : vector<2x128xf32>
    %cst_91 = arith.constant 1.000000e+00 : f32
    %292 = vector.broadcast %cst_91 : f32 to vector<2x128xf32>
    %293 = arith.addf %292, %291 : vector<2x128xf32>
    %294 = arith.divf %292, %293 : vector<2x128xf32>
    %295 = vector.extract_strided_slice %282 {offsets = [0, 256], sizes = [2, 128], strides = [1, 1]} : vector<2x512xf32> to vector<2x128xf32>
    %296 = math.tanh %295 : vector<2x128xf32>
    %297 = vector.extract_strided_slice %282 {offsets = [0, 384], sizes = [2, 128], strides = [1, 1]} : vector<2x512xf32> to vector<2x128xf32>
    %298 = arith.negf %297 : vector<2x128xf32>
    %299 = math.exp %298 : vector<2x128xf32>
    %cst_92 = arith.constant 1.000000e+00 : f32
    %300 = vector.broadcast %cst_92 : f32 to vector<2x128xf32>
    %301 = arith.addf %300, %299 : vector<2x128xf32>
    %302 = arith.divf %300, %301 : vector<2x128xf32>
    %303 = arith.mulf %294, %277 : vector<2x128xf32>
    %304 = arith.mulf %288, %296 : vector<2x128xf32>
    %305 = arith.addf %303, %304 : vector<2x128xf32>
    %306 = math.tanh %305 : vector<2x128xf32>
    %307 = arith.mulf %302, %306 : vector<2x128xf32>
    %c4_93 = arith.constant 4 : index
    %c0_94 = arith.constant 0 : index
    %308 = vector.load %arg9[%c4_93, %c0_94] : memref<16x512xf32, #tpu.memory_space<vmem>>, vector<2x512xf32>
    %cst_95 = arith.constant dense<0.000000e+00> : vector<2x512xf32>
    %309 = tpu.matmul %307, %1, %cst_95 {dimension_numbers = #tpu.dot_dimension_numbers<[1], [0], [0], [1], [0, 0, 1, 1], [], []>} : vector<2x128xf32>, vector<128x512xf32>, vector<2x512xf32> -> vector<2x512xf32>
    %310 = arith.addf %308, %309 : vector<2x512xf32>
    %311 = vector.extract_strided_slice %310 {offsets = [0, 0], sizes = [2, 128], strides = [1, 1]} : vector<2x512xf32> to vector<2x128xf32>
    %312 = arith.negf %311 : vector<2x128xf32>
    %313 = math.exp %312 : vector<2x128xf32>
    %cst_96 = arith.constant 1.000000e+00 : f32
    %314 = vector.broadcast %cst_96 : f32 to vector<2x128xf32>
    %315 = arith.addf %314, %313 : vector<2x128xf32>
    %316 = arith.divf %314, %315 : vector<2x128xf32>
    %317 = vector.extract_strided_slice %310 {offsets = [0, 128], sizes = [2, 128], strides = [1, 1]} : vector<2x512xf32> to vector<2x128xf32>
    %318 = arith.negf %317 : vector<2x128xf32>
    %319 = math.exp %318 : vector<2x128xf32>
    %cst_97 = arith.constant 1.000000e+00 : f32
    %320 = vector.broadcast %cst_97 : f32 to vector<2x128xf32>
    %321 = arith.addf %320, %319 : vector<2x128xf32>
    %322 = arith.divf %320, %321 : vector<2x128xf32>
    %323 = vector.extract_strided_slice %310 {offsets = [0, 256], sizes = [2, 128], strides = [1, 1]} : vector<2x512xf32> to vector<2x128xf32>
    %324 = math.tanh %323 : vector<2x128xf32>
    %325 = vector.extract_strided_slice %310 {offsets = [0, 384], sizes = [2, 128], strides = [1, 1]} : vector<2x512xf32> to vector<2x128xf32>
    %326 = arith.negf %325 : vector<2x128xf32>
    %327 = math.exp %326 : vector<2x128xf32>
    %cst_98 = arith.constant 1.000000e+00 : f32
    %328 = vector.broadcast %cst_98 : f32 to vector<2x128xf32>
    %329 = arith.addf %328, %327 : vector<2x128xf32>
    %330 = arith.divf %328, %329 : vector<2x128xf32>
    %331 = arith.mulf %322, %305 : vector<2x128xf32>
    %332 = arith.mulf %316, %324 : vector<2x128xf32>
    %333 = arith.addf %331, %332 : vector<2x128xf32>
    %334 = math.tanh %333 : vector<2x128xf32>
    %335 = arith.mulf %330, %334 : vector<2x128xf32>
    %c6_99 = arith.constant 6 : index
    %c0_100 = arith.constant 0 : index
    %336 = vector.load %arg9[%c6_99, %c0_100] : memref<16x512xf32, #tpu.memory_space<vmem>>, vector<2x512xf32>
    %cst_101 = arith.constant dense<0.000000e+00> : vector<2x512xf32>
    %337 = tpu.matmul %335, %1, %cst_101 {dimension_numbers = #tpu.dot_dimension_numbers<[1], [0], [0], [1], [0, 0, 1, 1], [], []>} : vector<2x128xf32>, vector<128x512xf32>, vector<2x512xf32> -> vector<2x512xf32>
    %338 = arith.addf %336, %337 : vector<2x512xf32>
    %339 = vector.extract_strided_slice %338 {offsets = [0, 0], sizes = [2, 128], strides = [1, 1]} : vector<2x512xf32> to vector<2x128xf32>
    %340 = arith.negf %339 : vector<2x128xf32>
    %341 = math.exp %340 : vector<2x128xf32>
    %cst_102 = arith.constant 1.000000e+00 : f32
    %342 = vector.broadcast %cst_102 : f32 to vector<2x128xf32>
    %343 = arith.addf %342, %341 : vector<2x128xf32>
    %344 = arith.divf %342, %343 : vector<2x128xf32>
    %345 = vector.extract_strided_slice %338 {offsets = [0, 128], sizes = [2, 128], strides = [1, 1]} : vector<2x512xf32> to vector<2x128xf32>
    %346 = arith.negf %345 : vector<2x128xf32>
    %347 = math.exp %346 : vector<2x128xf32>
    %cst_103 = arith.constant 1.000000e+00 : f32
    %348 = vector.broadcast %cst_103 : f32 to vector<2x128xf32>
    %349 = arith.addf %348, %347 : vector<2x128xf32>
    %350 = arith.divf %348, %349 : vector<2x128xf32>
    %351 = vector.extract_strided_slice %338 {offsets = [0, 256], sizes = [2, 128], strides = [1, 1]} : vector<2x512xf32> to vector<2x128xf32>
    %352 = math.tanh %351 : vector<2x128xf32>
    %353 = vector.extract_strided_slice %338 {offsets = [0, 384], sizes = [2, 128], strides = [1, 1]} : vector<2x512xf32> to vector<2x128xf32>
    %354 = arith.negf %353 : vector<2x128xf32>
    %355 = math.exp %354 : vector<2x128xf32>
    %cst_104 = arith.constant 1.000000e+00 : f32
    %356 = vector.broadcast %cst_104 : f32 to vector<2x128xf32>
    %357 = arith.addf %356, %355 : vector<2x128xf32>
    %358 = arith.divf %356, %357 : vector<2x128xf32>
    %359 = arith.mulf %350, %333 : vector<2x128xf32>
    %360 = arith.mulf %344, %352 : vector<2x128xf32>
    %361 = arith.addf %359, %360 : vector<2x128xf32>
    %362 = math.tanh %361 : vector<2x128xf32>
    %363 = arith.mulf %358, %362 : vector<2x128xf32>
    %c8_105 = arith.constant 8 : index
    %c0_106 = arith.constant 0 : index
    %364 = vector.load %arg9[%c8_105, %c0_106] : memref<16x512xf32, #tpu.memory_space<vmem>>, vector<2x512xf32>
    %cst_107 = arith.constant dense<0.000000e+00> : vector<2x512xf32>
    %365 = tpu.matmul %363, %1, %cst_107 {dimension_numbers = #tpu.dot_dimension_numbers<[1], [0], [0], [1], [0, 0, 1, 1], [], []>} : vector<2x128xf32>, vector<128x512xf32>, vector<2x512xf32> -> vector<2x512xf32>
    %366 = arith.addf %364, %365 : vector<2x512xf32>
    %367 = vector.extract_strided_slice %366 {offsets = [0, 0], sizes = [2, 128], strides = [1, 1]} : vector<2x512xf32> to vector<2x128xf32>
    %368 = arith.negf %367 : vector<2x128xf32>
    %369 = math.exp %368 : vector<2x128xf32>
    %cst_108 = arith.constant 1.000000e+00 : f32
    %370 = vector.broadcast %cst_108 : f32 to vector<2x128xf32>
    %371 = arith.addf %370, %369 : vector<2x128xf32>
    %372 = arith.divf %370, %371 : vector<2x128xf32>
    %373 = vector.extract_strided_slice %366 {offsets = [0, 128], sizes = [2, 128], strides = [1, 1]} : vector<2x512xf32> to vector<2x128xf32>
    %374 = arith.negf %373 : vector<2x128xf32>
    %375 = math.exp %374 : vector<2x128xf32>
    %cst_109 = arith.constant 1.000000e+00 : f32
    %376 = vector.broadcast %cst_109 : f32 to vector<2x128xf32>
    %377 = arith.addf %376, %375 : vector<2x128xf32>
    %378 = arith.divf %376, %377 : vector<2x128xf32>
    %379 = vector.extract_strided_slice %366 {offsets = [0, 256], sizes = [2, 128], strides = [1, 1]} : vector<2x512xf32> to vector<2x128xf32>
    %380 = math.tanh %379 : vector<2x128xf32>
    %381 = vector.extract_strided_slice %366 {offsets = [0, 384], sizes = [2, 128], strides = [1, 1]} : vector<2x512xf32> to vector<2x128xf32>
    %382 = arith.negf %381 : vector<2x128xf32>
    %383 = math.exp %382 : vector<2x128xf32>
    %cst_110 = arith.constant 1.000000e+00 : f32
    %384 = vector.broadcast %cst_110 : f32 to vector<2x128xf32>
    %385 = arith.addf %384, %383 : vector<2x128xf32>
    %386 = arith.divf %384, %385 : vector<2x128xf32>
    %387 = arith.mulf %378, %361 : vector<2x128xf32>
    %388 = arith.mulf %372, %380 : vector<2x128xf32>
    %389 = arith.addf %387, %388 : vector<2x128xf32>
    %390 = math.tanh %389 : vector<2x128xf32>
    %391 = arith.mulf %386, %390 : vector<2x128xf32>
    %c10_111 = arith.constant 10 : index
    %c0_112 = arith.constant 0 : index
    %392 = vector.load %arg9[%c10_111, %c0_112] : memref<16x512xf32, #tpu.memory_space<vmem>>, vector<2x512xf32>
    %cst_113 = arith.constant dense<0.000000e+00> : vector<2x512xf32>
    %393 = tpu.matmul %391, %1, %cst_113 {dimension_numbers = #tpu.dot_dimension_numbers<[1], [0], [0], [1], [0, 0, 1, 1], [], []>} : vector<2x128xf32>, vector<128x512xf32>, vector<2x512xf32> -> vector<2x512xf32>
    %394 = arith.addf %392, %393 : vector<2x512xf32>
    %395 = vector.extract_strided_slice %394 {offsets = [0, 0], sizes = [2, 128], strides = [1, 1]} : vector<2x512xf32> to vector<2x128xf32>
    %396 = arith.negf %395 : vector<2x128xf32>
    %397 = math.exp %396 : vector<2x128xf32>
    %cst_114 = arith.constant 1.000000e+00 : f32
    %398 = vector.broadcast %cst_114 : f32 to vector<2x128xf32>
    %399 = arith.addf %398, %397 : vector<2x128xf32>
    %400 = arith.divf %398, %399 : vector<2x128xf32>
    %401 = vector.extract_strided_slice %394 {offsets = [0, 128], sizes = [2, 128], strides = [1, 1]} : vector<2x512xf32> to vector<2x128xf32>
    %402 = arith.negf %401 : vector<2x128xf32>
    %403 = math.exp %402 : vector<2x128xf32>
    %cst_115 = arith.constant 1.000000e+00 : f32
    %404 = vector.broadcast %cst_115 : f32 to vector<2x128xf32>
    %405 = arith.addf %404, %403 : vector<2x128xf32>
    %406 = arith.divf %404, %405 : vector<2x128xf32>
    %407 = vector.extract_strided_slice %394 {offsets = [0, 256], sizes = [2, 128], strides = [1, 1]} : vector<2x512xf32> to vector<2x128xf32>
    %408 = math.tanh %407 : vector<2x128xf32>
    %409 = vector.extract_strided_slice %394 {offsets = [0, 384], sizes = [2, 128], strides = [1, 1]} : vector<2x512xf32> to vector<2x128xf32>
    %410 = arith.negf %409 : vector<2x128xf32>
    %411 = math.exp %410 : vector<2x128xf32>
    %cst_116 = arith.constant 1.000000e+00 : f32
    %412 = vector.broadcast %cst_116 : f32 to vector<2x128xf32>
    %413 = arith.addf %412, %411 : vector<2x128xf32>
    %414 = arith.divf %412, %413 : vector<2x128xf32>
    %415 = arith.mulf %406, %389 : vector<2x128xf32>
    %416 = arith.mulf %400, %408 : vector<2x128xf32>
    %417 = arith.addf %415, %416 : vector<2x128xf32>
    %418 = math.tanh %417 : vector<2x128xf32>
    %419 = arith.mulf %414, %418 : vector<2x128xf32>
    %c12_117 = arith.constant 12 : index
    %c0_118 = arith.constant 0 : index
    %420 = vector.load %arg9[%c12_117, %c0_118] : memref<16x512xf32, #tpu.memory_space<vmem>>, vector<2x512xf32>
    %cst_119 = arith.constant dense<0.000000e+00> : vector<2x512xf32>
    %421 = tpu.matmul %419, %1, %cst_119 {dimension_numbers = #tpu.dot_dimension_numbers<[1], [0], [0], [1], [0, 0, 1, 1], [], []>} : vector<2x128xf32>, vector<128x512xf32>, vector<2x512xf32> -> vector<2x512xf32>
    %422 = arith.addf %420, %421 : vector<2x512xf32>
    %423 = vector.extract_strided_slice %422 {offsets = [0, 0], sizes = [2, 128], strides = [1, 1]} : vector<2x512xf32> to vector<2x128xf32>
    %424 = arith.negf %423 : vector<2x128xf32>
    %425 = math.exp %424 : vector<2x128xf32>
    %cst_120 = arith.constant 1.000000e+00 : f32
    %426 = vector.broadcast %cst_120 : f32 to vector<2x128xf32>
    %427 = arith.addf %426, %425 : vector<2x128xf32>
    %428 = arith.divf %426, %427 : vector<2x128xf32>
    %429 = vector.extract_strided_slice %422 {offsets = [0, 128], sizes = [2, 128], strides = [1, 1]} : vector<2x512xf32> to vector<2x128xf32>
    %430 = arith.negf %429 : vector<2x128xf32>
    %431 = math.exp %430 : vector<2x128xf32>
    %cst_121 = arith.constant 1.000000e+00 : f32
    %432 = vector.broadcast %cst_121 : f32 to vector<2x128xf32>
    %433 = arith.addf %432, %431 : vector<2x128xf32>
    %434 = arith.divf %432, %433 : vector<2x128xf32>
    %435 = vector.extract_strided_slice %422 {offsets = [0, 256], sizes = [2, 128], strides = [1, 1]} : vector<2x512xf32> to vector<2x128xf32>
    %436 = math.tanh %435 : vector<2x128xf32>
    %437 = vector.extract_strided_slice %422 {offsets = [0, 384], sizes = [2, 128], strides = [1, 1]} : vector<2x512xf32> to vector<2x128xf32>
    %438 = arith.negf %437 : vector<2x128xf32>
    %439 = math.exp %438 : vector<2x128xf32>
    %cst_122 = arith.constant 1.000000e+00 : f32
    %440 = vector.broadcast %cst_122 : f32 to vector<2x128xf32>
    %441 = arith.addf %440, %439 : vector<2x128xf32>
    %442 = arith.divf %440, %441 : vector<2x128xf32>
    %443 = arith.mulf %434, %417 : vector<2x128xf32>
    %444 = arith.mulf %428, %436 : vector<2x128xf32>
    %445 = arith.addf %443, %444 : vector<2x128xf32>
    %446 = math.tanh %445 : vector<2x128xf32>
    %447 = arith.mulf %442, %446 : vector<2x128xf32>
    %c14_123 = arith.constant 14 : index
    %c0_124 = arith.constant 0 : index
    %448 = vector.load %arg9[%c14_123, %c0_124] : memref<16x512xf32, #tpu.memory_space<vmem>>, vector<2x512xf32>
    %cst_125 = arith.constant dense<0.000000e+00> : vector<2x512xf32>
    %449 = tpu.matmul %447, %1, %cst_125 {dimension_numbers = #tpu.dot_dimension_numbers<[1], [0], [0], [1], [0, 0, 1, 1], [], []>} : vector<2x128xf32>, vector<128x512xf32>, vector<2x512xf32> -> vector<2x512xf32>
    %450 = arith.addf %448, %449 : vector<2x512xf32>
    %451 = vector.extract_strided_slice %450 {offsets = [0, 0], sizes = [2, 128], strides = [1, 1]} : vector<2x512xf32> to vector<2x128xf32>
    %452 = arith.negf %451 : vector<2x128xf32>
    %453 = math.exp %452 : vector<2x128xf32>
    %cst_126 = arith.constant 1.000000e+00 : f32
    %454 = vector.broadcast %cst_126 : f32 to vector<2x128xf32>
    %455 = arith.addf %454, %453 : vector<2x128xf32>
    %456 = arith.divf %454, %455 : vector<2x128xf32>
    %457 = vector.extract_strided_slice %450 {offsets = [0, 128], sizes = [2, 128], strides = [1, 1]} : vector<2x512xf32> to vector<2x128xf32>
    %458 = arith.negf %457 : vector<2x128xf32>
    %459 = math.exp %458 : vector<2x128xf32>
    %cst_127 = arith.constant 1.000000e+00 : f32
    %460 = vector.broadcast %cst_127 : f32 to vector<2x128xf32>
    %461 = arith.addf %460, %459 : vector<2x128xf32>
    %462 = arith.divf %460, %461 : vector<2x128xf32>
    %463 = vector.extract_strided_slice %450 {offsets = [0, 256], sizes = [2, 128], strides = [1, 1]} : vector<2x512xf32> to vector<2x128xf32>
    %464 = math.tanh %463 : vector<2x128xf32>
    %465 = vector.extract_strided_slice %450 {offsets = [0, 384], sizes = [2, 128], strides = [1, 1]} : vector<2x512xf32> to vector<2x128xf32>
    %466 = arith.negf %465 : vector<2x128xf32>
    %467 = math.exp %466 : vector<2x128xf32>
    %cst_128 = arith.constant 1.000000e+00 : f32
    %468 = vector.broadcast %cst_128 : f32 to vector<2x128xf32>
    %469 = arith.addf %468, %467 : vector<2x128xf32>
    %470 = arith.divf %468, %469 : vector<2x128xf32>
    %471 = arith.mulf %462, %445 : vector<2x128xf32>
    %472 = arith.mulf %456, %464 : vector<2x128xf32>
    %473 = arith.addf %471, %472 : vector<2x128xf32>
    %474 = math.tanh %473 : vector<2x128xf32>
    %475 = arith.mulf %470, %474 : vector<2x128xf32>
    %476 = vector.extract_strided_slice %241 {offsets = [0, 0], sizes = [2, 5], strides = [1, 1]} : vector<2x128xf32> to vector<2x5xf32>
    %c0_129 = arith.constant 0 : index
    %c0_130 = arith.constant 0 : index
    %c0_131 = arith.constant 0 : index
    %477 = vector.load %arg7[%c0_129, %c0_130, %c0_131] : memref<2x2x5xf32, #tpu.memory_space<vmem>>, vector<1x2x5xf32>
    %478 = vector.shape_cast %477 : vector<1x2x5xf32> to vector<2x5xf32>
    %479 = vector.shape_cast %476 : vector<2x5xf32> to vector<1x2x5xf32>
    tpu.vector_store %arg7[%c0_129, %c0_130, %c0_131], %479 {strides = array<i32>} : memref<2x2x5xf32, #tpu.memory_space<vmem>>, vector<1x2x5xf32>,
    %480 = vector.extract_strided_slice %475 {offsets = [0, 0], sizes = [2, 5], strides = [1, 1]} : vector<2x128xf32> to vector<2x5xf32>
    %c1 = arith.constant 1 : index
    %c0_132 = arith.constant 0 : index
    %c0_133 = arith.constant 0 : index
    %481 = vector.load %arg7[%c1, %c0_132, %c0_133] : memref<2x2x5xf32, #tpu.memory_space<vmem>>, vector<1x2x5xf32>
    %482 = vector.shape_cast %481 : vector<1x2x5xf32> to vector<2x5xf32>
    %483 = vector.shape_cast %480 : vector<2x5xf32> to vector<1x2x5xf32>
    tpu.vector_store %arg7[%c1, %c0_132, %c0_133], %483 {strides = array<i32>} : memref<2x2x5xf32, #tpu.memory_space<vmem>>, vector<1x2x5xf32>,
    %484 = vector.extract_strided_slice %239 {offsets = [0, 0], sizes = [2, 5], strides = [1, 1]} : vector<2x128xf32> to vector<2x5xf32>
    %c0_134 = arith.constant 0 : index
    %c0_135 = arith.constant 0 : index
    %c0_136 = arith.constant 0 : index
    %485 = vector.load %arg8[%c0_134, %c0_135, %c0_136] : memref<2x2x5xf32, #tpu.memory_space<vmem>>, vector<1x2x5xf32>
    %486 = vector.shape_cast %485 : vector<1x2x5xf32> to vector<2x5xf32>
    %487 = vector.shape_cast %484 : vector<2x5xf32> to vector<1x2x5xf32>
    tpu.vector_store %arg8[%c0_134, %c0_135, %c0_136], %487 {strides = array<i32>} : memref<2x2x5xf32, #tpu.memory_space<vmem>>, vector<1x2x5xf32>,
    %488 = vector.extract_strided_slice %473 {offsets = [0, 0], sizes = [2, 5], strides = [1, 1]} : vector<2x128xf32> to vector<2x5xf32>
    %c1_137 = arith.constant 1 : index
    %c0_138 = arith.constant 0 : index
    %c0_139 = arith.constant 0 : index
    %489 = vector.load %arg8[%c1_137, %c0_138, %c0_139] : memref<2x2x5xf32, #tpu.memory_space<vmem>>, vector<1x2x5xf32>
    %490 = vector.shape_cast %489 : vector<1x2x5xf32> to vector<2x5xf32>
    %491 = vector.shape_cast %488 : vector<2x5xf32> to vector<1x2x5xf32>
    tpu.vector_store %arg8[%c1_137, %c0_138, %c0_139], %491 {strides = array<i32>} : memref<2x2x5xf32, #tpu.memory_space<vmem>>, vector<1x2x5xf32>,
    return
  }
}

</mosaic_0001>

<llo_original>
// kernel: lstm_autoencoder_forward.1
$region0: #{lstm_autoencoder_forward.1}
  #allocation0 [shape = 'u32[]', space=smem, size = 0x4, offset = 0x4, fixed_abs, tag = 'smem constant byte address 0x4 - core index']
  #allocation1 [shape = 'u32[144,128]{1,0:T(1,128)}', space=vmem, size = 0x12000, scoped, tag = 'internal scratch']
  #allocation2 [shape = 'f32[16,512]{1,0:T(8,128)}', space=vmem, size = 0x8000, scoped, tag = 'scratch operand']
  #allocation3 [shape = 'f32[16,128]{1,0:T(8,128)}', space=vmem, size = 0x2000, scoped, tag = 'scratch operand']
  %s0 = inlined_call_operand.vmem [shape: f32[16,8], index: 0, kind: input, shape index: {}]
  %s1 = inlined_call_operand.vmem [shape: f32[8,512], index: 1, kind: input, shape index: {}]
  %s2 = inlined_call_operand.hbm [shape: f32[128,512], index: 2, kind: input, shape index: {}]
  %s3 = inlined_call_operand.vmem [shape: f32[1,512], index: 3, kind: input, shape index: {}]
  %s4 = inlined_call_operand.hbm [shape: f32[128,512], index: 4, kind: input, shape index: {}]
  %s5 = inlined_call_operand.hbm [shape: f32[128,512], index: 5, kind: input, shape index: {}]
  %s6 = inlined_call_operand.vmem [shape: f32[1,512], index: 6, kind: input, shape index: {}]
  %s7 = inlined_call_operand.hbm [shape: f32[2,2,5], index: 7, kind: output, shape index: {0}]
  %s8 = inlined_call_operand.hbm [shape: f32[2,2,5], index: 8, kind: output, shape index: {1}]
  %9 = xla_tuple %s7, %s8
  %s10 = sld [smem:[#allocation0]]
  $region58: #{lstm_autoencoder_forward.1} parent=0
    _
  %s12 = ssub.s32 1, %s10
  %s13 = scalar_select 0, %s12, %s10
  $region1: #{lstm_autoencoder_forward.1} parent=0
    #allocation4 [shape = 'u8[262144]{0}', space=vmem, size = 0x40000, scoped, tag = 'input window, operand 2, single buffered']
    #allocation5 [shape = 's32[1]{0}', space=sflag, size = 0x4, scoped, tag = 'scoped memory for lstm_autoencoder_forward.1']
    #allocation6 [shape = 's32[1]{0}', space=sflag, size = 0x4, scoped, tag = 'scoped memory for lstm_autoencoder_forward.1']
    #allocation7 [shape = 'u8[262144]{0}', space=vmem, size = 0x40000, scoped, tag = 'input window, operand 4, single buffered']
    #allocation8 [shape = 's32[1]{0}', space=sflag, size = 0x4, scoped, tag = 'scoped memory for lstm_autoencoder_forward.1']
    #allocation9 [shape = 'u8[262144]{0}', space=vmem, size = 0x40000, scoped, tag = 'input window, operand 5, single buffered']
    #allocation10 [shape = 'u8[2048]{0}', space=vmem, size = 0x800, scoped, tag = 'output window, operand 0, single buffered']
    #allocation11 [shape = 'u8[2048]{0}', space=vmem, size = 0x800, scoped, tag = 'output window, operand 1, single buffered']
    #allocation12 [shape = 's32[1]{0}', space=sflag, size = 0x4, scoped, tag = 'scoped memory for lstm_autoencoder_forward.1']
    %14 = vsyncpa [#allocation5], 0
    %15 = vsyncpa [#allocation8], 0
    %16 = vsyncpa [#allocation6], 0
    %17 = vsyncpa [#allocation12], 0
    // Predicated region
    $region2: #{lstm_autoencoder_forward.1} parent=1 // pred_check
      _
    $region3: #{lstm_autoencoder_forward.1} parent=1 // pred_check_branch
      %19 = sbr.rel (0) target = $region5
    $region4: #{lstm_autoencoder_forward.1} parent=1 // pred_region
      _
    $region5: #{lstm_autoencoder_forward.1} parent=1 // pred_fallthru
      _
    // Predicated region
    $region6: #{lstm_autoencoder_forward.1} parent=1 // pred_check
      _
    $region7: #{lstm_autoencoder_forward.1} parent=1 // pred_check_branch
      %21 = sbr.rel (0) target = $region9
    $region8: #{lstm_autoencoder_forward.1} parent=1 // pred_region
      _
    $region9: #{lstm_autoencoder_forward.1} parent=1 // pred_fallthru
      _
    // Predicated region
    $region10: #{lstm_autoencoder_forward.1} parent=1 // pred_check
      _
    $region11: #{lstm_autoencoder_forward.1} parent=1 // pred_check_branch
      %23 = sbr.rel (0) target = $region13
    $region12: #{lstm_autoencoder_forward.1} parent=1 // pred_region
      %s25 = ssub.s32 8192, 8192
      %26 = vsyncadd [#allocation5], %s25
      %s27 = sshll.u32 [#allocation4], 4
      %s28 = int_to_ptr.vmem [resolvable:$true] %s27
      %33 = dma.hbm_to_vmem [thread:$0]  %s2, 8192, %s28, [#allocation5], 512, 512, 32
    $region13: #{lstm_autoencoder_forward.1} parent=1 // pred_fallthru
      _
    // Predicated region
    $region14: #{lstm_autoencoder_forward.1} parent=1 // pred_check
      _
    $region15: #{lstm_autoencoder_forward.1} parent=1 // pred_check_branch
      %35 = sbr.rel (0) target = $region17
    $region16: #{lstm_autoencoder_forward.1} parent=1 // pred_region
      _
    $region17: #{lstm_autoencoder_forward.1} parent=1 // pred_fallthru
      _
    // Predicated region
    $region18: #{lstm_autoencoder_forward.1} parent=1 // pred_check
      _
    $region19: #{lstm_autoencoder_forward.1} parent=1 // pred_check_branch
      %37 = sbr.rel (0) target = $region21
    $region20: #{lstm_autoencoder_forward.1} parent=1 // pred_region
      %s39 = ssub.s32 8192, 8192
      %40 = vsyncadd [#allocation8], %s39
      %s41 = sshll.u32 [#allocation7], 4
      %s42 = int_to_ptr.vmem [resolvable:$true] %s41
      %47 = dma.hbm_to_vmem [thread:$0]  %s4, 8192, %s42, [#allocation8], 512, 512, 32
    $region21: #{lstm_autoencoder_forward.1} parent=1 // pred_fallthru
      _
    // Predicated region
    $region22: #{lstm_autoencoder_forward.1} parent=1 // pred_check
      _
    $region23: #{lstm_autoencoder_forward.1} parent=1 // pred_check_branch
      %49 = sbr.rel (0) target = $region25
    $region24: #{lstm_autoencoder_forward.1} parent=1 // pred_region
      %s51 = ssub.s32 8192, 8192
      %52 = vsyncadd [#allocation8], %s51
      %s53 = sshll.u32 [#allocation9], 4
      %s54 = int_to_ptr.vmem [resolvable:$true] %s53
      %59 = dma.hbm_to_vmem [thread:$0]  %s5, 8192, %s54, [#allocation8], 512, 512, 32
    $region25: #{lstm_autoencoder_forward.1} parent=1 // pred_fallthru
      _
    // Predicated region
    $region26: #{lstm_autoencoder_forward.1} parent=1 // pred_check
      _
    $region27: #{lstm_autoencoder_forward.1} parent=1 // pred_check_branch
      %61 = sbr.rel (0) target = $region29
    $region28: #{lstm_autoencoder_forward.1} parent=1 // pred_region
      _
    $region29: #{lstm_autoencoder_forward.1} parent=1 // pred_fallthru
      _
    // Predicated region
    $region30: #{lstm_autoencoder_forward.1} parent=1 // pred_check
      _
    $region31: #{lstm_autoencoder_forward.1} parent=1 // pred_check_branch
      %63 = sbr.rel (0) target = $region33
    $region32: #{lstm_autoencoder_forward.1} parent=1 // pred_region
      %64 = dma.done [#allocation5], 8192
    $region33: #{lstm_autoencoder_forward.1} parent=1 // pred_fallthru
      _
    // Predicated region
    $region34: #{lstm_autoencoder_forward.1} parent=1 // pred_check
      _
    $region35: #{lstm_autoencoder_forward.1} parent=1 // pred_check_branch
      %66 = sbr.rel (0) target = $region37
    $region36: #{lstm_autoencoder_forward.1} parent=1 // pred_region
      %67 = dma.done [#allocation8], 8192
    $region37: #{lstm_autoencoder_forward.1} parent=1 // pred_fallthru
      _
    // Predicated region
    $region38: #{lstm_autoencoder_forward.1} parent=1 // pred_check
      _
    $region39: #{lstm_autoencoder_forward.1} parent=1 // pred_check_branch
      %69 = sbr.rel (0) target = $region41
    $region40: #{lstm_autoencoder_forward.1} parent=1 // pred_region
      %70 = dma.done [#allocation8], 8192
    $region41: #{lstm_autoencoder_forward.1} parent=1 // pred_fallthru
      _
    %v71 = vld [vmem:[#allocation4] sm:$0xff]
    %v72 = vld [vmem:[#allocation4 + $0x8] sm:$0xff]
    %v73 = vld [vmem:[#allocation4 + $0x10] sm:$0xff]
    %v74 = vld [vmem:[#allocation4 + $0x18] sm:$0xff]
    %v75 = vld [vmem:[#allocation4 + $0x20] sm:$0xff]
    %v76 = vld [vmem:[#allocation4 + $0x28] sm:$0xff]
    %v77 = vld [vmem:[#allocation4 + $0x30] sm:$0xff]
    %v78 = vld [vmem:[#allocation4 + $0x38] sm:$0xff]
    %v79 = vld [vmem:[#allocation4 + $0x40] sm:$0xff]
    %v80 = vld [vmem:[#allocation4 + $0x48] sm:$0xff]
    %v81 = vld [vmem:[#allocation4 + $0x50] sm:$0xff]
    %v82 = vld [vmem:[#allocation4 + $0x58] sm:$0xff]
    %v83 = vld [vmem:[#allocation4 + $0x60] sm:$0xff]
    %v84 = vld [vmem:[#allocation4 + $0x68] sm:$0xff]
    %v85 = vld [vmem:[#allocation4 + $0x70] sm:$0xff]
    %v86 = vld [vmem:[#allocation4 + $0x78] sm:$0xff]
    %v87 = vld [vmem:[#allocation4 + $0x80] sm:$0xff]
    %v88 = vld [vmem:[#allocation4 + $0x88] sm:$0xff]
    %v89 = vld [vmem:[#allocation4 + $0x90] sm:$0xff]
    %v90 = vld [vmem:[#allocation4 + $0x98] sm:$0xff]
    %v91 = vld [vmem:[#allocation4 + $0xa0] sm:$0xff]
    %v92 = vld [vmem:[#allocation4 + $0xa8] sm:$0xff]
    %v93 = vld [vmem:[#allocation4 + $0xb0] sm:$0xff]
    %v94 = vld [vmem:[#allocation4 + $0xb8] sm:$0xff]
    %v95 = vld [vmem:[#allocation4 + $0xc0] sm:$0xff]
    %v96 = vld [vmem:[#allocation4 + $0xc8] sm:$0xff]
    %v97 = vld [vmem:[#allocation4 + $0xd0] sm:$0xff]
    %v98 = vld [vmem:[#allocation4 + $0xd8] sm:$0xff]
    %v99 = vld [vmem:[#allocation4 + $0xe0] sm:$0xff]
    %v100 = vld [vmem:[#allocation4 + $0xe8] sm:$0xff]
    %v101 = vld [vmem:[#allocation4 + $0xf0] sm:$0xff]
    %v102 = vld [vmem:[#allocation4 + $0xf8] sm:$0xff]
    %v103 = vld [vmem:[#allocation4 + $0x100] sm:$0xff]
    %v104 = vld [vmem:[#allocation4 + $0x108] sm:$0xff]
    %v105 = vld [vmem:[#allocation4 + $0x110] sm:$0xff]
    %v106 = vld [vmem:[#allocation4 + $0x118] sm:$0xff]
    %v107 = vld [vmem:[#allocation4 + $0x120] sm:$0xff]
    %v108 = vld [vmem:[#allocation4 + $0x128] sm:$0xff]
    %v109 = vld [vmem:[#allocation4 + $0x130] sm:$0xff]
    %v110 = vld [vmem:[#allocation4 + $0x138] sm:$0xff]
    %v111 = vld [vmem:[#allocation4 + $0x140] sm:$0xff]
    %v112 = vld [vmem:[#allocation4 + $0x148] sm:$0xff]
    %v113 = vld [vmem:[#allocation4 + $0x150] sm:$0xff]
    %v114 = vld [vmem:[#allocation4 + $0x158] sm:$0xff]
    %v115 = vld [vmem:[#allocation4 + $0x160] sm:$0xff]
    %v116 = vld [vmem:[#allocation4 + $0x168] sm:$0xff]
    %v117 = vld [vmem:[#allocation4 + $0x170] sm:$0xff]
    %v118 = vld [vmem:[#allocation4 + $0x178] sm:$0xff]
    %v119 = vld [vmem:[#allocation4 + $0x180] sm:$0xff]
    %v120 = vld [vmem:[#allocation4 + $0x188] sm:$0xff]
    %v121 = vld [vmem:[#allocation4 + $0x190] sm:$0xff]
    %v122 = vld [vmem:[#allocation4 + $0x198] sm:$0xff]
    %v123 = vld [vmem:[#allocation4 + $0x1a0] sm:$0xff]
    %v124 = vld [vmem:[#allocation4 + $0x1a8] sm:$0xff]
    %v125 = vld [vmem:[#allocation4 + $0x1b0] sm:$0xff]
    %v126 = vld [vmem:[#allocation4 + $0x1b8] sm:$0xff]
    %v127 = vld [vmem:[#allocation4 + $0x1c0] sm:$0xff]
    %v128 = vld [vmem:[#allocation4 + $0x1c8] sm:$0xff]
    %v129 = vld [vmem:[#allocation4 + $0x1d0] sm:$0xff]
    %v130 = vld [vmem:[#allocation4 + $0x1d8] sm:$0xff]
    %v131 = vld [vmem:[#allocation4 + $0x1e0] sm:$0xff]
    %v132 = vld [vmem:[#allocation4 + $0x1e8] sm:$0xff]
    %v133 = vld [vmem:[#allocation4 + $0x1f0] sm:$0xff]
    %v134 = vld [vmem:[#allocation4 + $0x1f8] sm:$0xff]
    %v135 = vld [vmem:[#allocation9] sm:$0xff]
    %v136 = vld [vmem:[#allocation9 + $0x8] sm:$0xff]
    %v137 = vld [vmem:[#allocation9 + $0x10] sm:$0xff]
    %v138 = vld [vmem:[#allocation9 + $0x18] sm:$0xff]
    %v139 = vld [vmem:[#allocation9 + $0x20] sm:$0xff]
    %v140 = vld [vmem:[#allocation9 + $0x28] sm:$0xff]
    %v141 = vld [vmem:[#allocation9 + $0x30] sm:$0xff]
    %v142 = vld [vmem:[#allocation9 + $0x38] sm:$0xff]
    %v143 = vld [vmem:[#allocation9 + $0x40] sm:$0xff]
    %v144 = vld [vmem:[#allocation9 + $0x48] sm:$0xff]
    %v145 = vld [vmem:[#allocation9 + $0x50] sm:$0xff]
    %v146 = vld [vmem:[#allocation9 + $0x58] sm:$0xff]
    %v147 = vld [vmem:[#allocation9 + $0x60] sm:$0xff]
    %v148 = vld [vmem:[#allocation9 + $0x68] sm:$0xff]
    %v149 = vld [vmem:[#allocation9 + $0x70] sm:$0xff]
    %v150 = vld [vmem:[#allocation9 + $0x78] sm:$0xff]
    %v151 = vld [vmem:[#allocation9 + $0x80] sm:$0xff]
    %v152 = vld [vmem:[#allocation9 + $0x88] sm:$0xff]
    %v153 = vld [vmem:[#allocation9 + $0x90] sm:$0xff]
    %v154 = vld [vmem:[#allocation9 + $0x98] sm:$0xff]
    %v155 = vld [vmem:[#allocation9 + $0xa0] sm:$0xff]
    %v156 = vld [vmem:[#allocation9 + $0xa8] sm:$0xff]
    %v157 = vld [vmem:[#allocation9 + $0xb0] sm:$0xff]
    %v158 = vld [vmem:[#allocation9 + $0xb8] sm:$0xff]
    %v159 = vld [vmem:[#allocation9 + $0xc0] sm:$0xff]
    %v160 = vld [vmem:[#allocation9 + $0xc8] sm:$0xff]
    %v161 = vld [vmem:[#allocation9 + $0xd0] sm:$0xff]
    %v162 = vld [vmem:[#allocation9 + $0xd8] sm:$0xff]
    %v163 = vld [vmem:[#allocation9 + $0xe0] sm:$0xff]
    %v164 = vld [vmem:[#allocation9 + $0xe8] sm:$0xff]
    %v165 = vld [vmem:[#allocation9 + $0xf0] sm:$0xff]
    %v166 = vld [vmem:[#allocation9 + $0xf8] sm:$0xff]
    %v167 = vld [vmem:[#allocation9 + $0x100] sm:$0xff]
    %v168 = vld [vmem:[#allocation9 + $0x108] sm:$0xff]
    %v169 = vld [vmem:[#allocation9 + $0x110] sm:$0xff]
    %v170 = vld [vmem:[#allocation9 + $0x118] sm:$0xff]
    %v171 = vld [vmem:[#allocation9 + $0x120] sm:$0xff]
    %v172 = vld [vmem:[#allocation9 + $0x128] sm:$0xff]
    %v173 = vld [vmem:[#allocation9 + $0x130] sm:$0xff]
    %v174 = vld [vmem:[#allocation9 + $0x138] sm:$0xff]
    %v175 = vld [vmem:[#allocation9 + $0x140] sm:$0xff]
    %v176 = vld [vmem:[#allocation9 + $0x148] sm:$0xff]
    %v177 = vld [vmem:[#allocation9 + $0x150] sm:$0xff]
    %v178 = vld [vmem:[#allocation9 + $0x158] sm:$0xff]
    %v179 = vld [vmem:[#allocation9 + $0x160] sm:$0xff]
    %v180 = vld [vmem:[#allocation9 + $0x168] sm:$0xff]
    %v181 = vld [vmem:[#allocation9 + $0x170] sm:$0xff]
    %v182 = vld [vmem:[#allocation9 + $0x178] sm:$0xff]
    %v183 = vld [vmem:[#allocation9 + $0x180] sm:$0xff]
    %v184 = vld [vmem:[#allocation9 + $0x188] sm:$0xff]
    %v185 = vld [vmem:[#allocation9 + $0x190] sm:$0xff]
    %v186 = vld [vmem:[#allocation9 + $0x198] sm:$0xff]
    %v187 = vld [vmem:[#allocation9 + $0x1a0] sm:$0xff]
    %v188 = vld [vmem:[#allocation9 + $0x1a8] sm:$0xff]
    %v189 = vld [vmem:[#allocation9 + $0x1b0] sm:$0xff]
    %v190 = vld [vmem:[#allocation9 + $0x1b8] sm:$0xff]
    %v191 = vld [vmem:[#allocation9 + $0x1c0] sm:$0xff]
    %v192 = vld [vmem:[#allocation9 + $0x1c8] sm:$0xff]
    %v193 = vld [vmem:[#allocation9 + $0x1d0] sm:$0xff]
    %v194 = vld [vmem:[#allocation9 + $0x1d8] sm:$0xff]
    %v195 = vld [vmem:[#allocation9 + $0x1e0] sm:$0xff]
    %v196 = vld [vmem:[#allocation9 + $0x1e8] sm:$0xff]
    %v197 = vld [vmem:[#allocation9 + $0x1f0] sm:$0xff]
    %v198 = vld [vmem:[#allocation9 + $0x1f8] sm:$0xff]
    %v199 = vld [vmem:[%s0] sm:$0xff]
    %v200 = vld [vmem:[%s0 + $0x8] sm:$0xff]
    %v201 = vld [vmem:[%s1] sm:$0xff]
    %v202 = vld [vmem:[%s1 + $0x8] sm:$0xff]
    %v203 = vld [vmem:[%s1 + $0x10] sm:$0xff]
    %v204 = vld [vmem:[%s1 + $0x18] sm:$0xff]
    %v205 = vld [vmem:[%s3] sm:$0xf]
    %v207 = vlaneseq
    %v208 = vshrl.u32 %v207, 7
    %v209 = vsub.s32 0, %v208
    %v210 = vrot.slane %v205, %v209
    %v211 = vlaneseq
    %v212 = vshrl.u32 %v211, 7
    %v213 = vsub.s32 1, %v212
    %v214 = vrot.slane %v205, %v213
    %v215 = vlaneseq
    %v216 = vshrl.u32 %v215, 7
    %v217 = vsub.s32 2, %v216
    %v218 = vrot.slane %v205, %v217
    %v219 = vlaneseq
    %v220 = vshrl.u32 %v219, 7
    %v221 = vsub.s32 3, %v220
    %v222 = vrot.slane %v205, %v221
    %vm227 = vcmask 64512
    %v229 = vsel %vm227, %v199, 0
    %v232 = vsel %vm227, %v200, 0
    %234 = vmatprep.subr.mxu0 %v202
    %235 = vmatpush1.msra.mxu0 %v201
    %236 = vmatprep.subr.mxu0 0.0
    %237 = vmatpush1.msra.mxu0 0.0
    %238 = vmatprep.subr.mxu0 0.0
    %239 = vmatpush1.msra.mxu0 0.0
    %240 = vmatprep.subr.mxu0 0.0
    %241 = vmatpush1.msra.mxu0 0.0
    %242 = vmatprep.subr.mxu0 0.0
    %243 = vmatpush1.msra.mxu0 0.0
    %244 = vmatprep.subr.mxu0 0.0
    %245 = vmatpush1.msra.mxu0 0.0
    %246 = vmatprep.subr.mxu0 0.0
    %247 = vmatpush1.msra.mxu0 0.0
    %248 = vmatprep.subr.mxu0 0.0
    %249 = vmatpush1.msra.mxu0 0.0
    %250 = vmatprep.subr.mxu0 0.0
    %251 = vmatpush1.msra.mxu0 0.0
    %252 = vmatprep.subr.mxu0 0.0
    %253 = vmatpush1.msra.mxu0 0.0
    %254 = vmatprep.subr.mxu0 0.0
    %255 = vmatpush1.msra.mxu0 0.0
    %256 = vmatprep.subr.mxu0 0.0
    %257 = vmatpush1.msra.mxu0 0.0
    %258 = vmatprep.subr.mxu0 0.0
    %259 = vmatpush1.msra.mxu0 0.0
    %260 = vmatprep.subr.mxu0 0.0
    %261 = vmatpush1.msra.mxu0 0.0
    %262 = vmatprep.subr.mxu0 0.0
    %263 = vmatpush1.msra.mxu0 0.0
    %264 = vmatprep.subr.mxu0 0.0
    %265 = vmatpush1.msra.mxu0 0.0
    %266 = vmatprep.subr.mxu0 0.0
    %267 = vmatpush1.msra.mxu0 0.0
    %268 = vmatprep.subr.mxu0 0.0
    %269 = vmatpush1.msra.mxu0 0.0
    %270 = vmatprep.subr.mxu0 0.0
    %271 = vmatpush1.msra.mxu0 0.0
    %272 = vmatprep.subr.mxu0 0.0
    %273 = vmatpush1.msra.mxu0 0.0
    %274 = vmatprep.subr.mxu0 0.0
    %275 = vmatpush1.msra.mxu0 0.0
    %276 = vmatprep.subr.mxu0 0.0
    %277 = vmatpush1.msra.mxu0 0.0
    %278 = vmatprep.subr.mxu0 0.0
    %279 = vmatpush1.msra.mxu0 0.0
    %280 = vmatprep.subr.mxu0 0.0
    %281 = vmatpush1.msra.mxu0 0.0
    %282 = vmatprep.subr.mxu0 0.0
    %283 = vmatpush1.msra.mxu0 0.0
    %284 = vmatprep.subr.mxu0 0.0
    %285 = vmatpush1.msra.mxu0 0.0
    %286 = vmatprep.subr.mxu0 0.0
    %287 = vmatpush1.msra.mxu0 0.0
    %288 = vmatprep.subr.mxu0 0.0
    %289 = vmatpush1.msra.mxu0 0.0
    %290 = vmatprep.subr.mxu0 0.0
    %291 = vmatpush1.msra.mxu0 0.0
    %292 = vmatprep.subr.mxu0 0.0
    %293 = vmatpush1.msra.mxu0 0.0
    %294 = vmatprep.subr.mxu0 0.0
    %295 = vmatpush1.msra.mxu0 0.0
    %296 = vmatprep.subr.mxu0 0.0
    %297 = vmatpush1.msra.mxu0 0.0
    %298 = vmatprep.mubr.f32.mxu0 0.0
    %299 = vmatmul.mubr.f32.gmra.mrb[0].mxu0 %v229
    %v300 = vpop.f32.mrb[0].mxu0
    %v301 = vadd.f32 %v210, %v300
    %v302 = vpop.f32.mrb[0].mxu0
    %v303 = vadd.f32 %v214, %v302
    %304 = vmatprep.mubr.f32.mxu0 0.0
    %305 = vmatmul.mubr.f32.gmra.mrb[0].mxu0 %v232
    %v306 = vpop.f32.mrb[0].mxu0
    %v307 = vadd.f32 %v210, %v306
    %v308 = vpop.f32.mrb[0].mxu0
    %v309 = vadd.f32 %v214, %v308
    %310 = vdwg.mxu0
    %311 = vmatprep.subr.mxu0 %v204
    %312 = vmatpush1.msra.mxu0 %v203
    %313 = vmatprep.subr.mxu0 0.0
    %314 = vmatpush1.msra.mxu0 0.0
    %315 = vmatprep.subr.mxu0 0.0
    %316 = vmatpush1.msra.mxu0 0.0
    %317 = vmatprep.subr.mxu0 0.0
    %318 = vmatpush1.msra.mxu0 0.0
    %319 = vmatprep.subr.mxu0 0.0
    %320 = vmatpush1.msra.mxu0 0.0
    %321 = vmatprep.subr.mxu0 0.0
    %322 = vmatpush1.msra.mxu0 0.0
    %323 = vmatprep.subr.mxu0 0.0
    %324 = vmatpush1.msra.mxu0 0.0
    %325 = vmatprep.subr.mxu0 0.0
    %326 = vmatpush1.msra.mxu0 0.0
    %327 = vmatprep.subr.mxu0 0.0
    %328 = vmatpush1.msra.mxu0 0.0
    %329 = vmatprep.subr.mxu0 0.0
    %330 = vmatpush1.msra.mxu0 0.0
    %331 = vmatprep.subr.mxu0 0.0
    %332 = vmatpush1.msra.mxu0 0.0
    %333 = vmatprep.subr.mxu0 0.0
    %334 = vmatpush1.msra.mxu0 0.0
    %335 = vmatprep.subr.mxu0 0.0
    %336 = vmatpush1.msra.mxu0 0.0
    %337 = vmatprep.subr.mxu0 0.0
    %338 = vmatpush1.msra.mxu0 0.0
    %339 = vmatprep.subr.mxu0 0.0
    %340 = vmatpush1.msra.mxu0 0.0
    %341 = vmatprep.subr.mxu0 0.0
    %342 = vmatpush1.msra.mxu0 0.0
    %343 = vmatprep.subr.mxu0 0.0
    %344 = vmatpush1.msra.mxu0 0.0
    %345 = vmatprep.subr.mxu0 0.0
    %346 = vmatpush1.msra.mxu0 0.0
    %347 = vmatprep.subr.mxu0 0.0
    %348 = vmatpush1.msra.mxu0 0.0
    %349 = vmatprep.subr.mxu0 0.0
    %350 = vmatpush1.msra.mxu0 0.0
    %351 = vmatprep.subr.mxu0 0.0
    %352 = vmatpush1.msra.mxu0 0.0
    %353 = vmatprep.subr.mxu0 0.0
    %354 = vmatpush1.msra.mxu0 0.0
    %355 = vmatprep.subr.mxu0 0.0
    %356 = vmatpush1.msra.mxu0 0.0
    %357 = vmatprep.subr.mxu0 0.0
    %358 = vmatpush1.msra.mxu0 0.0
    %359 = vmatprep.subr.mxu0 0.0
    %360 = vmatpush1.msra.mxu0 0.0
    %361 = vmatprep.subr.mxu0 0.0
    %362 = vmatpush1.msra.mxu0 0.0
    %363 = vmatprep.subr.mxu0 0.0
    %364 = vmatpush1.msra.mxu0 0.0
    %365 = vmatprep.subr.mxu0 0.0
    %366 = vmatpush1.msra.mxu0 0.0
    %367 = vmatprep.subr.mxu0 0.0
    %368 = vmatpush1.msra.mxu0 0.0
    %369 = vmatprep.subr.mxu0 0.0
    %370 = vmatpush1.msra.mxu0 0.0
    %371 = vmatprep.subr.mxu0 0.0
    %372 = vmatpush1.msra.mxu0 0.0
    %373 = vmatprep.subr.mxu0 0.0
    %374 = vmatpush1.msra.mxu0 0.0
    %375 = vmatprep.mubr.f32.mxu0 0.0
    %376 = vmatmul.mubr.f32.gmra.mrb[0].mxu0 %v229
    %v377 = vpop.f32.mrb[0].mxu0
    %v378 = vadd.f32 %v218, %v377
    %v379 = vpop.f32.mrb[0].mxu0
    %v380 = vadd.f32 %v222, %v379
    %381 = vmatprep.mubr.f32.mxu0 0.0
    %382 = vmatmul.mubr.f32.gmra.mrb[0].mxu0 %v232
    %v383 = vpop.f32.mrb[0].mxu0
    %v384 = vadd.f32 %v218, %v383
    %v385 = vpop.f32.mrb[0].mxu0
    %v386 = vadd.f32 %v222, %v385
    %387 = vdwg.mxu0
    %388 = vst [vmem:[#allocation2] sm:$0xff] %v301
    %389 = vst [vmem:[#allocation2 + $0x8] sm:$0xff] %v303
    %390 = vst [vmem:[#allocation2 + $0x10] sm:$0xff] %v378
    %391 = vst [vmem:[#allocation2 + $0x18] sm:$0xff] %v380
    %392 = vst [vmem:[#allocation2 + $0x20] sm:$0xff] %v307
    %393 = vst [vmem:[#allocation2 + $0x28] sm:$0xff] %v309
    %394 = vst [vmem:[#allocation2 + $0x30] sm:$0xff] %v384
    %395 = vst [vmem:[#allocation2 + $0x38] sm:$0xff] %v386
    %v396 = vld [vmem:[#allocation2] sm:$0x3]
    %v397 = vld [vmem:[#allocation2 + $0x8] sm:$0x3]
    %v398 = vld [vmem:[#allocation2 + $0x10] sm:$0x3]
    %v399 = vld [vmem:[#allocation2 + $0x18] sm:$0x3]
    %400 = vmatprep.subr.mxu0 %v72
    %401 = vmatpush1.msra.mxu0 %v71
    %402 = vmatprep.subr.mxu0 %v76
    %403 = vmatpush1.msra.mxu0 %v75
    %404 = vmatprep.subr.mxu0 %v80
    %405 = vmatpush1.msra.mxu0 %v79
    %406 = vmatprep.subr.mxu0 %v84
    %407 = vmatpush1.msra.mxu0 %v83
    %408 = vmatprep.subr.mxu0 %v88
    %409 = vmatpush1.msra.mxu0 %v87
    %410 = vmatprep.subr.mxu0 %v92
    %411 = vmatpush1.msra.mxu0 %v91
    %412 = vmatprep.subr.mxu0 %v96
    %413 = vmatpush1.msra.mxu0 %v95
    %414 = vmatprep.subr.mxu0 %v100
    %415 = vmatpush1.msra.mxu0 %v99
    %416 = vmatprep.subr.mxu0 %v104
    %417 = vmatpush1.msra.mxu0 %v103
    %418 = vmatprep.subr.mxu0 %v108
    %419 = vmatpush1.msra.mxu0 %v107
    %420 = vmatprep.subr.mxu0 %v112
    %421 = vmatpush1.msra.mxu0 %v111
    %422 = vmatprep.subr.mxu0 %v116
    %423 = vmatpush1.msra.mxu0 %v115
    %424 = vmatprep.subr.mxu0 %v120
    %425 = vmatpush1.msra.mxu0 %v119
    %426 = vmatprep.subr.mxu0 %v124
    %427 = vmatpush1.msra.mxu0 %v123
    %428 = vmatprep.subr.mxu0 %v128
    %429 = vmatpush1.msra.mxu0 %v127
    %430 = vmatprep.subr.mxu0 %v132
    %431 = vmatpush1.msra.mxu0 %v131
    %432 = vmatprep.subr.mxu0 0.0
    %433 = vmatpush1.msra.mxu0 0.0
    %434 = vmatprep.subr.mxu0 0.0
    %435 = vmatpush1.msra.mxu0 0.0
    %436 = vmatprep.subr.mxu0 0.0
    %437 = vmatpush1.msra.mxu0 0.0
    %438 = vmatprep.subr.mxu0 0.0
    %439 = vmatpush1.msra.mxu0 0.0
    %440 = vmatprep.subr.mxu0 0.0
    %441 = vmatpush1.msra.mxu0 0.0
    %442 = vmatprep.subr.mxu0 0.0
    %443 = vmatpush1.msra.mxu0 0.0
    %444 = vmatprep.subr.mxu0 0.0
    %445 = vmatpush1.msra.mxu0 0.0
    %446 = vmatprep.subr.mxu0 0.0
    %447 = vmatpush1.msra.mxu0 0.0
    %448 = vmatprep.subr.mxu0 0.0
    %449 = vmatpush1.msra.mxu0 0.0
    %450 = vmatprep.subr.mxu0 0.0
    %451 = vmatpush1.msra.mxu0 0.0
    %452 = vmatprep.subr.mxu0 0.0
    %453 = vmatpush1.msra.mxu0 0.0
    %454 = vmatprep.subr.mxu0 0.0
    %455 = vmatpush1.msra.mxu0 0.0
    %456 = vmatprep.subr.mxu0 0.0
    %457 = vmatpush1.msra.mxu0 0.0
    %458 = vmatprep.subr.mxu0 0.0
    %459 = vmatpush1.msra.mxu0 0.0
    %460 = vmatprep.subr.mxu0 0.0
    %461 = vmatpush1.msra.mxu0 0.0
    %462 = vmatprep.subr.mxu0 0.0
    %463 = vmatpush1.msra.mxu0 0.0
    %464 = vmatprep.mubr.f32.mxu0 0.0
    %465 = vmatmul.mubr.f32.gmra.mrb[0].mxu0 0.0
    %v466 = vpop.f32.mrb[0].mxu0
    %v467 = vadd.f32 0.0, %v466
    %v468 = vpop.f32.mrb[0].mxu0
    %v469 = vadd.f32 0.0, %v468
    %470 = vdwg.mxu0
    %471 = vmatprep.subr.mxu0 %v74
    %472 = vmatpush1.msra.mxu0 %v73
    %473 = vmatprep.subr.mxu0 %v78
    %474 = vmatpush1.msra.mxu0 %v77
    %475 = vmatprep.subr.mxu0 %v82
    %476 = vmatpush1.msra.mxu0 %v81
    %477 = vmatprep.subr.mxu0 %v86
    %478 = vmatpush1.msra.mxu0 %v85
    %479 = vmatprep.subr.mxu0 %v90
    %480 = vmatpush1.msra.mxu0 %v89
    %481 = vmatprep.subr.mxu0 %v94
    %482 = vmatpush1.msra.mxu0 %v93
    %483 = vmatprep.subr.mxu0 %v98
    %484 = vmatpush1.msra.mxu0 %v97
    %485 = vmatprep.subr.mxu0 %v102
    %486 = vmatpush1.msra.mxu0 %v101
    %487 = vmatprep.subr.mxu0 %v106
    %488 = vmatpush1.msra.mxu0 %v105
    %489 = vmatprep.subr.mxu0 %v110
    %490 = vmatpush1.msra.mxu0 %v109
    %491 = vmatprep.subr.mxu0 %v114
    %492 = vmatpush1.msra.mxu0 %v113
    %493 = vmatprep.subr.mxu0 %v118
    %494 = vmatpush1.msra.mxu0 %v117
    %495 = vmatprep.subr.mxu0 %v122
    %496 = vmatpush1.msra.mxu0 %v121
    %497 = vmatprep.subr.mxu0 %v126
    %498 = vmatpush1.msra.mxu0 %v125
    %499 = vmatprep.subr.mxu0 %v130
    %500 = vmatpush1.msra.mxu0 %v129
    %501 = vmatprep.subr.mxu0 %v134
    %502 = vmatpush1.msra.mxu0 %v133
    %503 = vmatprep.subr.mxu0 0.0
    %504 = vmatpush1.msra.mxu0 0.0
    %505 = vmatprep.subr.mxu0 0.0
    %506 = vmatpush1.msra.mxu0 0.0
    %507 = vmatprep.subr.mxu0 0.0
    %508 = vmatpush1.msra.mxu0 0.0
    %509 = vmatprep.subr.mxu0 0.0
    %510 = vmatpush1.msra.mxu0 0.0
    %511 = vmatprep.subr.mxu0 0.0
    %512 = vmatpush1.msra.mxu0 0.0
    %513 = vmatprep.subr.mxu0 0.0
    %514 = vmatpush1.msra.mxu0 0.0
    %515 = vmatprep.subr.mxu0 0.0
    %516 = vmatpush1.msra.mxu0 0.0
    %517 = vmatprep.subr.mxu0 0.0
    %518 = vmatpush1.msra.mxu0 0.0
    %519 = vmatprep.subr.mxu0 0.0
    %520 = vmatpush1.msra.mxu0 0.0
    %521 = vmatprep.subr.mxu0 0.0
    %522 = vmatpush1.msra.mxu0 0.0
    %523 = vmatprep.subr.mxu0 0.0
    %524 = vmatpush1.msra.mxu0 0.0
    %525 = vmatprep.subr.mxu0 0.0
    %526 = vmatpush1.msra.mxu0 0.0
    %527 = vmatprep.subr.mxu0 0.0
    %528 = vmatpush1.msra.mxu0 0.0
    %529 = vmatprep.subr.mxu0 0.0
    %530 = vmatpush1.msra.mxu0 0.0
    %531 = vmatprep.subr.mxu0 0.0
    %532 = vmatpush1.msra.mxu0 0.0
    %533 = vmatprep.subr.mxu0 0.0
    %534 = vmatpush1.msra.mxu0 0.0
    %535 = vmatprep.mubr.f32.mxu0 0.0
    %536 = vmatmul.mubr.f32.gmra.mrb[0].mxu0 0.0
    %v537 = vpop.f32.mrb[0].mxu0
    %v538 = vadd.f32 0.0, %v537
    %v539 = vpop.f32.mrb[0].mxu0
    %v540 = vadd.f32 0.0, %v539
    %541 = vdwg.mxu0
    %v542 = vadd.f32 %v396, %v467
    %v543 = vadd.f32 %v397, %v469
    %v544 = vadd.f32 %v398, %v538
    %v545 = vadd.f32 %v399, %v540
    %v546 = vxor.u32 %v542, 2147483648
    %v547 = vmul.f32 %v546, 1.442695
    %v548 = vpow.pop %v547
    %v549 = vadd.f32 %v548, 1.0
    %v550 = vrcp.pop %v549
    %v551 = vmul.f32 1.0, %v550
    %v552 = vxor.u32 %v543, 2147483648
    %v553 = vmul.f32 %v552, 1.442695
    %v554 = vpow.pop %v553
    %v555 = vadd.f32 %v554, 1.0
    %v556 = vrcp.pop %v555
    %v557 = vmul.f32 1.0, %v556
    %v558 = vtanh.pop %v544
    %v559 = vxor.u32 %v545, 2147483648
    %v560 = vmul.f32 %v559, 1.442695
    %v561 = vpow.pop %v560
    %v562 = vadd.f32 %v561, 1.0
    %v563 = vrcp.pop %v562
    %v564 = vmul.f32 1.0, %v563
    %v565 = vmul.f32 %v557, 0.0
    %v566 = vmul.f32 %v551, %v558
    %v567 = vadd.f32 %v565, %v566
    %v568 = vtanh.pop %v567
    %v569 = vmul.f32 %v564, %v568
    %570 = vst [vmem:[#allocation3] sm:$0x3] %v569
    %v571 = vld [vmem:[#allocation2] sm:$0xc]
    %v572 = vld [vmem:[#allocation2 + $0x8] sm:$0xc]
    %v573 = vld [vmem:[#allocation2 + $0x10] sm:$0xc]
    %v574 = vld [vmem:[#allocation2 + $0x18] sm:$0xc]
    %575 = vmatprep.subr.mxu0 %v72
    %576 = vmatpush1.msra.mxu0 %v71
    %577 = vmatprep.subr.mxu0 %v76
    %578 = vmatpush1.msra.mxu0 %v75
    %579 = vmatprep.subr.mxu0 %v80
    %580 = vmatpush1.msra.mxu0 %v79
    %581 = vmatprep.subr.mxu0 %v84
    %582 = vmatpush1.msra.mxu0 %v83
    %583 = vmatprep.subr.mxu0 %v88
    %584 = vmatpush1.msra.mxu0 %v87
    %585 = vmatprep.subr.mxu0 %v92
    %586 = vmatpush1.msra.mxu0 %v91
    %587 = vmatprep.subr.mxu0 %v96
    %588 = vmatpush1.msra.mxu0 %v95
    %589 = vmatprep.subr.mxu0 %v100
    %590 = vmatpush1.msra.mxu0 %v99
    %591 = vmatprep.subr.mxu0 %v104
    %592 = vmatpush1.msra.mxu0 %v103
    %593 = vmatprep.subr.mxu0 %v108
    %594 = vmatpush1.msra.mxu0 %v107
    %595 = vmatprep.subr.mxu0 %v112
    %596 = vmatpush1.msra.mxu0 %v111
    %597 = vmatprep.subr.mxu0 %v116
    %598 = vmatpush1.msra.mxu0 %v115
    %599 = vmatprep.subr.mxu0 %v120
    %600 = vmatpush1.msra.mxu0 %v119
    %601 = vmatprep.subr.mxu0 %v124
    %602 = vmatpush1.msra.mxu0 %v123
    %603 = vmatprep.subr.mxu0 %v128
    %604 = vmatpush1.msra.mxu0 %v127
    %605 = vmatprep.subr.mxu0 %v132
    %606 = vmatpush1.msra.mxu0 %v131
    %607 = vmatprep.subr.mxu0 0.0
    %608 = vmatpush1.msra.mxu0 0.0
    %609 = vmatprep.subr.mxu0 0.0
    %610 = vmatpush1.msra.mxu0 0.0
    %611 = vmatprep.subr.mxu0 0.0
    %612 = vmatpush1.msra.mxu0 0.0
    %613 = vmatprep.subr.mxu0 0.0
    %614 = vmatpush1.msra.mxu0 0.0
    %615 = vmatprep.subr.mxu0 0.0
    %616 = vmatpush1.msra.mxu0 0.0
    %617 = vmatprep.subr.mxu0 0.0
    %618 = vmatpush1.msra.mxu0 0.0
    %619 = vmatprep.subr.mxu0 0.0
    %620 = vmatpush1.msra.mxu0 0.0
    %621 = vmatprep.subr.mxu0 0.0
    %622 = vmatpush1.msra.mxu0 0.0
    %623 = vmatprep.subr.mxu0 0.0
    %624 = vmatpush1.msra.mxu0 0.0
    %625 = vmatprep.subr.mxu0 0.0
    %626 = vmatpush1.msra.mxu0 0.0
    %627 = vmatprep.subr.mxu0 0.0
    %628 = vmatpush1.msra.mxu0 0.0
    %629 = vmatprep.subr.mxu0 0.0
    %630 = vmatpush1.msra.mxu0 0.0
    %631 = vmatprep.subr.mxu0 0.0
    %632 = vmatpush1.msra.mxu0 0.0
    %633 = vmatprep.subr.mxu0 0.0
    %634 = vmatpush1.msra.mxu0 0.0
    %635 = vmatprep.subr.mxu0 0.0
    %636 = vmatpush1.msra.mxu0 0.0
    %637 = vmatprep.subr.mxu0 0.0
    %638 = vmatpush1.msra.mxu0 0.0
    %639 = vmatprep.mubr.f32.mxu0 0.0
    %640 = vmatmul.mubr.f32.gmra.mrb[0].mxu0 %v569
    %v641 = vpop.f32.mrb[0].mxu0
    %v642 = vadd.f32 0.0, %v641
    %v643 = vpop.f32.mrb[0].mxu0
    %v644 = vadd.f32 0.0, %v643
    %645 = vdwg.mxu0
    %646 = vmatprep.subr.mxu0 %v74
    %647 = vmatpush1.msra.mxu0 %v73
    %648 = vmatprep.subr.mxu0 %v78
    %649 = vmatpush1.msra.mxu0 %v77
    %650 = vmatprep.subr.mxu0 %v82
    %651 = vmatpush1.msra.mxu0 %v81
    %652 = vmatprep.subr.mxu0 %v86
    %653 = vmatpush1.msra.mxu0 %v85
    %654 = vmatprep.subr.mxu0 %v90
    %655 = vmatpush1.msra.mxu0 %v89
    %656 = vmatprep.subr.mxu0 %v94
    %657 = vmatpush1.msra.mxu0 %v93
    %658 = vmatprep.subr.mxu0 %v98
    %659 = vmatpush1.msra.mxu0 %v97
    %660 = vmatprep.subr.mxu0 %v102
    %661 = vmatpush1.msra.mxu0 %v101
    %662 = vmatprep.subr.mxu0 %v106
    %663 = vmatpush1.msra.mxu0 %v105
    %664 = vmatprep.subr.mxu0 %v110
    %665 = vmatpush1.msra.mxu0 %v109
    %666 = vmatprep.subr.mxu0 %v114
    %667 = vmatpush1.msra.mxu0 %v113
    %668 = vmatprep.subr.mxu0 %v118
    %669 = vmatpush1.msra.mxu0 %v117
    %670 = vmatprep.subr.mxu0 %v122
    %671 = vmatpush1.msra.mxu0 %v121
    %672 = vmatprep.subr.mxu0 %v126
    %673 = vmatpush1.msra.mxu0 %v125
    %674 = vmatprep.subr.mxu0 %v130
    %675 = vmatpush1.msra.mxu0 %v129
    %676 = vmatprep.subr.mxu0 %v134
    %677 = vmatpush1.msra.mxu0 %v133
    %678 = vmatprep.subr.mxu0 0.0
    %679 = vmatpush1.msra.mxu0 0.0
    %680 = vmatprep.subr.mxu0 0.0
    %681 = vmatpush1.msra.mxu0 0.0
    %682 = vmatprep.subr.mxu0 0.0
    %683 = vmatpush1.msra.mxu0 0.0
    %684 = vmatprep.subr.mxu0 0.0
    %685 = vmatpush1.msra.mxu0 0.0
    %686 = vmatprep.subr.mxu0 0.0
    %687 = vmatpush1.msra.mxu0 0.0
    %688 = vmatprep.subr.mxu0 0.0
    %689 = vmatpush1.msra.mxu0 0.0
    %690 = vmatprep.subr.mxu0 0.0
    %691 = vmatpush1.msra.mxu0 0.0
    %692 = vmatprep.subr.mxu0 0.0
    %693 = vmatpush1.msra.mxu0 0.0
    %694 = vmatprep.subr.mxu0 0.0
    %695 = vmatpush1.msra.mxu0 0.0
    %696 = vmatprep.subr.mxu0 0.0
    %697 = vmatpush1.msra.mxu0 0.0
    %698 = vmatprep.subr.mxu0 0.0
    %699 = vmatpush1.msra.mxu0 0.0
    %700 = vmatprep.subr.mxu0 0.0
    %701 = vmatpush1.msra.mxu0 0.0
    %702 = vmatprep.subr.mxu0 0.0
    %703 = vmatpush1.msra.mxu0 0.0
    %704 = vmatprep.subr.mxu0 0.0
    %705 = vmatpush1.msra.mxu0 0.0
    %706 = vmatprep.subr.mxu0 0.0
    %707 = vmatpush1.msra.mxu0 0.0
    %708 = vmatprep.subr.mxu0 0.0
    %709 = vmatpush1.msra.mxu0 0.0
    %710 = vmatprep.mubr.f32.mxu0 0.0
    %711 = vmatmul.mubr.f32.gmra.mrb[0].mxu0 %v569
    %v712 = vpop.f32.mrb[0].mxu0
    %v713 = vadd.f32 0.0, %v712
    %v714 = vpop.f32.mrb[0].mxu0
    %v715 = vadd.f32 0.0, %v714
    %716 = vdwg.mxu0
    %v721 = vrot.slane %v642, 6
    %v722 = vrot.slane %v644, 6
    %v723 = vrot.slane %v713, 6
    %v724 = vrot.slane %v715, 6
    %v729 = vadd.f32 %v571, %v721
    %v730 = vadd.f32 %v572, %v722
    %v731 = vadd.f32 %v573, %v723
    %v732 = vadd.f32 %v574, %v724
    %v733 = vxor.u32 %v729, 2147483648
    %v734 = vmul.f32 %v733, 1.442695
    %v735 = vpow.pop %v734
    %v736 = vadd.f32 %v735, 1.0
    %v737 = vrcp.pop %v736
    %v738 = vmul.f32 1.0, %v737
    %v739 = vxor.u32 %v730, 2147483648
    %v740 = vmul.f32 %v739, 1.442695
    %v741 = vpow.pop %v740
    %v742 = vadd.f32 %v741, 1.0
    %v743 = vrcp.pop %v742
    %v744 = vmul.f32 1.0, %v743
    %v745 = vtanh.pop %v731
    %v746 = vxor.u32 %v732, 2147483648
    %v747 = vmul.f32 %v746, 1.442695
    %v748 = vpow.pop %v747
    %v749 = vadd.f32 %v748, 1.0
    %v750 = vrcp.pop %v749
    %v751 = vmul.f32 1.0, %v750
    %v753 = vrot.slane %v567, 6
    %v755 = vmul.f32 %v744, %v753
    %v756 = vmul.f32 %v738, %v745
    %v757 = vadd.f32 %v755, %v756
    %v758 = vtanh.pop %v757
    %v759 = vmul.f32 %v751, %v758
    %760 = vst [vmem:[#allocation3] sm:$0xc] %v759
    %v761 = vld [vmem:[#allocation2] sm:$0x30]
    %v762 = vld [vmem:[#allocation2 + $0x8] sm:$0x30]
    %v763 = vld [vmem:[#allocation2 + $0x10] sm:$0x30]
    %v764 = vld [vmem:[#allocation2 + $0x18] sm:$0x30]
    %v766 = vrot.slane %v759, 2
    %768 = vmatprep.subr.mxu0 %v72
    %769 = vmatpush1.msra.mxu0 %v71
    %770 = vmatprep.subr.mxu0 %v76
    %771 = vmatpush1.msra.mxu0 %v75
    %772 = vmatprep.subr.mxu0 %v80
    %773 = vmatpush1.msra.mxu0 %v79
    %774 = vmatprep.subr.mxu0 %v84
    %775 = vmatpush1.msra.mxu0 %v83
    %776 = vmatprep.subr.mxu0 %v88
    %777 = vmatpush1.msra.mxu0 %v87
    %778 = vmatprep.subr.mxu0 %v92
    %779 = vmatpush1.msra.mxu0 %v91
    %780 = vmatprep.subr.mxu0 %v96
    %781 = vmatpush1.msra.mxu0 %v95
    %782 = vmatprep.subr.mxu0 %v100
    %783 = vmatpush1.msra.mxu0 %v99
    %784 = vmatprep.subr.mxu0 %v104
    %785 = vmatpush1.msra.mxu0 %v103
    %786 = vmatprep.subr.mxu0 %v108
    %787 = vmatpush1.msra.mxu0 %v107
    %788 = vmatprep.subr.mxu0 %v112
    %789 = vmatpush1.msra.mxu0 %v111
    %790 = vmatprep.subr.mxu0 %v116
    %791 = vmatpush1.msra.mxu0 %v115
    %792 = vmatprep.subr.mxu0 %v120
    %793 = vmatpush1.msra.mxu0 %v119
    %794 = vmatprep.subr.mxu0 %v124
    %795 = vmatpush1.msra.mxu0 %v123
    %796 = vmatprep.subr.mxu0 %v128
    %797 = vmatpush1.msra.mxu0 %v127
    %798 = vmatprep.subr.mxu0 %v132
    %799 = vmatpush1.msra.mxu0 %v131
    %800 = vmatprep.subr.mxu0 0.0
    %801 = vmatpush1.msra.mxu0 0.0
    %802 = vmatprep.subr.mxu0 0.0
    %803 = vmatpush1.msra.mxu0 0.0
    %804 = vmatprep.subr.mxu0 0.0
    %805 = vmatpush1.msra.mxu0 0.0
    %806 = vmatprep.subr.mxu0 0.0
    %807 = vmatpush1.msra.mxu0 0.0
    %808 = vmatprep.subr.mxu0 0.0
    %809 = vmatpush1.msra.mxu0 0.0
    %810 = vmatprep.subr.mxu0 0.0
    %811 = vmatpush1.msra.mxu0 0.0
    %812 = vmatprep.subr.mxu0 0.0
    %813 = vmatpush1.msra.mxu0 0.0
    %814 = vmatprep.subr.mxu0 0.0
    %815 = vmatpush1.msra.mxu0 0.0
    %816 = vmatprep.subr.mxu0 0.0
    %817 = vmatpush1.msra.mxu0 0.0
    %818 = vmatprep.subr.mxu0 0.0
    %819 = vmatpush1.msra.mxu0 0.0
    %820 = vmatprep.subr.mxu0 0.0
    %821 = vmatpush1.msra.mxu0 0.0
    %822 = vmatprep.subr.mxu0 0.0
    %823 = vmatpush1.msra.mxu0 0.0
    %824 = vmatprep.subr.mxu0 0.0
    %825 = vmatpush1.msra.mxu0 0.0
    %826 = vmatprep.subr.mxu0 0.0
    %827 = vmatpush1.msra.mxu0 0.0
    %828 = vmatprep.subr.mxu0 0.0
    %829 = vmatpush1.msra.mxu0 0.0
    %830 = vmatprep.subr.mxu0 0.0
    %831 = vmatpush1.msra.mxu0 0.0
    %832 = vmatprep.mubr.f32.mxu0 0.0
    %833 = vmatmul.mubr.f32.gmra.mrb[0].mxu0 %v766
    %v834 = vpop.f32.mrb[0].mxu0
    %v835 = vadd.f32 0.0, %v834
    %v836 = vpop.f32.mrb[0].mxu0
    %v837 = vadd.f32 0.0, %v836
    %838 = vdwg.mxu0
    %839 = vmatprep.subr.mxu0 %v74
    %840 = vmatpush1.msra.mxu0 %v73
    %841 = vmatprep.subr.mxu0 %v78
    %842 = vmatpush1.msra.mxu0 %v77
    %843 = vmatprep.subr.mxu0 %v82
    %844 = vmatpush1.msra.mxu0 %v81
    %845 = vmatprep.subr.mxu0 %v86
    %846 = vmatpush1.msra.mxu0 %v85
    %847 = vmatprep.subr.mxu0 %v90
    %848 = vmatpush1.msra.mxu0 %v89
    %849 = vmatprep.subr.mxu0 %v94
    %850 = vmatpush1.msra.mxu0 %v93
    %851 = vmatprep.subr.mxu0 %v98
    %852 = vmatpush1.msra.mxu0 %v97
    %853 = vmatprep.subr.mxu0 %v102
    %854 = vmatpush1.msra.mxu0 %v101
    %855 = vmatprep.subr.mxu0 %v106
    %856 = vmatpush1.msra.mxu0 %v105
    %857 = vmatprep.subr.mxu0 %v110
    %858 = vmatpush1.msra.mxu0 %v109
    %859 = vmatprep.subr.mxu0 %v114
    %860 = vmatpush1.msra.mxu0 %v113
    %861 = vmatprep.subr.mxu0 %v118
    %862 = vmatpush1.msra.mxu0 %v117
    %863 = vmatprep.subr.mxu0 %v122
    %864 = vmatpush1.msra.mxu0 %v121
    %865 = vmatprep.subr.mxu0 %v126
    %866 = vmatpush1.msra.mxu0 %v125
    %867 = vmatprep.subr.mxu0 %v130
    %868 = vmatpush1.msra.mxu0 %v129
    %869 = vmatprep.subr.mxu0 %v134
    %870 = vmatpush1.msra.mxu0 %v133
    %871 = vmatprep.subr.mxu0 0.0
    %872 = vmatpush1.msra.mxu0 0.0
    %873 = vmatprep.subr.mxu0 0.0
    %874 = vmatpush1.msra.mxu0 0.0
    %875 = vmatprep.subr.mxu0 0.0
    %876 = vmatpush1.msra.mxu0 0.0
    %877 = vmatprep.subr.mxu0 0.0
    %878 = vmatpush1.msra.mxu0 0.0
    %879 = vmatprep.subr.mxu0 0.0
    %880 = vmatpush1.msra.mxu0 0.0
    %881 = vmatprep.subr.mxu0 0.0
    %882 = vmatpush1.msra.mxu0 0.0
    %883 = vmatprep.subr.mxu0 0.0
    %884 = vmatpush1.msra.mxu0 0.0
    %885 = vmatprep.subr.mxu0 0.0
    %886 = vmatpush1.msra.mxu0 0.0
    %887 = vmatprep.subr.mxu0 0.0
    %888 = vmatpush1.msra.mxu0 0.0
    %889 = vmatprep.subr.mxu0 0.0
    %890 = vmatpush1.msra.mxu0 0.0
    %891 = vmatprep.subr.mxu0 0.0
    %892 = vmatpush1.msra.mxu0 0.0
    %893 = vmatprep.subr.mxu0 0.0
    %894 = vmatpush1.msra.mxu0 0.0
    %895 = vmatprep.subr.mxu0 0.0
    %896 = vmatpush1.msra.mxu0 0.0
    %897 = vmatprep.subr.mxu0 0.0
    %898 = vmatpush1.msra.mxu0 0.0
    %899 = vmatprep.subr.mxu0 0.0
    %900 = vmatpush1.msra.mxu0 0.0
    %901 = vmatprep.subr.mxu0 0.0
    %902 = vmatpush1.msra.mxu0 0.0
    %903 = vmatprep.mubr.f32.mxu0 0.0
    %904 = vmatmul.mubr.f32.gmra.mrb[0].mxu0 %v766
    %v905 = vpop.f32.mrb[0].mxu0
    %v906 = vadd.f32 0.0, %v905
    %v907 = vpop.f32.mrb[0].mxu0
    %v908 = vadd.f32 0.0, %v907
    %909 = vdwg.mxu0
    %v914 = vrot.slane %v835, 4
    %v915 = vrot.slane %v837, 4
    %v916 = vrot.slane %v906, 4
    %v917 = vrot.slane %v908, 4
    %v922 = vadd.f32 %v761, %v914
    %v923 = vadd.f32 %v762, %v915
    %v924 = vadd.f32 %v763, %v916
    %v925 = vadd.f32 %v764, %v917
    %v926 = vxor.u32 %v922, 2147483648
    %v927 = vmul.f32 %v926, 1.442695
    %v928 = vpow.pop %v927
    %v929 = vadd.f32 %v928, 1.0
    %v930 = vrcp.pop %v929
    %v931 = vmul.f32 1.0, %v930
    %v932 = vxor.u32 %v923, 2147483648
    %v933 = vmul.f32 %v932, 1.442695
    %v934 = vpow.pop %v933
    %v935 = vadd.f32 %v934, 1.0
    %v936 = vrcp.pop %v935
    %v937 = vmul.f32 1.0, %v936
    %v938 = vtanh.pop %v924
    %v939 = vxor.u32 %v925, 2147483648
    %v940 = vmul.f32 %v939, 1.442695
    %v941 = vpow.pop %v940
    %v942 = vadd.f32 %v941, 1.0
    %v943 = vrcp.pop %v942
    %v944 = vmul.f32 1.0, %v943
    %v946 = vrot.slane %v757, 6
    %v948 = vmul.f32 %v937, %v946
    %v949 = vmul.f32 %v931, %v938
    %v950 = vadd.f32 %v948, %v949
    %v951 = vtanh.pop %v950
    %v952 = vmul.f32 %v944, %v951
    %953 = vst [vmem:[#allocation3] sm:$0x30] %v952
    %v954 = vld [vmem:[#allocation2] sm:$0xc0]
    %v955 = vld [vmem:[#allocation2 + $0x8] sm:$0xc0]
    %v956 = vld [vmem:[#allocation2 + $0x10] sm:$0xc0]
    %v957 = vld [vmem:[#allocation2 + $0x18] sm:$0xc0]
    %v959 = vrot.slane %v952, 4
    %961 = vmatprep.subr.mxu0 %v72
    %962 = vmatpush1.msra.mxu0 %v71
    %963 = vmatprep.subr.mxu0 %v76
    %964 = vmatpush1.msra.mxu0 %v75
    %965 = vmatprep.subr.mxu0 %v80
    %966 = vmatpush1.msra.mxu0 %v79
    %967 = vmatprep.subr.mxu0 %v84
    %968 = vmatpush1.msra.mxu0 %v83
    %969 = vmatprep.subr.mxu0 %v88
    %970 = vmatpush1.msra.mxu0 %v87
    %971 = vmatprep.subr.mxu0 %v92
    %972 = vmatpush1.msra.mxu0 %v91
    %973 = vmatprep.subr.mxu0 %v96
    %974 = vmatpush1.msra.mxu0 %v95
    %975 = vmatprep.subr.mxu0 %v100
    %976 = vmatpush1.msra.mxu0 %v99
    %977 = vmatprep.subr.mxu0 %v104
    %978 = vmatpush1.msra.mxu0 %v103
    %979 = vmatprep.subr.mxu0 %v108
    %980 = vmatpush1.msra.mxu0 %v107
    %981 = vmatprep.subr.mxu0 %v112
    %982 = vmatpush1.msra.mxu0 %v111
    %983 = vmatprep.subr.mxu0 %v116
    %984 = vmatpush1.msra.mxu0 %v115
    %985 = vmatprep.subr.mxu0 %v120
    %986 = vmatpush1.msra.mxu0 %v119
    %987 = vmatprep.subr.mxu0 %v124
    %988 = vmatpush1.msra.mxu0 %v123
    %989 = vmatprep.subr.mxu0 %v128
    %990 = vmatpush1.msra.mxu0 %v127
    %991 = vmatprep.subr.mxu0 %v132
    %992 = vmatpush1.msra.mxu0 %v131
    %993 = vmatprep.subr.mxu0 0.0
    %994 = vmatpush1.msra.mxu0 0.0
    %995 = vmatprep.subr.mxu0 0.0
    %996 = vmatpush1.msra.mxu0 0.0
    %997 = vmatprep.subr.mxu0 0.0
    %998 = vmatpush1.msra.mxu0 0.0
    %999 = vmatprep.subr.mxu0 0.0
    %1000 = vmatpush1.msra.mxu0 0.0
    %1001 = vmatprep.subr.mxu0 0.0
    %1002 = vmatpush1.msra.mxu0 0.0
    %1003 = vmatprep.subr.mxu0 0.0
    %1004 = vmatpush1.msra.mxu0 0.0
    %1005 = vmatprep.subr.mxu0 0.0
    %1006 = vmatpush1.msra.mxu0 0.0
    %1007 = vmatprep.subr.mxu0 0.0
    %1008 = vmatpush1.msra.mxu0 0.0
    %1009 = vmatprep.subr.mxu0 0.0
    %1010 = vmatpush1.msra.mxu0 0.0
    %1011 = vmatprep.subr.mxu0 0.0
    %1012 = vmatpush1.msra.mxu0 0.0
    %1013 = vmatprep.subr.mxu0 0.0
    %1014 = vmatpush1.msra.mxu0 0.0
    %1015 = vmatprep.subr.mxu0 0.0
    %1016 = vmatpush1.msra.mxu0 0.0
    %1017 = vmatprep.subr.mxu0 0.0
    %1018 = vmatpush1.msra.mxu0 0.0
    %1019 = vmatprep.subr.mxu0 0.0
    %1020 = vmatpush1.msra.mxu0 0.0
    %1021 = vmatprep.subr.mxu0 0.0
    %1022 = vmatpush1.msra.mxu0 0.0
    %1023 = vmatprep.subr.mxu0 0.0
    %1024 = vmatpush1.msra.mxu0 0.0
    %1025 = vmatprep.mubr.f32.mxu0 0.0
    %1026 = vmatmul.mubr.f32.gmra.mrb[0].mxu0 %v959
    %v1027 = vpop.f32.mrb[0].mxu0
    %v1028 = vadd.f32 0.0, %v1027
    %v1029 = vpop.f32.mrb[0].mxu0
    %v1030 = vadd.f32 0.0, %v1029
    %1031 = vdwg.mxu0
    %1032 = vmatprep.subr.mxu0 %v74
    %1033 = vmatpush1.msra.mxu0 %v73
    %1034 = vmatprep.subr.mxu0 %v78
    %1035 = vmatpush1.msra.mxu0 %v77
    %1036 = vmatprep.subr.mxu0 %v82
    %1037 = vmatpush1.msra.mxu0 %v81
    %1038 = vmatprep.subr.mxu0 %v86
    %1039 = vmatpush1.msra.mxu0 %v85
    %1040 = vmatprep.subr.mxu0 %v90
    %1041 = vmatpush1.msra.mxu0 %v89
    %1042 = vmatprep.subr.mxu0 %v94
    %1043 = vmatpush1.msra.mxu0 %v93
    %1044 = vmatprep.subr.mxu0 %v98
    %1045 = vmatpush1.msra.mxu0 %v97
    %1046 = vmatprep.subr.mxu0 %v102
    %1047 = vmatpush1.msra.mxu0 %v101
    %1048 = vmatprep.subr.mxu0 %v106
    %1049 = vmatpush1.msra.mxu0 %v105
    %1050 = vmatprep.subr.mxu0 %v110
    %1051 = vmatpush1.msra.mxu0 %v109
    %1052 = vmatprep.subr.mxu0 %v114
    %1053 = vmatpush1.msra.mxu0 %v113
    %1054 = vmatprep.subr.mxu0 %v118
    %1055 = vmatpush1.msra.mxu0 %v117
    %1056 = vmatprep.subr.mxu0 %v122
    %1057 = vmatpush1.msra.mxu0 %v121
    %1058 = vmatprep.subr.mxu0 %v126
    %1059 = vmatpush1.msra.mxu0 %v125
    %1060 = vmatprep.subr.mxu0 %v130
    %1061 = vmatpush1.msra.mxu0 %v129
    %1062 = vmatprep.subr.mxu0 %v134
    %1063 = vmatpush1.msra.mxu0 %v133
    %1064 = vmatprep.subr.mxu0 0.0
    %1065 = vmatpush1.msra.mxu0 0.0
    %1066 = vmatprep.subr.mxu0 0.0
    %1067 = vmatpush1.msra.mxu0 0.0
    %1068 = vmatprep.subr.mxu0 0.0
    %1069 = vmatpush1.msra.mxu0 0.0
    %1070 = vmatprep.subr.mxu0 0.0
    %1071 = vmatpush1.msra.mxu0 0.0
    %1072 = vmatprep.subr.mxu0 0.0
    %1073 = vmatpush1.msra.mxu0 0.0
    %1074 = vmatprep.subr.mxu0 0.0
    %1075 = vmatpush1.msra.mxu0 0.0
    %1076 = vmatprep.subr.mxu0 0.0
    %1077 = vmatpush1.msra.mxu0 0.0
    %1078 = vmatprep.subr.mxu0 0.0
    %1079 = vmatpush1.msra.mxu0 0.0
    %1080 = vmatprep.subr.mxu0 0.0
    %1081 = vmatpush1.msra.mxu0 0.0
    %1082 = vmatprep.subr.mxu0 0.0
    %1083 = vmatpush1.msra.mxu0 0.0
    %1084 = vmatprep.subr.mxu0 0.0
    %1085 = vmatpush1.msra.mxu0 0.0
    %1086 = vmatprep.subr.mxu0 0.0
    %1087 = vmatpush1.msra.mxu0 0.0
    %1088 = vmatprep.subr.mxu0 0.0
    %1089 = vmatpush1.msra.mxu0 0.0
    %1090 = vmatprep.subr.mxu0 0.0
    %1091 = vmatpush1.msra.mxu0 0.0
    %1092 = vmatprep.subr.mxu0 0.0
    %1093 = vmatpush1.msra.mxu0 0.0
    %1094 = vmatprep.subr.mxu0 0.0
    %1095 = vmatpush1.msra.mxu0 0.0
    %1096 = vmatprep.mubr.f32.mxu0 0.0
    %1097 = vmatmul.mubr.f32.gmra.mrb[0].mxu0 %v959
    %v1098 = vpop.f32.mrb[0].mxu0
    %v1099 = vadd.f32 0.0, %v1098
    %v1100 = vpop.f32.mrb[0].mxu0
    %v1101 = vadd.f32 0.0, %v1100
    %1102 = vdwg.mxu0
    %v1107 = vrot.slane %v1028, 2
    %v1108 = vrot.slane %v1030, 2
    %v1109 = vrot.slane %v1099, 2
    %v1110 = vrot.slane %v1101, 2
    %v1115 = vadd.f32 %v954, %v1107
    %v1116 = vadd.f32 %v955, %v1108
    %v1117 = vadd.f32 %v956, %v1109
    %v1118 = vadd.f32 %v957, %v1110
    %v1119 = vxor.u32 %v1115, 2147483648
    %v1120 = vmul.f32 %v1119, 1.442695
    %v1121 = vpow.pop %v1120
    %v1122 = vadd.f32 %v1121, 1.0
    %v1123 = vrcp.pop %v1122
    %v1124 = vmul.f32 1.0, %v1123
    %v1125 = vxor.u32 %v1116, 2147483648
    %v1126 = vmul.f32 %v1125, 1.442695
    %v1127 = vpow.pop %v1126
    %v1128 = vadd.f32 %v1127, 1.0
    %v1129 = vrcp.pop %v1128
    %v1130 = vmul.f32 1.0, %v1129
    %v1131 = vtanh.pop %v1117
    %v1132 = vxor.u32 %v1118, 2147483648
    %v1133 = vmul.f32 %v1132, 1.442695
    %v1134 = vpow.pop %v1133
    %v1135 = vadd.f32 %v1134, 1.0
    %v1136 = vrcp.pop %v1135
    %v1137 = vmul.f32 1.0, %v1136
    %v1139 = vrot.slane %v950, 6
    %v1141 = vmul.f32 %v1130, %v1139
    %v1142 = vmul.f32 %v1124, %v1131
    %v1143 = vadd.f32 %v1141, %v1142
    %v1144 = vtanh.pop %v1143
    %v1145 = vmul.f32 %v1137, %v1144
    %1146 = vst [vmem:[#allocation3] sm:$0xc0] %v1145
    %v1147 = vld [vmem:[#allocation2 + $0x20] sm:$0x3]
    %v1148 = vld [vmem:[#allocation2 + $0x28] sm:$0x3]
    %v1149 = vld [vmem:[#allocation2 + $0x30] sm:$0x3]
    %v1150 = vld [vmem:[#allocation2 + $0x38] sm:$0x3]
    %v1152 = vrot.slane %v1145, 6
    %1154 = vmatprep.subr.mxu0 %v72
    %1155 = vmatpush1.msra.mxu0 %v71
    %1156 = vmatprep.subr.mxu0 %v76
    %1157 = vmatpush1.msra.mxu0 %v75
    %1158 = vmatprep.subr.mxu0 %v80
    %1159 = vmatpush1.msra.mxu0 %v79
    %1160 = vmatprep.subr.mxu0 %v84
    %1161 = vmatpush1.msra.mxu0 %v83
    %1162 = vmatprep.subr.mxu0 %v88
    %1163 = vmatpush1.msra.mxu0 %v87
    %1164 = vmatprep.subr.mxu0 %v92
    %1165 = vmatpush1.msra.mxu0 %v91
    %1166 = vmatprep.subr.mxu0 %v96
    %1167 = vmatpush1.msra.mxu0 %v95
    %1168 = vmatprep.subr.mxu0 %v100
    %1169 = vmatpush1.msra.mxu0 %v99
    %1170 = vmatprep.subr.mxu0 %v104
    %1171 = vmatpush1.msra.mxu0 %v103
    %1172 = vmatprep.subr.mxu0 %v108
    %1173 = vmatpush1.msra.mxu0 %v107
    %1174 = vmatprep.subr.mxu0 %v112
    %1175 = vmatpush1.msra.mxu0 %v111
    %1176 = vmatprep.subr.mxu0 %v116
    %1177 = vmatpush1.msra.mxu0 %v115
    %1178 = vmatprep.subr.mxu0 %v120
    %1179 = vmatpush1.msra.mxu0 %v119
    %1180 = vmatprep.subr.mxu0 %v124
    %1181 = vmatpush1.msra.mxu0 %v123
    %1182 = vmatprep.subr.mxu0 %v128
    %1183 = vmatpush1.msra.mxu0 %v127
    %1184 = vmatprep.subr.mxu0 %v132
    %1185 = vmatpush1.msra.mxu0 %v131
    %1186 = vmatprep.subr.mxu0 0.0
    %1187 = vmatpush1.msra.mxu0 0.0
    %1188 = vmatprep.subr.mxu0 0.0
    %1189 = vmatpush1.msra.mxu0 0.0
    %1190 = vmatprep.subr.mxu0 0.0
    %1191 = vmatpush1.msra.mxu0 0.0
    %1192 = vmatprep.subr.mxu0 0.0
    %1193 = vmatpush1.msra.mxu0 0.0
    %1194 = vmatprep.subr.mxu0 0.0
    %1195 = vmatpush1.msra.mxu0 0.0
    %1196 = vmatprep.subr.mxu0 0.0
    %1197 = vmatpush1.msra.mxu0 0.0
    %1198 = vmatprep.subr.mxu0 0.0
    %1199 = vmatpush1.msra.mxu0 0.0
    %1200 = vmatprep.subr.mxu0 0.0
    %1201 = vmatpush1.msra.mxu0 0.0
    %1202 = vmatprep.subr.mxu0 0.0
    %1203 = vmatpush1.msra.mxu0 0.0
    %1204 = vmatprep.subr.mxu0 0.0
    %1205 = vmatpush1.msra.mxu0 0.0
    %1206 = vmatprep.subr.mxu0 0.0
    %1207 = vmatpush1.msra.mxu0 0.0
    %1208 = vmatprep.subr.mxu0 0.0
    %1209 = vmatpush1.msra.mxu0 0.0
    %1210 = vmatprep.subr.mxu0 0.0
    %1211 = vmatpush1.msra.mxu0 0.0
    %1212 = vmatprep.subr.mxu0 0.0
    %1213 = vmatpush1.msra.mxu0 0.0
    %1214 = vmatprep.subr.mxu0 0.0
    %1215 = vmatpush1.msra.mxu0 0.0
    %1216 = vmatprep.subr.mxu0 0.0
    %1217 = vmatpush1.msra.mxu0 0.0
    %1218 = vmatprep.mubr.f32.mxu0 0.0
    %1219 = vmatmul.mubr.f32.gmra.mrb[0].mxu0 %v1152
    %v1220 = vpop.f32.mrb[0].mxu0
    %v1221 = vadd.f32 0.0, %v1220
    %v1222 = vpop.f32.mrb[0].mxu0
    %v1223 = vadd.f32 0.0, %v1222
    %1224 = vdwg.mxu0
    %1225 = vmatprep.subr.mxu0 %v74
    %1226 = vmatpush1.msra.mxu0 %v73
    %1227 = vmatprep.subr.mxu0 %v78
    %1228 = vmatpush1.msra.mxu0 %v77
    %1229 = vmatprep.subr.mxu0 %v82
    %1230 = vmatpush1.msra.mxu0 %v81
    %1231 = vmatprep.subr.mxu0 %v86
    %1232 = vmatpush1.msra.mxu0 %v85
    %1233 = vmatprep.subr.mxu0 %v90
    %1234 = vmatpush1.msra.mxu0 %v89
    %1235 = vmatprep.subr.mxu0 %v94
    %1236 = vmatpush1.msra.mxu0 %v93
    %1237 = vmatprep.subr.mxu0 %v98
    %1238 = vmatpush1.msra.mxu0 %v97
    %1239 = vmatprep.subr.mxu0 %v102
    %1240 = vmatpush1.msra.mxu0 %v101
    %1241 = vmatprep.subr.mxu0 %v106
    %1242 = vmatpush1.msra.mxu0 %v105
    %1243 = vmatprep.subr.mxu0 %v110
    %1244 = vmatpush1.msra.mxu0 %v109
    %1245 = vmatprep.subr.mxu0 %v114
    %1246 = vmatpush1.msra.mxu0 %v113
    %1247 = vmatprep.subr.mxu0 %v118
    %1248 = vmatpush1.msra.mxu0 %v117
    %1249 = vmatprep.subr.mxu0 %v122
    %1250 = vmatpush1.msra.mxu0 %v121
    %1251 = vmatprep.subr.mxu0 %v126
    %1252 = vmatpush1.msra.mxu0 %v125
    %1253 = vmatprep.subr.mxu0 %v130
    %1254 = vmatpush1.msra.mxu0 %v129
    %1255 = vmatprep.subr.mxu0 %v134
    %1256 = vmatpush1.msra.mxu0 %v133
    %1257 = vmatprep.subr.mxu0 0.0
    %1258 = vmatpush1.msra.mxu0 0.0
    %1259 = vmatprep.subr.mxu0 0.0
    %1260 = vmatpush1.msra.mxu0 0.0
    %1261 = vmatprep.subr.mxu0 0.0
    %1262 = vmatpush1.msra.mxu0 0.0
    %1263 = vmatprep.subr.mxu0 0.0
    %1264 = vmatpush1.msra.mxu0 0.0
    %1265 = vmatprep.subr.mxu0 0.0
    %1266 = vmatpush1.msra.mxu0 0.0
    %1267 = vmatprep.subr.mxu0 0.0
    %1268 = vmatpush1.msra.mxu0 0.0
    %1269 = vmatprep.subr.mxu0 0.0
    %1270 = vmatpush1.msra.mxu0 0.0
    %1271 = vmatprep.subr.mxu0 0.0
    %1272 = vmatpush1.msra.mxu0 0.0
    %1273 = vmatprep.subr.mxu0 0.0
    %1274 = vmatpush1.msra.mxu0 0.0
    %1275 = vmatprep.subr.mxu0 0.0
    %1276 = vmatpush1.msra.mxu0 0.0
    %1277 = vmatprep.subr.mxu0 0.0
    %1278 = vmatpush1.msra.mxu0 0.0
    %1279 = vmatprep.subr.mxu0 0.0
    %1280 = vmatpush1.msra.mxu0 0.0
    %1281 = vmatprep.subr.mxu0 0.0
    %1282 = vmatpush1.msra.mxu0 0.0
    %1283 = vmatprep.subr.mxu0 0.0
    %1284 = vmatpush1.msra.mxu0 0.0
    %1285 = vmatprep.subr.mxu0 0.0
    %1286 = vmatpush1.msra.mxu0 0.0
    %1287 = vmatprep.subr.mxu0 0.0
    %1288 = vmatpush1.msra.mxu0 0.0
    %1289 = vmatprep.mubr.f32.mxu0 0.0
    %1290 = vmatmul.mubr.f32.gmra.mrb[0].mxu0 %v1152
    %v1291 = vpop.f32.mrb[0].mxu0
    %v1292 = vadd.f32 0.0, %v1291
    %v1293 = vpop.f32.mrb[0].mxu0
    %v1294 = vadd.f32 0.0, %v1293
    %1295 = vdwg.mxu0
    %v1296 = vadd.f32 %v1147, %v1221
    %v1297 = vadd.f32 %v1148, %v1223
    %v1298 = vadd.f32 %v1149, %v1292
    %v1299 = vadd.f32 %v1150, %v1294
    %v1300 = vxor.u32 %v1296, 2147483648
    %v1301 = vmul.f32 %v1300, 1.442695
    %v1302 = vpow.pop %v1301
    %v1303 = vadd.f32 %v1302, 1.0
    %v1304 = vrcp.pop %v1303
    %v1305 = vmul.f32 1.0, %v1304
    %v1306 = vxor.u32 %v1297, 2147483648
    %v1307 = vmul.f32 %v1306, 1.442695
    %v1308 = vpow.pop %v1307
    %v1309 = vadd.f32 %v1308, 1.0
    %v1310 = vrcp.pop %v1309
    %v1311 = vmul.f32 1.0, %v1310
    %v1312 = vtanh.pop %v1298
    %v1313 = vxor.u32 %v1299, 2147483648
    %v1314 = vmul.f32 %v1313, 1.442695
    %v1315 = vpow.pop %v1314
    %v1316 = vadd.f32 %v1315, 1.0
    %v1317 = vrcp.pop %v1316
    %v1318 = vmul.f32 1.0, %v1317
    %v1320 = vrot.slane %v1143, 6
    %v1322 = vmul.f32 %v1311, %v1320
    %v1323 = vmul.f32 %v1305, %v1312
    %v1324 = vadd.f32 %v1322, %v1323
    %v1325 = vtanh.pop %v1324
    %v1326 = vmul.f32 %v1318, %v1325
    %1327 = vst [vmem:[#allocation3 + $0x8] sm:$0x3] %v1326
    %v1328 = vld [vmem:[#allocation2 + $0x20] sm:$0xc]
    %v1329 = vld [vmem:[#allocation2 + $0x28] sm:$0xc]
    %v1330 = vld [vmem:[#allocation2 + $0x30] sm:$0xc]
    %v1331 = vld [vmem:[#allocation2 + $0x38] sm:$0xc]
    %1332 = vmatprep.subr.mxu0 %v72
    %1333 = vmatpush1.msra.mxu0 %v71
    %1334 = vmatprep.subr.mxu0 %v76
    %1335 = vmatpush1.msra.mxu0 %v75
    %1336 = vmatprep.subr.mxu0 %v80
    %1337 = vmatpush1.msra.mxu0 %v79
    %1338 = vmatprep.subr.mxu0 %v84
    %1339 = vmatpush1.msra.mxu0 %v83
    %1340 = vmatprep.subr.mxu0 %v88
    %1341 = vmatpush1.msra.mxu0 %v87
    %1342 = vmatprep.subr.mxu0 %v92
    %1343 = vmatpush1.msra.mxu0 %v91
    %1344 = vmatprep.subr.mxu0 %v96
    %1345 = vmatpush1.msra.mxu0 %v95
    %1346 = vmatprep.subr.mxu0 %v100
    %1347 = vmatpush1.msra.mxu0 %v99
    %1348 = vmatprep.subr.mxu0 %v104
    %1349 = vmatpush1.msra.mxu0 %v103
    %1350 = vmatprep.subr.mxu0 %v108
    %1351 = vmatpush1.msra.mxu0 %v107
    %1352 = vmatprep.subr.mxu0 %v112
    %1353 = vmatpush1.msra.mxu0 %v111
    %1354 = vmatprep.subr.mxu0 %v116
    %1355 = vmatpush1.msra.mxu0 %v115
    %1356 = vmatprep.subr.mxu0 %v120
    %1357 = vmatpush1.msra.mxu0 %v119
    %1358 = vmatprep.subr.mxu0 %v124
    %1359 = vmatpush1.msra.mxu0 %v123
    %1360 = vmatprep.subr.mxu0 %v128
    %1361 = vmatpush1.msra.mxu0 %v127
    %1362 = vmatprep.subr.mxu0 %v132
    %1363 = vmatpush1.msra.mxu0 %v131
    %1364 = vmatprep.subr.mxu0 0.0
    %1365 = vmatpush1.msra.mxu0 0.0
    %1366 = vmatprep.subr.mxu0 0.0
    %1367 = vmatpush1.msra.mxu0 0.0
    %1368 = vmatprep.subr.mxu0 0.0
    %1369 = vmatpush1.msra.mxu0 0.0
    %1370 = vmatprep.subr.mxu0 0.0
    %1371 = vmatpush1.msra.mxu0 0.0
    %1372 = vmatprep.subr.mxu0 0.0
    %1373 = vmatpush1.msra.mxu0 0.0
    %1374 = vmatprep.subr.mxu0 0.0
    %1375 = vmatpush1.msra.mxu0 0.0
    %1376 = vmatprep.subr.mxu0 0.0
    %1377 = vmatpush1.msra.mxu0 0.0
    %1378 = vmatprep.subr.mxu0 0.0
    %1379 = vmatpush1.msra.mxu0 0.0
    %1380 = vmatprep.subr.mxu0 0.0
    %1381 = vmatpush1.msra.mxu0 0.0
    %1382 = vmatprep.subr.mxu0 0.0
    %1383 = vmatpush1.msra.mxu0 0.0
    %1384 = vmatprep.subr.mxu0 0.0
    %1385 = vmatpush1.msra.mxu0 0.0
    %1386 = vmatprep.subr.mxu0 0.0
    %1387 = vmatpush1.msra.mxu0 0.0
    %1388 = vmatprep.subr.mxu0 0.0
    %1389 = vmatpush1.msra.mxu0 0.0
    %1390 = vmatprep.subr.mxu0 0.0
    %1391 = vmatpush1.msra.mxu0 0.0
    %1392 = vmatprep.subr.mxu0 0.0
    %1393 = vmatpush1.msra.mxu0 0.0
    %1394 = vmatprep.subr.mxu0 0.0
    %1395 = vmatpush1.msra.mxu0 0.0
    %1396 = vmatprep.mubr.f32.mxu0 0.0
    %1397 = vmatmul.mubr.f32.gmra.mrb[0].mxu0 %v1326
    %v1398 = vpop.f32.mrb[0].mxu0
    %v1399 = vadd.f32 0.0, %v1398
    %v1400 = vpop.f32.mrb[0].mxu0
    %v1401 = vadd.f32 0.0, %v1400
    %1402 = vdwg.mxu0
    %1403 = vmatprep.subr.mxu0 %v74
    %1404 = vmatpush1.msra.mxu0 %v73
    %1405 = vmatprep.subr.mxu0 %v78
    %1406 = vmatpush1.msra.mxu0 %v77
    %1407 = vmatprep.subr.mxu0 %v82
    %1408 = vmatpush1.msra.mxu0 %v81
    %1409 = vmatprep.subr.mxu0 %v86
    %1410 = vmatpush1.msra.mxu0 %v85
    %1411 = vmatprep.subr.mxu0 %v90
    %1412 = vmatpush1.msra.mxu0 %v89
    %1413 = vmatprep.subr.mxu0 %v94
    %1414 = vmatpush1.msra.mxu0 %v93
    %1415 = vmatprep.subr.mxu0 %v98
    %1416 = vmatpush1.msra.mxu0 %v97
    %1417 = vmatprep.subr.mxu0 %v102
    %1418 = vmatpush1.msra.mxu0 %v101
    %1419 = vmatprep.subr.mxu0 %v106
    %1420 = vmatpush1.msra.mxu0 %v105
    %1421 = vmatprep.subr.mxu0 %v110
    %1422 = vmatpush1.msra.mxu0 %v109
    %1423 = vmatprep.subr.mxu0 %v114
    %1424 = vmatpush1.msra.mxu0 %v113
    %1425 = vmatprep.subr.mxu0 %v118
    %1426 = vmatpush1.msra.mxu0 %v117
    %1427 = vmatprep.subr.mxu0 %v122
    %1428 = vmatpush1.msra.mxu0 %v121
    %1429 = vmatprep.subr.mxu0 %v126
    %1430 = vmatpush1.msra.mxu0 %v125
    %1431 = vmatprep.subr.mxu0 %v130
    %1432 = vmatpush1.msra.mxu0 %v129
    %1433 = vmatprep.subr.mxu0 %v134
    %1434 = vmatpush1.msra.mxu0 %v133
    %1435 = vmatprep.subr.mxu0 0.0
    %1436 = vmatpush1.msra.mxu0 0.0
    %1437 = vmatprep.subr.mxu0 0.0
    %1438 = vmatpush1.msra.mxu0 0.0
    %1439 = vmatprep.subr.mxu0 0.0
    %1440 = vmatpush1.msra.mxu0 0.0
    %1441 = vmatprep.subr.mxu0 0.0
    %1442 = vmatpush1.msra.mxu0 0.0
    %1443 = vmatprep.subr.mxu0 0.0
    %1444 = vmatpush1.msra.mxu0 0.0
    %1445 = vmatprep.subr.mxu0 0.0
    %1446 = vmatpush1.msra.mxu0 0.0
    %1447 = vmatprep.subr.mxu0 0.0
    %1448 = vmatpush1.msra.mxu0 0.0
    %1449 = vmatprep.subr.mxu0 0.0
    %1450 = vmatpush1.msra.mxu0 0.0
    %1451 = vmatprep.subr.mxu0 0.0
    %1452 = vmatpush1.msra.mxu0 0.0
    %1453 = vmatprep.subr.mxu0 0.0
    %1454 = vmatpush1.msra.mxu0 0.0
    %1455 = vmatprep.subr.mxu0 0.0
    %1456 = vmatpush1.msra.mxu0 0.0
    %1457 = vmatprep.subr.mxu0 0.0
    %1458 = vmatpush1.msra.mxu0 0.0
    %1459 = vmatprep.subr.mxu0 0.0
    %1460 = vmatpush1.msra.mxu0 0.0
    %1461 = vmatprep.subr.mxu0 0.0
    %1462 = vmatpush1.msra.mxu0 0.0
    %1463 = vmatprep.subr.mxu0 0.0
    %1464 = vmatpush1.msra.mxu0 0.0
    %1465 = vmatprep.subr.mxu0 0.0
    %1466 = vmatpush1.msra.mxu0 0.0
    %1467 = vmatprep.mubr.f32.mxu0 0.0
    %1468 = vmatmul.mubr.f32.gmra.mrb[0].mxu0 %v1326
    %v1469 = vpop.f32.mrb[0].mxu0
    %v1470 = vadd.f32 0.0, %v1469
    %v1471 = vpop.f32.mrb[0].mxu0
    %v1472 = vadd.f32 0.0, %v1471
    %1473 = vdwg.mxu0
    %v1478 = vrot.slane %v1399, 6
    %v1479 = vrot.slane %v1401, 6
    %v1480 = vrot.slane %v1470, 6
    %v1481 = vrot.slane %v1472, 6
    %v1486 = vadd.f32 %v1328, %v1478
    %v1487 = vadd.f32 %v1329, %v1479
    %v1488 = vadd.f32 %v1330, %v1480
    %v1489 = vadd.f32 %v1331, %v1481
    %v1490 = vxor.u32 %v1486, 2147483648
    %v1491 = vmul.f32 %v1490, 1.442695
    %v1492 = vpow.pop %v1491
    %v1493 = vadd.f32 %v1492, 1.0
    %v1494 = vrcp.pop %v1493
    %v1495 = vmul.f32 1.0, %v1494
    %v1496 = vxor.u32 %v1487, 2147483648
    %v1497 = vmul.f32 %v1496, 1.442695
    %v1498 = vpow.pop %v1497
    %v1499 = vadd.f32 %v1498, 1.0
    %v1500 = vrcp.pop %v1499
    %v1501 = vmul.f32 1.0, %v1500
    %v1502 = vtanh.pop %v1488
    %v1503 = vxor.u32 %v1489, 2147483648
    %v1504 = vmul.f32 %v1503, 1.442695
    %v1505 = vpow.pop %v1504
    %v1506 = vadd.f32 %v1505, 1.0
    %v1507 = vrcp.pop %v1506
    %v1508 = vmul.f32 1.0, %v1507
    %v1510 = vrot.slane %v1324, 6
    %v1512 = vmul.f32 %v1501, %v1510
    %v1513 = vmul.f32 %v1495, %v1502
    %v1514 = vadd.f32 %v1512, %v1513
    %v1515 = vtanh.pop %v1514
    %v1516 = vmul.f32 %v1508, %v1515
    %1517 = vst [vmem:[#allocation3 + $0x8] sm:$0xc] %v1516
    %v1518 = vld [vmem:[#allocation2 + $0x20] sm:$0x30]
    %v1519 = vld [vmem:[#allocation2 + $0x28] sm:$0x30]
    %v1520 = vld [vmem:[#allocation2 + $0x30] sm:$0x30]
    %v1521 = vld [vmem:[#allocation2 + $0x38] sm:$0x30]
    %v1523 = vrot.slane %v1516, 2
    %1525 = vmatprep.subr.mxu0 %v72
    %1526 = vmatpush1.msra.mxu0 %v71
    %1527 = vmatprep.subr.mxu0 %v76
    %1528 = vmatpush1.msra.mxu0 %v75
    %1529 = vmatprep.subr.mxu0 %v80
    %1530 = vmatpush1.msra.mxu0 %v79
    %1531 = vmatprep.subr.mxu0 %v84
    %1532 = vmatpush1.msra.mxu0 %v83
    %1533 = vmatprep.subr.mxu0 %v88
    %1534 = vmatpush1.msra.mxu0 %v87
    %1535 = vmatprep.subr.mxu0 %v92
    %1536 = vmatpush1.msra.mxu0 %v91
    %1537 = vmatprep.subr.mxu0 %v96
    %1538 = vmatpush1.msra.mxu0 %v95
    %1539 = vmatprep.subr.mxu0 %v100
    %1540 = vmatpush1.msra.mxu0 %v99
    %1541 = vmatprep.subr.mxu0 %v104
    %1542 = vmatpush1.msra.mxu0 %v103
    %1543 = vmatprep.subr.mxu0 %v108
    %1544 = vmatpush1.msra.mxu0 %v107
    %1545 = vmatprep.subr.mxu0 %v112
    %1546 = vmatpush1.msra.mxu0 %v111
    %1547 = vmatprep.subr.mxu0 %v116
    %1548 = vmatpush1.msra.mxu0 %v115
    %1549 = vmatprep.subr.mxu0 %v120
    %1550 = vmatpush1.msra.mxu0 %v119
    %1551 = vmatprep.subr.mxu0 %v124
    %1552 = vmatpush1.msra.mxu0 %v123
    %1553 = vmatprep.subr.mxu0 %v128
    %1554 = vmatpush1.msra.mxu0 %v127
    %1555 = vmatprep.subr.mxu0 %v132
    %1556 = vmatpush1.msra.mxu0 %v131
    %1557 = vmatprep.subr.mxu0 0.0
    %1558 = vmatpush1.msra.mxu0 0.0
    %1559 = vmatprep.subr.mxu0 0.0
    %1560 = vmatpush1.msra.mxu0 0.0
    %1561 = vmatprep.subr.mxu0 0.0
    %1562 = vmatpush1.msra.mxu0 0.0
    %1563 = vmatprep.subr.mxu0 0.0
    %1564 = vmatpush1.msra.mxu0 0.0
    %1565 = vmatprep.subr.mxu0 0.0
    %1566 = vmatpush1.msra.mxu0 0.0
    %1567 = vmatprep.subr.mxu0 0.0
    %1568 = vmatpush1.msra.mxu0 0.0
    %1569 = vmatprep.subr.mxu0 0.0
    %1570 = vmatpush1.msra.mxu0 0.0
    %1571 = vmatprep.subr.mxu0 0.0
    %1572 = vmatpush1.msra.mxu0 0.0
    %1573 = vmatprep.subr.mxu0 0.0
    %1574 = vmatpush1.msra.mxu0 0.0
    %1575 = vmatprep.subr.mxu0 0.0
    %1576 = vmatpush1.msra.mxu0 0.0
    %1577 = vmatprep.subr.mxu0 0.0
    %1578 = vmatpush1.msra.mxu0 0.0
    %1579 = vmatprep.subr.mxu0 0.0
    %1580 = vmatpush1.msra.mxu0 0.0
    %1581 = vmatprep.subr.mxu0 0.0
    %1582 = vmatpush1.msra.mxu0 0.0
    %1583 = vmatprep.subr.mxu0 0.0
    %1584 = vmatpush1.msra.mxu0 0.0
    %1585 = vmatprep.subr.mxu0 0.0
    %1586 = vmatpush1.msra.mxu0 0.0
    %1587 = vmatprep.subr.mxu0 0.0
    %1588 = vmatpush1.msra.mxu0 0.0
    %1589 = vmatprep.mubr.f32.mxu0 0.0
    %1590 = vmatmul.mubr.f32.gmra.mrb[0].mxu0 %v1523
    %v1591 = vpop.f32.mrb[0].mxu0
    %v1592 = vadd.f32 0.0, %v1591
    %v1593 = vpop.f32.mrb[0].mxu0
    %v1594 = vadd.f32 0.0, %v1593
    %1595 = vdwg.mxu0
    %1596 = vmatprep.subr.mxu0 %v74
    %1597 = vmatpush1.msra.mxu0 %v73
    %1598 = vmatprep.subr.mxu0 %v78
    %1599 = vmatpush1.msra.mxu0 %v77
    %1600 = vmatprep.subr.mxu0 %v82
    %1601 = vmatpush1.msra.mxu0 %v81
    %1602 = vmatprep.subr.mxu0 %v86
    %1603 = vmatpush1.msra.mxu0 %v85
    %1604 = vmatprep.subr.mxu0 %v90
    %1605 = vmatpush1.msra.mxu0 %v89
    %1606 = vmatprep.subr.mxu0 %v94
    %1607 = vmatpush1.msra.mxu0 %v93
    %1608 = vmatprep.subr.mxu0 %v98
    %1609 = vmatpush1.msra.mxu0 %v97
    %1610 = vmatprep.subr.mxu0 %v102
    %1611 = vmatpush1.msra.mxu0 %v101
    %1612 = vmatprep.subr.mxu0 %v106
    %1613 = vmatpush1.msra.mxu0 %v105
    %1614 = vmatprep.subr.mxu0 %v110
    %1615 = vmatpush1.msra.mxu0 %v109
    %1616 = vmatprep.subr.mxu0 %v114
    %1617 = vmatpush1.msra.mxu0 %v113
    %1618 = vmatprep.subr.mxu0 %v118
    %1619 = vmatpush1.msra.mxu0 %v117
    %1620 = vmatprep.subr.mxu0 %v122
    %1621 = vmatpush1.msra.mxu0 %v121
    %1622 = vmatprep.subr.mxu0 %v126
    %1623 = vmatpush1.msra.mxu0 %v125
    %1624 = vmatprep.subr.mxu0 %v130
    %1625 = vmatpush1.msra.mxu0 %v129
    %1626 = vmatprep.subr.mxu0 %v134
    %1627 = vmatpush1.msra.mxu0 %v133
    %1628 = vmatprep.subr.mxu0 0.0
    %1629 = vmatpush1.msra.mxu0 0.0
    %1630 = vmatprep.subr.mxu0 0.0
    %1631 = vmatpush1.msra.mxu0 0.0
    %1632 = vmatprep.subr.mxu0 0.0
    %1633 = vmatpush1.msra.mxu0 0.0
    %1634 = vmatprep.subr.mxu0 0.0
    %1635 = vmatpush1.msra.mxu0 0.0
    %1636 = vmatprep.subr.mxu0 0.0
    %1637 = vmatpush1.msra.mxu0 0.0
    %1638 = vmatprep.subr.mxu0 0.0
    %1639 = vmatpush1.msra.mxu0 0.0
    %1640 = vmatprep.subr.mxu0 0.0
    %1641 = vmatpush1.msra.mxu0 0.0
    %1642 = vmatprep.subr.mxu0 0.0
    %1643 = vmatpush1.msra.mxu0 0.0
    %1644 = vmatprep.subr.mxu0 0.0
    %1645 = vmatpush1.msra.mxu0 0.0
    %1646 = vmatprep.subr.mxu0 0.0
    %1647 = vmatpush1.msra.mxu0 0.0
    %1648 = vmatprep.subr.mxu0 0.0
    %1649 = vmatpush1.msra.mxu0 0.0
    %1650 = vmatprep.subr.mxu0 0.0
    %1651 = vmatpush1.msra.mxu0 0.0
    %1652 = vmatprep.subr.mxu0 0.0
    %1653 = vmatpush1.msra.mxu0 0.0
    %1654 = vmatprep.subr.mxu0 0.0
    %1655 = vmatpush1.msra.mxu0 0.0
    %1656 = vmatprep.subr.mxu0 0.0
    %1657 = vmatpush1.msra.mxu0 0.0
    %1658 = vmatprep.subr.mxu0 0.0
    %1659 = vmatpush1.msra.mxu0 0.0
    %1660 = vmatprep.mubr.f32.mxu0 0.0
    %1661 = vmatmul.mubr.f32.gmra.mrb[0].mxu0 %v1523
    %v1662 = vpop.f32.mrb[0].mxu0
    %v1663 = vadd.f32 0.0, %v1662
    %v1664 = vpop.f32.mrb[0].mxu0
    %v1665 = vadd.f32 0.0, %v1664
    %1666 = vdwg.mxu0
    %v1671 = vrot.slane %v1592, 4
    %v1672 = vrot.slane %v1594, 4
    %v1673 = vrot.slane %v1663, 4
    %v1674 = vrot.slane %v1665, 4
    %v1679 = vadd.f32 %v1518, %v1671
    %v1680 = vadd.f32 %v1519, %v1672
    %v1681 = vadd.f32 %v1520, %v1673
    %v1682 = vadd.f32 %v1521, %v1674
    %v1683 = vxor.u32 %v1679, 2147483648
    %v1684 = vmul.f32 %v1683, 1.442695
    %v1685 = vpow.pop %v1684
    %v1686 = vadd.f32 %v1685, 1.0
    %v1687 = vrcp.pop %v1686
    %v1688 = vmul.f32 1.0, %v1687
    %v1689 = vxor.u32 %v1680, 2147483648
    %v1690 = vmul.f32 %v1689, 1.442695
    %v1691 = vpow.pop %v1690
    %v1692 = vadd.f32 %v1691, 1.0
    %v1693 = vrcp.pop %v1692
    %v1694 = vmul.f32 1.0, %v1693
    %v1695 = vtanh.pop %v1681
    %v1696 = vxor.u32 %v1682, 2147483648
    %v1697 = vmul.f32 %v1696, 1.442695
    %v1698 = vpow.pop %v1697
    %v1699 = vadd.f32 %v1698, 1.0
    %v1700 = vrcp.pop %v1699
    %v1701 = vmul.f32 1.0, %v1700
    %v1703 = vrot.slane %v1514, 6
    %v1705 = vmul.f32 %v1694, %v1703
    %v1706 = vmul.f32 %v1688, %v1695
    %v1707 = vadd.f32 %v1705, %v1706
    %v1708 = vtanh.pop %v1707
    %v1709 = vmul.f32 %v1701, %v1708
    %1710 = vst [vmem:[#allocation3 + $0x8] sm:$0x30] %v1709
    %v1711 = vld [vmem:[#allocation2 + $0x20] sm:$0xc0]
    %v1712 = vld [vmem:[#allocation2 + $0x28] sm:$0xc0]
    %v1713 = vld [vmem:[#allocation2 + $0x30] sm:$0xc0]
    %v1714 = vld [vmem:[#allocation2 + $0x38] sm:$0xc0]
    %v1716 = vrot.slane %v1709, 4
    %1718 = vmatprep.subr.mxu0 %v72
    %1719 = vmatpush1.msra.mxu0 %v71
    %1720 = vmatprep.subr.mxu0 %v76
    %1721 = vmatpush1.msra.mxu0 %v75
    %1722 = vmatprep.subr.mxu0 %v80
    %1723 = vmatpush1.msra.mxu0 %v79
    %1724 = vmatprep.subr.mxu0 %v84
    %1725 = vmatpush1.msra.mxu0 %v83
    %1726 = vmatprep.subr.mxu0 %v88
    %1727 = vmatpush1.msra.mxu0 %v87
    %1728 = vmatprep.subr.mxu0 %v92
    %1729 = vmatpush1.msra.mxu0 %v91
    %1730 = vmatprep.subr.mxu0 %v96
    %1731 = vmatpush1.msra.mxu0 %v95
    %1732 = vmatprep.subr.mxu0 %v100
    %1733 = vmatpush1.msra.mxu0 %v99
    %1734 = vmatprep.subr.mxu0 %v104
    %1735 = vmatpush1.msra.mxu0 %v103
    %1736 = vmatprep.subr.mxu0 %v108
    %1737 = vmatpush1.msra.mxu0 %v107
    %1738 = vmatprep.subr.mxu0 %v112
    %1739 = vmatpush1.msra.mxu0 %v111
    %1740 = vmatprep.subr.mxu0 %v116
    %1741 = vmatpush1.msra.mxu0 %v115
    %1742 = vmatprep.subr.mxu0 %v120
    %1743 = vmatpush1.msra.mxu0 %v119
    %1744 = vmatprep.subr.mxu0 %v124
    %1745 = vmatpush1.msra.mxu0 %v123
    %1746 = vmatprep.subr.mxu0 %v128
    %1747 = vmatpush1.msra.mxu0 %v127
    %1748 = vmatprep.subr.mxu0 %v132
    %1749 = vmatpush1.msra.mxu0 %v131
    %1750 = vmatprep.subr.mxu0 0.0
    %1751 = vmatpush1.msra.mxu0 0.0
    %1752 = vmatprep.subr.mxu0 0.0
    %1753 = vmatpush1.msra.mxu0 0.0
    %1754 = vmatprep.subr.mxu0 0.0
    %1755 = vmatpush1.msra.mxu0 0.0
    %1756 = vmatprep.subr.mxu0 0.0
    %1757 = vmatpush1.msra.mxu0 0.0
    %1758 = vmatprep.subr.mxu0 0.0
    %1759 = vmatpush1.msra.mxu0 0.0
    %1760 = vmatprep.subr.mxu0 0.0
    %1761 = vmatpush1.msra.mxu0 0.0
    %1762 = vmatprep.subr.mxu0 0.0
    %1763 = vmatpush1.msra.mxu0 0.0
    %1764 = vmatprep.subr.mxu0 0.0
    %1765 = vmatpush1.msra.mxu0 0.0
    %1766 = vmatprep.subr.mxu0 0.0
    %1767 = vmatpush1.msra.mxu0 0.0
    %1768 = vmatprep.subr.mxu0 0.0
    %1769 = vmatpush1.msra.mxu0 0.0
    %1770 = vmatprep.subr.mxu0 0.0
    %1771 = vmatpush1.msra.mxu0 0.0
    %1772 = vmatprep.subr.mxu0 0.0
    %1773 = vmatpush1.msra.mxu0 0.0
    %1774 = vmatprep.subr.mxu0 0.0
    %1775 = vmatpush1.msra.mxu0 0.0
    %1776 = vmatprep.subr.mxu0 0.0
    %1777 = vmatpush1.msra.mxu0 0.0
    %1778 = vmatprep.subr.mxu0 0.0
    %1779 = vmatpush1.msra.mxu0 0.0
    %1780 = vmatprep.subr.mxu0 0.0
    %1781 = vmatpush1.msra.mxu0 0.0
    %1782 = vmatprep.mubr.f32.mxu0 0.0
    %1783 = vmatmul.mubr.f32.gmra.mrb[0].mxu0 %v1716
    %v1784 = vpop.f32.mrb[0].mxu0
    %v1785 = vadd.f32 0.0, %v1784
    %v1786 = vpop.f32.mrb[0].mxu0
    %v1787 = vadd.f32 0.0, %v1786
    %1788 = vdwg.mxu0
    %1789 = vmatprep.subr.mxu0 %v74
    %1790 = vmatpush1.msra.mxu0 %v73
    %1791 = vmatprep.subr.mxu0 %v78
    %1792 = vmatpush1.msra.mxu0 %v77
    %1793 = vmatprep.subr.mxu0 %v82
    %1794 = vmatpush1.msra.mxu0 %v81
    %1795 = vmatprep.subr.mxu0 %v86
    %1796 = vmatpush1.msra.mxu0 %v85
    %1797 = vmatprep.subr.mxu0 %v90
    %1798 = vmatpush1.msra.mxu0 %v89
    %1799 = vmatprep.subr.mxu0 %v94
    %1800 = vmatpush1.msra.mxu0 %v93
    %1801 = vmatprep.subr.mxu0 %v98
    %1802 = vmatpush1.msra.mxu0 %v97
    %1803 = vmatprep.subr.mxu0 %v102
    %1804 = vmatpush1.msra.mxu0 %v101
    %1805 = vmatprep.subr.mxu0 %v106
    %1806 = vmatpush1.msra.mxu0 %v105
    %1807 = vmatprep.subr.mxu0 %v110
    %1808 = vmatpush1.msra.mxu0 %v109
    %1809 = vmatprep.subr.mxu0 %v114
    %1810 = vmatpush1.msra.mxu0 %v113
    %1811 = vmatprep.subr.mxu0 %v118
    %1812 = vmatpush1.msra.mxu0 %v117
    %1813 = vmatprep.subr.mxu0 %v122
    %1814 = vmatpush1.msra.mxu0 %v121
    %1815 = vmatprep.subr.mxu0 %v126
    %1816 = vmatpush1.msra.mxu0 %v125
    %1817 = vmatprep.subr.mxu0 %v130
    %1818 = vmatpush1.msra.mxu0 %v129
    %1819 = vmatprep.subr.mxu0 %v134
    %1820 = vmatpush1.msra.mxu0 %v133
    %1821 = vmatprep.subr.mxu0 0.0
    %1822 = vmatpush1.msra.mxu0 0.0
    %1823 = vmatprep.subr.mxu0 0.0
    %1824 = vmatpush1.msra.mxu0 0.0
    %1825 = vmatprep.subr.mxu0 0.0
    %1826 = vmatpush1.msra.mxu0 0.0
    %1827 = vmatprep.subr.mxu0 0.0
    %1828 = vmatpush1.msra.mxu0 0.0
    %1829 = vmatprep.subr.mxu0 0.0
    %1830 = vmatpush1.msra.mxu0 0.0
    %1831 = vmatprep.subr.mxu0 0.0
    %1832 = vmatpush1.msra.mxu0 0.0
    %1833 = vmatprep.subr.mxu0 0.0
    %1834 = vmatpush1.msra.mxu0 0.0
    %1835 = vmatprep.subr.mxu0 0.0
    %1836 = vmatpush1.msra.mxu0 0.0
    %1837 = vmatprep.subr.mxu0 0.0
    %1838 = vmatpush1.msra.mxu0 0.0
    %1839 = vmatprep.subr.mxu0 0.0
    %1840 = vmatpush1.msra.mxu0 0.0
    %1841 = vmatprep.subr.mxu0 0.0
    %1842 = vmatpush1.msra.mxu0 0.0
    %1843 = vmatprep.subr.mxu0 0.0
    %1844 = vmatpush1.msra.mxu0 0.0
    %1845 = vmatprep.subr.mxu0 0.0
    %1846 = vmatpush1.msra.mxu0 0.0
    %1847 = vmatprep.subr.mxu0 0.0
    %1848 = vmatpush1.msra.mxu0 0.0
    %1849 = vmatprep.subr.mxu0 0.0
    %1850 = vmatpush1.msra.mxu0 0.0
    %1851 = vmatprep.subr.mxu0 0.0
    %1852 = vmatpush1.msra.mxu0 0.0
    %1853 = vmatprep.mubr.f32.mxu0 0.0
    %1854 = vmatmul.mubr.f32.gmra.mrb[0].mxu0 %v1716
    %v1855 = vpop.f32.mrb[0].mxu0
    %v1856 = vadd.f32 0.0, %v1855
    %v1857 = vpop.f32.mrb[0].mxu0
    %v1858 = vadd.f32 0.0, %v1857
    %1859 = vdwg.mxu0
    %v1864 = vrot.slane %v1785, 2
    %v1865 = vrot.slane %v1787, 2
    %v1866 = vrot.slane %v1856, 2
    %v1867 = vrot.slane %v1858, 2
    %v1872 = vadd.f32 %v1711, %v1864
    %v1873 = vadd.f32 %v1712, %v1865
    %v1874 = vadd.f32 %v1713, %v1866
    %v1875 = vadd.f32 %v1714, %v1867
    %v1876 = vxor.u32 %v1872, 2147483648
    %v1877 = vmul.f32 %v1876, 1.442695
    %v1878 = vpow.pop %v1877
    %v1879 = vadd.f32 %v1878, 1.0
    %v1880 = vrcp.pop %v1879
    %v1881 = vmul.f32 1.0, %v1880
    %v1882 = vxor.u32 %v1873, 2147483648
    %v1883 = vmul.f32 %v1882, 1.442695
    %v1884 = vpow.pop %v1883
    %v1885 = vadd.f32 %v1884, 1.0
    %v1886 = vrcp.pop %v1885
    %v1887 = vmul.f32 1.0, %v1886
    %v1888 = vtanh.pop %v1874
    %v1889 = vxor.u32 %v1875, 2147483648
    %v1890 = vmul.f32 %v1889, 1.442695
    %v1891 = vpow.pop %v1890
    %v1892 = vadd.f32 %v1891, 1.0
    %v1893 = vrcp.pop %v1892
    %v1894 = vmul.f32 1.0, %v1893
    %v1896 = vrot.slane %v1707, 6
    %v1898 = vmul.f32 %v1887, %v1896
    %v1899 = vmul.f32 %v1881, %v1888
    %v1900 = vadd.f32 %v1898, %v1899
    %v1901 = vtanh.pop %v1900
    %v1902 = vmul.f32 %v1894, %v1901
    %1903 = vst [vmem:[#allocation3 + $0x8] sm:$0xc0] %v1902
    %v1904 = vld [vmem:[#allocation3] sm:$0xff]
    %v1905 = vld [vmem:[#allocation3 + $0x8] sm:$0xff]
    %v1906 = vld [vmem:[#allocation7] sm:$0xff]
    %v1907 = vld [vmem:[#allocation7 + $0x8] sm:$0xff]
    %v1908 = vld [vmem:[#allocation7 + $0x10] sm:$0xff]
    %v1909 = vld [vmem:[#allocation7 + $0x18] sm:$0xff]
    %v1910 = vld [vmem:[#allocation7 + $0x20] sm:$0xff]
    %v1911 = vld [vmem:[#allocation7 + $0x28] sm:$0xff]
    %v1912 = vld [vmem:[#allocation7 + $0x30] sm:$0xff]
    %v1913 = vld [vmem:[#allocation7 + $0x38] sm:$0xff]
    %v1914 = vld [vmem:[#allocation7 + $0x40] sm:$0xff]
    %v1915 = vld [vmem:[#allocation7 + $0x48] sm:$0xff]
    %v1916 = vld [vmem:[#allocation7 + $0x50] sm:$0xff]
    %v1917 = vld [vmem:[#allocation7 + $0x58] sm:$0xff]
    %v1918 = vld [vmem:[#allocation7 + $0x60] sm:$0xff]
    %v1919 = vld [vmem:[#allocation7 + $0x68] sm:$0xff]
    %v1920 = vld [vmem:[#allocation7 + $0x70] sm:$0xff]
    %v1921 = vld [vmem:[#allocation7 + $0x78] sm:$0xff]
    %v1922 = vld [vmem:[#allocation7 + $0x80] sm:$0xff]
    %v1923 = vld [vmem:[#allocation7 + $0x88] sm:$0xff]
    %v1924 = vld [vmem:[#allocation7 + $0x90] sm:$0xff]
    %v1925 = vld [vmem:[#allocation7 + $0x98] sm:$0xff]
    %v1926 = vld [vmem:[#allocation7 + $0xa0] sm:$0xff]
    %v1927 = vld [vmem:[#allocation7 + $0xa8] sm:$0xff]
    %v1928 = vld [vmem:[#allocation7 + $0xb0] sm:$0xff]
    %v1929 = vld [vmem:[#allocation7 + $0xb8] sm:$0xff]
    %v1930 = vld [vmem:[#allocation7 + $0xc0] sm:$0xff]
    %v1931 = vld [vmem:[#allocation7 + $0xc8] sm:$0xff]
    %v1932 = vld [vmem:[#allocation7 + $0xd0] sm:$0xff]
    %v1933 = vld [vmem:[#allocation7 + $0xd8] sm:$0xff]
    %v1934 = vld [vmem:[#allocation7 + $0xe0] sm:$0xff]
    %v1935 = vld [vmem:[#allocation7 + $0xe8] sm:$0xff]
    %v1936 = vld [vmem:[#allocation7 + $0xf0] sm:$0xff]
    %v1937 = vld [vmem:[#allocation7 + $0xf8] sm:$0xff]
    %v1938 = vld [vmem:[#allocation7 + $0x100] sm:$0xff]
    %v1939 = vld [vmem:[#allocation7 + $0x108] sm:$0xff]
    %v1940 = vld [vmem:[#allocation7 + $0x110] sm:$0xff]
    %v1941 = vld [vmem:[#allocation7 + $0x118] sm:$0xff]
    %v1942 = vld [vmem:[#allocation7 + $0x120] sm:$0xff]
    %v1943 = vld [vmem:[#allocation7 + $0x128] sm:$0xff]
    %v1944 = vld [vmem:[#allocation7 + $0x130] sm:$0xff]
    %v1945 = vld [vmem:[#allocation7 + $0x138] sm:$0xff]
    %v1946 = vld [vmem:[#allocation7 + $0x140] sm:$0xff]
    %v1947 = vld [vmem:[#allocation7 + $0x148] sm:$0xff]
    %v1948 = vld [vmem:[#allocation7 + $0x150] sm:$0xff]
    %v1949 = vld [vmem:[#allocation7 + $0x158] sm:$0xff]
    %v1950 = vld [vmem:[#allocation7 + $0x160] sm:$0xff]
    %v1951 = vld [vmem:[#allocation7 + $0x168] sm:$0xff]
    %v1952 = vld [vmem:[#allocation7 + $0x170] sm:$0xff]
    %v1953 = vld [vmem:[#allocation7 + $0x178] sm:$0xff]
    %v1954 = vld [vmem:[#allocation7 + $0x180] sm:$0xff]
    %v1955 = vld [vmem:[#allocation7 + $0x188] sm:$0xff]
    %v1956 = vld [vmem:[#allocation7 + $0x190] sm:$0xff]
    %v1957 = vld [vmem:[#allocation7 + $0x198] sm:$0xff]
    %v1958 = vld [vmem:[#allocation7 + $0x1a0] sm:$0xff]
    %v1959 = vld [vmem:[#allocation7 + $0x1a8] sm:$0xff]
    %v1960 = vld [vmem:[#allocation7 + $0x1b0] sm:$0xff]
    %v1961 = vld [vmem:[#allocation7 + $0x1b8] sm:$0xff]
    %v1962 = vld [vmem:[#allocation7 + $0x1c0] sm:$0xff]
    %v1963 = vld [vmem:[#allocation7 + $0x1c8] sm:$0xff]
    %v1964 = vld [vmem:[#allocation7 + $0x1d0] sm:$0xff]
    %v1965 = vld [vmem:[#allocation7 + $0x1d8] sm:$0xff]
    %v1966 = vld [vmem:[#allocation7 + $0x1e0] sm:$0xff]
    %v1967 = vld [vmem:[#allocation7 + $0x1e8] sm:$0xff]
    %v1968 = vld [vmem:[#allocation7 + $0x1f0] sm:$0xff]
    %v1969 = vld [vmem:[#allocation7 + $0x1f8] sm:$0xff]
    %v1970 = vld [vmem:[%s6] sm:$0xf]
    %v1972 = vlaneseq
    %v1973 = vshrl.u32 %v1972, 7
    %v1974 = vsub.s32 0, %v1973
    %v1975 = vrot.slane %v1970, %v1974
    %v1976 = vlaneseq
    %v1977 = vshrl.u32 %v1976, 7
    %v1978 = vsub.s32 1, %v1977
    %v1979 = vrot.slane %v1970, %v1978
    %v1980 = vlaneseq
    %v1981 = vshrl.u32 %v1980, 7
    %v1982 = vsub.s32 2, %v1981
    %v1983 = vrot.slane %v1970, %v1982
    %v1984 = vlaneseq
    %v1985 = vshrl.u32 %v1984, 7
    %v1986 = vsub.s32 3, %v1985
    %v1987 = vrot.slane %v1970, %v1986
    %1992 = vmatprep.subr.mxu0 %v1907
    %1993 = vmatpush1.msra.mxu0 %v1906
    %1994 = vmatprep.subr.mxu0 %v1911
    %1995 = vmatpush1.msra.mxu0 %v1910
    %1996 = vmatprep.subr.mxu0 %v1915
    %1997 = vmatpush1.msra.mxu0 %v1914
    %1998 = vmatprep.subr.mxu0 %v1919
    %1999 = vmatpush1.msra.mxu0 %v1918
    %2000 = vmatprep.subr.mxu0 %v1923
    %2001 = vmatpush1.msra.mxu0 %v1922
    %2002 = vmatprep.subr.mxu0 %v1927
    %2003 = vmatpush1.msra.mxu0 %v1926
    %2004 = vmatprep.subr.mxu0 %v1931
    %2005 = vmatpush1.msra.mxu0 %v1930
    %2006 = vmatprep.subr.mxu0 %v1935
    %2007 = vmatpush1.msra.mxu0 %v1934
    %2008 = vmatprep.subr.mxu0 %v1939
    %2009 = vmatpush1.msra.mxu0 %v1938
    %2010 = vmatprep.subr.mxu0 %v1943
    %2011 = vmatpush1.msra.mxu0 %v1942
    %2012 = vmatprep.subr.mxu0 %v1947
    %2013 = vmatpush1.msra.mxu0 %v1946
    %2014 = vmatprep.subr.mxu0 %v1951
    %2015 = vmatpush1.msra.mxu0 %v1950
    %2016 = vmatprep.subr.mxu0 %v1955
    %2017 = vmatpush1.msra.mxu0 %v1954
    %2018 = vmatprep.subr.mxu0 %v1959
    %2019 = vmatpush1.msra.mxu0 %v1958
    %2020 = vmatprep.subr.mxu0 %v1963
    %2021 = vmatpush1.msra.mxu0 %v1962
    %2022 = vmatprep.subr.mxu0 %v1967
    %2023 = vmatpush1.msra.mxu0 %v1966
    %2024 = vmatprep.subr.mxu0 0.0
    %2025 = vmatpush1.msra.mxu0 0.0
    %2026 = vmatprep.subr.mxu0 0.0
    %2027 = vmatpush1.msra.mxu0 0.0
    %2028 = vmatprep.subr.mxu0 0.0
    %2029 = vmatpush1.msra.mxu0 0.0
    %2030 = vmatprep.subr.mxu0 0.0
    %2031 = vmatpush1.msra.mxu0 0.0
    %2032 = vmatprep.subr.mxu0 0.0
    %2033 = vmatpush1.msra.mxu0 0.0
    %2034 = vmatprep.subr.mxu0 0.0
    %2035 = vmatpush1.msra.mxu0 0.0
    %2036 = vmatprep.subr.mxu0 0.0
    %2037 = vmatpush1.msra.mxu0 0.0
    %2038 = vmatprep.subr.mxu0 0.0
    %2039 = vmatpush1.msra.mxu0 0.0
    %2040 = vmatprep.subr.mxu0 0.0
    %2041 = vmatpush1.msra.mxu0 0.0
    %2042 = vmatprep.subr.mxu0 0.0
    %2043 = vmatpush1.msra.mxu0 0.0
    %2044 = vmatprep.subr.mxu0 0.0
    %2045 = vmatpush1.msra.mxu0 0.0
    %2046 = vmatprep.subr.mxu0 0.0
    %2047 = vmatpush1.msra.mxu0 0.0
    %2048 = vmatprep.subr.mxu0 0.0
    %2049 = vmatpush1.msra.mxu0 0.0
    %2050 = vmatprep.subr.mxu0 0.0
    %2051 = vmatpush1.msra.mxu0 0.0
    %2052 = vmatprep.subr.mxu0 0.0
    %2053 = vmatpush1.msra.mxu0 0.0
    %2054 = vmatprep.subr.mxu0 0.0
    %2055 = vmatpush1.msra.mxu0 0.0
    %2056 = vmatprep.mubr.f32.mxu0 0.0
    %2057 = vmatmul.mubr.f32.gmra.mrb[0].mxu0 %v1904
    %v2058 = vpop.f32.mrb[0].mxu0
    %v2059 = vadd.f32 %v1975, %v2058
    %v2060 = vpop.f32.mrb[0].mxu0
    %v2061 = vadd.f32 %v1979, %v2060
    %2062 = vmatprep.mubr.f32.mxu0 0.0
    %2063 = vmatmul.mubr.f32.gmra.mrb[0].mxu0 %v1905
    %v2064 = vpop.f32.mrb[0].mxu0
    %v2065 = vadd.f32 %v1975, %v2064
    %v2066 = vpop.f32.mrb[0].mxu0
    %v2067 = vadd.f32 %v1979, %v2066
    %2068 = vdwg.mxu0
    %2069 = vmatprep.subr.mxu0 %v1909
    %2070 = vmatpush1.msra.mxu0 %v1908
    %2071 = vmatprep.subr.mxu0 %v1913
    %2072 = vmatpush1.msra.mxu0 %v1912
    %2073 = vmatprep.subr.mxu0 %v1917
    %2074 = vmatpush1.msra.mxu0 %v1916
    %2075 = vmatprep.subr.mxu0 %v1921
    %2076 = vmatpush1.msra.mxu0 %v1920
    %2077 = vmatprep.subr.mxu0 %v1925
    %2078 = vmatpush1.msra.mxu0 %v1924
    %2079 = vmatprep.subr.mxu0 %v1929
    %2080 = vmatpush1.msra.mxu0 %v1928
    %2081 = vmatprep.subr.mxu0 %v1933
    %2082 = vmatpush1.msra.mxu0 %v1932
    %2083 = vmatprep.subr.mxu0 %v1937
    %2084 = vmatpush1.msra.mxu0 %v1936
    %2085 = vmatprep.subr.mxu0 %v1941
    %2086 = vmatpush1.msra.mxu0 %v1940
    %2087 = vmatprep.subr.mxu0 %v1945
    %2088 = vmatpush1.msra.mxu0 %v1944
    %2089 = vmatprep.subr.mxu0 %v1949
    %2090 = vmatpush1.msra.mxu0 %v1948
    %2091 = vmatprep.subr.mxu0 %v1953
    %2092 = vmatpush1.msra.mxu0 %v1952
    %2093 = vmatprep.subr.mxu0 %v1957
    %2094 = vmatpush1.msra.mxu0 %v1956
    %2095 = vmatprep.subr.mxu0 %v1961
    %2096 = vmatpush1.msra.mxu0 %v1960
    %2097 = vmatprep.subr.mxu0 %v1965
    %2098 = vmatpush1.msra.mxu0 %v1964
    %2099 = vmatprep.subr.mxu0 %v1969
    %2100 = vmatpush1.msra.mxu0 %v1968
    %2101 = vmatprep.subr.mxu0 0.0
    %2102 = vmatpush1.msra.mxu0 0.0
    %2103 = vmatprep.subr.mxu0 0.0
    %2104 = vmatpush1.msra.mxu0 0.0
    %2105 = vmatprep.subr.mxu0 0.0
    %2106 = vmatpush1.msra.mxu0 0.0
    %2107 = vmatprep.subr.mxu0 0.0
    %2108 = vmatpush1.msra.mxu0 0.0
    %2109 = vmatprep.subr.mxu0 0.0
    %2110 = vmatpush1.msra.mxu0 0.0
    %2111 = vmatprep.subr.mxu0 0.0
    %2112 = vmatpush1.msra.mxu0 0.0
    %2113 = vmatprep.subr.mxu0 0.0
    %2114 = vmatpush1.msra.mxu0 0.0
    %2115 = vmatprep.subr.mxu0 0.0
    %2116 = vmatpush1.msra.mxu0 0.0
    %2117 = vmatprep.subr.mxu0 0.0
    %2118 = vmatpush1.msra.mxu0 0.0
    %2119 = vmatprep.subr.mxu0 0.0
    %2120 = vmatpush1.msra.mxu0 0.0
    %2121 = vmatprep.subr.mxu0 0.0
    %2122 = vmatpush1.msra.mxu0 0.0
    %2123 = vmatprep.subr.mxu0 0.0
    %2124 = vmatpush1.msra.mxu0 0.0
    %2125 = vmatprep.subr.mxu0 0.0
    %2126 = vmatpush1.msra.mxu0 0.0
    %2127 = vmatprep.subr.mxu0 0.0
    %2128 = vmatpush1.msra.mxu0 0.0
    %2129 = vmatprep.subr.mxu0 0.0
    %2130 = vmatpush1.msra.mxu0 0.0
    %2131 = vmatprep.subr.mxu0 0.0
    %2132 = vmatpush1.msra.mxu0 0.0
    %2133 = vmatprep.mubr.f32.mxu0 0.0
    %2134 = vmatmul.mubr.f32.gmra.mrb[0].mxu0 %v1904
    %v2135 = vpop.f32.mrb[0].mxu0
    %v2136 = vadd.f32 %v1983, %v2135
    %v2137 = vpop.f32.mrb[0].mxu0
    %v2138 = vadd.f32 %v1987, %v2137
    %2139 = vmatprep.mubr.f32.mxu0 0.0
    %2140 = vmatmul.mubr.f32.gmra.mrb[0].mxu0 %v1905
    %v2141 = vpop.f32.mrb[0].mxu0
    %v2142 = vadd.f32 %v1983, %v2141
    %v2143 = vpop.f32.mrb[0].mxu0
    %v2144 = vadd.f32 %v1987, %v2143
    %2145 = vdwg.mxu0
    %2146 = vst [vmem:[#allocation2] sm:$0xff] %v2059
    %2147 = vst [vmem:[#allocation2 + $0x8] sm:$0xff] %v2061
    %2148 = vst [vmem:[#allocation2 + $0x10] sm:$0xff] %v2136
    %2149 = vst [vmem:[#allocation2 + $0x18] sm:$0xff] %v2138
    %2150 = vst [vmem:[#allocation2 + $0x20] sm:$0xff] %v2065
    %2151 = vst [vmem:[#allocation2 + $0x28] sm:$0xff] %v2067
    %2152 = vst [vmem:[#allocation2 + $0x30] sm:$0xff] %v2142
    %2153 = vst [vmem:[#allocation2 + $0x38] sm:$0xff] %v2144
    %v2154 = vld [vmem:[#allocation2] sm:$0x3]
    %v2155 = vld [vmem:[#allocation2 + $0x8] sm:$0x3]
    %v2156 = vld [vmem:[#allocation2 + $0x10] sm:$0x3]
    %v2157 = vld [vmem:[#allocation2 + $0x18] sm:$0x3]
    %2158 = vmatprep.subr.mxu0 %v136
    %2159 = vmatpush1.msra.mxu0 %v135
    %2160 = vmatprep.subr.mxu0 %v140
    %2161 = vmatpush1.msra.mxu0 %v139
    %2162 = vmatprep.subr.mxu0 %v144
    %2163 = vmatpush1.msra.mxu0 %v143
    %2164 = vmatprep.subr.mxu0 %v148
    %2165 = vmatpush1.msra.mxu0 %v147
    %2166 = vmatprep.subr.mxu0 %v152
    %2167 = vmatpush1.msra.mxu0 %v151
    %2168 = vmatprep.subr.mxu0 %v156
    %2169 = vmatpush1.msra.mxu0 %v155
    %2170 = vmatprep.subr.mxu0 %v160
    %2171 = vmatpush1.msra.mxu0 %v159
    %2172 = vmatprep.subr.mxu0 %v164
    %2173 = vmatpush1.msra.mxu0 %v163
    %2174 = vmatprep.subr.mxu0 %v168
    %2175 = vmatpush1.msra.mxu0 %v167
    %2176 = vmatprep.subr.mxu0 %v172
    %2177 = vmatpush1.msra.mxu0 %v171
    %2178 = vmatprep.subr.mxu0 %v176
    %2179 = vmatpush1.msra.mxu0 %v175
    %2180 = vmatprep.subr.mxu0 %v180
    %2181 = vmatpush1.msra.mxu0 %v179
    %2182 = vmatprep.subr.mxu0 %v184
    %2183 = vmatpush1.msra.mxu0 %v183
    %2184 = vmatprep.subr.mxu0 %v188
    %2185 = vmatpush1.msra.mxu0 %v187
    %2186 = vmatprep.subr.mxu0 %v192
    %2187 = vmatpush1.msra.mxu0 %v191
    %2188 = vmatprep.subr.mxu0 %v196
    %2189 = vmatpush1.msra.mxu0 %v195
    %2190 = vmatprep.subr.mxu0 0.0
    %2191 = vmatpush1.msra.mxu0 0.0
    %2192 = vmatprep.subr.mxu0 0.0
    %2193 = vmatpush1.msra.mxu0 0.0
    %2194 = vmatprep.subr.mxu0 0.0
    %2195 = vmatpush1.msra.mxu0 0.0
    %2196 = vmatprep.subr.mxu0 0.0
    %2197 = vmatpush1.msra.mxu0 0.0
    %2198 = vmatprep.subr.mxu0 0.0
    %2199 = vmatpush1.msra.mxu0 0.0
    %2200 = vmatprep.subr.mxu0 0.0
    %2201 = vmatpush1.msra.mxu0 0.0
    %2202 = vmatprep.subr.mxu0 0.0
    %2203 = vmatpush1.msra.mxu0 0.0
    %2204 = vmatprep.subr.mxu0 0.0
    %2205 = vmatpush1.msra.mxu0 0.0
    %2206 = vmatprep.subr.mxu0 0.0
    %2207 = vmatpush1.msra.mxu0 0.0
    %2208 = vmatprep.subr.mxu0 0.0
    %2209 = vmatpush1.msra.mxu0 0.0
    %2210 = vmatprep.subr.mxu0 0.0
    %2211 = vmatpush1.msra.mxu0 0.0
    %2212 = vmatprep.subr.mxu0 0.0
    %2213 = vmatpush1.msra.mxu0 0.0
    %2214 = vmatprep.subr.mxu0 0.0
    %2215 = vmatpush1.msra.mxu0 0.0
    %2216 = vmatprep.subr.mxu0 0.0
    %2217 = vmatpush1.msra.mxu0 0.0
    %2218 = vmatprep.subr.mxu0 0.0
    %2219 = vmatpush1.msra.mxu0 0.0
    %2220 = vmatprep.subr.mxu0 0.0
    %2221 = vmatpush1.msra.mxu0 0.0
    %2222 = vmatprep.mubr.f32.mxu0 0.0
    %2223 = vmatmul.mubr.f32.gmra.mrb[0].mxu0 0.0
    %v2224 = vpop.f32.mrb[0].mxu0
    %v2225 = vadd.f32 0.0, %v2224
    %v2226 = vpop.f32.mrb[0].mxu0
    %v2227 = vadd.f32 0.0, %v2226
    %2228 = vdwg.mxu0
    %2229 = vmatprep.subr.mxu0 %v138
    %2230 = vmatpush1.msra.mxu0 %v137
    %2231 = vmatprep.subr.mxu0 %v142
    %2232 = vmatpush1.msra.mxu0 %v141
    %2233 = vmatprep.subr.mxu0 %v146
    %2234 = vmatpush1.msra.mxu0 %v145
    %2235 = vmatprep.subr.mxu0 %v150
    %2236 = vmatpush1.msra.mxu0 %v149
    %2237 = vmatprep.subr.mxu0 %v154
    %2238 = vmatpush1.msra.mxu0 %v153
    %2239 = vmatprep.subr.mxu0 %v158
    %2240 = vmatpush1.msra.mxu0 %v157
    %2241 = vmatprep.subr.mxu0 %v162
    %2242 = vmatpush1.msra.mxu0 %v161
    %2243 = vmatprep.subr.mxu0 %v166
    %2244 = vmatpush1.msra.mxu0 %v165
    %2245 = vmatprep.subr.mxu0 %v170
    %2246 = vmatpush1.msra.mxu0 %v169
    %2247 = vmatprep.subr.mxu0 %v174
    %2248 = vmatpush1.msra.mxu0 %v173
    %2249 = vmatprep.subr.mxu0 %v178
    %2250 = vmatpush1.msra.mxu0 %v177
    %2251 = vmatprep.subr.mxu0 %v182
    %2252 = vmatpush1.msra.mxu0 %v181
    %2253 = vmatprep.subr.mxu0 %v186
    %2254 = vmatpush1.msra.mxu0 %v185
    %2255 = vmatprep.subr.mxu0 %v190
    %2256 = vmatpush1.msra.mxu0 %v189
    %2257 = vmatprep.subr.mxu0 %v194
    %2258 = vmatpush1.msra.mxu0 %v193
    %2259 = vmatprep.subr.mxu0 %v198
    %2260 = vmatpush1.msra.mxu0 %v197
    %2261 = vmatprep.subr.mxu0 0.0
    %2262 = vmatpush1.msra.mxu0 0.0
    %2263 = vmatprep.subr.mxu0 0.0
    %2264 = vmatpush1.msra.mxu0 0.0
    %2265 = vmatprep.subr.mxu0 0.0
    %2266 = vmatpush1.msra.mxu0 0.0
    %2267 = vmatprep.subr.mxu0 0.0
    %2268 = vmatpush1.msra.mxu0 0.0
    %2269 = vmatprep.subr.mxu0 0.0
    %2270 = vmatpush1.msra.mxu0 0.0
    %2271 = vmatprep.subr.mxu0 0.0
    %2272 = vmatpush1.msra.mxu0 0.0
    %2273 = vmatprep.subr.mxu0 0.0
    %2274 = vmatpush1.msra.mxu0 0.0
    %2275 = vmatprep.subr.mxu0 0.0
    %2276 = vmatpush1.msra.mxu0 0.0
    %2277 = vmatprep.subr.mxu0 0.0
    %2278 = vmatpush1.msra.mxu0 0.0
    %2279 = vmatprep.subr.mxu0 0.0
    %2280 = vmatpush1.msra.mxu0 0.0
    %2281 = vmatprep.subr.mxu0 0.0
    %2282 = vmatpush1.msra.mxu0 0.0
    %2283 = vmatprep.subr.mxu0 0.0
    %2284 = vmatpush1.msra.mxu0 0.0
    %2285 = vmatprep.subr.mxu0 0.0
    %2286 = vmatpush1.msra.mxu0 0.0
    %2287 = vmatprep.subr.mxu0 0.0
    %2288 = vmatpush1.msra.mxu0 0.0
    %2289 = vmatprep.subr.mxu0 0.0
    %2290 = vmatpush1.msra.mxu0 0.0
    %2291 = vmatprep.subr.mxu0 0.0
    %2292 = vmatpush1.msra.mxu0 0.0
    %2293 = vmatprep.mubr.f32.mxu0 0.0
    %2294 = vmatmul.mubr.f32.gmra.mrb[0].mxu0 0.0
    %v2295 = vpop.f32.mrb[0].mxu0
    %v2296 = vadd.f32 0.0, %v2295
    %v2297 = vpop.f32.mrb[0].mxu0
    %v2298 = vadd.f32 0.0, %v2297
    %2299 = vdwg.mxu0
    %v2300 = vadd.f32 %v2154, %v2225
    %v2301 = vadd.f32 %v2155, %v2227
    %v2302 = vadd.f32 %v2156, %v2296
    %v2303 = vadd.f32 %v2157, %v2298
    %v2304 = vxor.u32 %v2300, 2147483648
    %v2305 = vmul.f32 %v2304, 1.442695
    %v2306 = vpow.pop %v2305
    %v2307 = vadd.f32 %v2306, 1.0
    %v2308 = vrcp.pop %v2307
    %v2309 = vmul.f32 1.0, %v2308
    %v2310 = vxor.u32 %v2301, 2147483648
    %v2311 = vmul.f32 %v2310, 1.442695
    %v2312 = vpow.pop %v2311
    %v2313 = vadd.f32 %v2312, 1.0
    %v2314 = vrcp.pop %v2313
    %v2315 = vmul.f32 1.0, %v2314
    %v2316 = vtanh.pop %v2302
    %v2317 = vxor.u32 %v2303, 2147483648
    %v2318 = vmul.f32 %v2317, 1.442695
    %v2319 = vpow.pop %v2318
    %v2320 = vadd.f32 %v2319, 1.0
    %v2321 = vrcp.pop %v2320
    %v2322 = vmul.f32 1.0, %v2321
    %v2323 = vmul.f32 %v2315, 0.0
    %v2324 = vmul.f32 %v2309, %v2316
    %v2325 = vadd.f32 %v2323, %v2324
    %v2326 = vtanh.pop %v2325
    %v2327 = vmul.f32 %v2322, %v2326
    %v2328 = vld [vmem:[#allocation2] sm:$0xc]
    %v2329 = vld [vmem:[#allocation2 + $0x8] sm:$0xc]
    %v2330 = vld [vmem:[#allocation2 + $0x10] sm:$0xc]
    %v2331 = vld [vmem:[#allocation2 + $0x18] sm:$0xc]
    %2332 = vmatprep.subr.mxu0 %v136
    %2333 = vmatpush1.msra.mxu0 %v135
    %2334 = vmatprep.subr.mxu0 %v140
    %2335 = vmatpush1.msra.mxu0 %v139
    %2336 = vmatprep.subr.mxu0 %v144
    %2337 = vmatpush1.msra.mxu0 %v143
    %2338 = vmatprep.subr.mxu0 %v148
    %2339 = vmatpush1.msra.mxu0 %v147
    %2340 = vmatprep.subr.mxu0 %v152
    %2341 = vmatpush1.msra.mxu0 %v151
    %2342 = vmatprep.subr.mxu0 %v156
    %2343 = vmatpush1.msra.mxu0 %v155
    %2344 = vmatprep.subr.mxu0 %v160
    %2345 = vmatpush1.msra.mxu0 %v159
    %2346 = vmatprep.subr.mxu0 %v164
    %2347 = vmatpush1.msra.mxu0 %v163
    %2348 = vmatprep.subr.mxu0 %v168
    %2349 = vmatpush1.msra.mxu0 %v167
    %2350 = vmatprep.subr.mxu0 %v172
    %2351 = vmatpush1.msra.mxu0 %v171
    %2352 = vmatprep.subr.mxu0 %v176
    %2353 = vmatpush1.msra.mxu0 %v175
    %2354 = vmatprep.subr.mxu0 %v180
    %2355 = vmatpush1.msra.mxu0 %v179
    %2356 = vmatprep.subr.mxu0 %v184
    %2357 = vmatpush1.msra.mxu0 %v183
    %2358 = vmatprep.subr.mxu0 %v188
    %2359 = vmatpush1.msra.mxu0 %v187
    %2360 = vmatprep.subr.mxu0 %v192
    %2361 = vmatpush1.msra.mxu0 %v191
    %2362 = vmatprep.subr.mxu0 %v196
    %2363 = vmatpush1.msra.mxu0 %v195
    %2364 = vmatprep.subr.mxu0 0.0
    %2365 = vmatpush1.msra.mxu0 0.0
    %2366 = vmatprep.subr.mxu0 0.0
    %2367 = vmatpush1.msra.mxu0 0.0
    %2368 = vmatprep.subr.mxu0 0.0
    %2369 = vmatpush1.msra.mxu0 0.0
    %2370 = vmatprep.subr.mxu0 0.0
    %2371 = vmatpush1.msra.mxu0 0.0
    %2372 = vmatprep.subr.mxu0 0.0
    %2373 = vmatpush1.msra.mxu0 0.0
    %2374 = vmatprep.subr.mxu0 0.0
    %2375 = vmatpush1.msra.mxu0 0.0
    %2376 = vmatprep.subr.mxu0 0.0
    %2377 = vmatpush1.msra.mxu0 0.0
    %2378 = vmatprep.subr.mxu0 0.0
    %2379 = vmatpush1.msra.mxu0 0.0
    %2380 = vmatprep.subr.mxu0 0.0
    %2381 = vmatpush1.msra.mxu0 0.0
    %2382 = vmatprep.subr.mxu0 0.0
    %2383 = vmatpush1.msra.mxu0 0.0
    %2384 = vmatprep.subr.mxu0 0.0
    %2385 = vmatpush1.msra.mxu0 0.0
    %2386 = vmatprep.subr.mxu0 0.0
    %2387 = vmatpush1.msra.mxu0 0.0
    %2388 = vmatprep.subr.mxu0 0.0
    %2389 = vmatpush1.msra.mxu0 0.0
    %2390 = vmatprep.subr.mxu0 0.0
    %2391 = vmatpush1.msra.mxu0 0.0
    %2392 = vmatprep.subr.mxu0 0.0
    %2393 = vmatpush1.msra.mxu0 0.0
    %2394 = vmatprep.subr.mxu0 0.0
    %2395 = vmatpush1.msra.mxu0 0.0
    %2396 = vmatprep.mubr.f32.mxu0 0.0
    %2397 = vmatmul.mubr.f32.gmra.mrb[0].mxu0 %v2327
    %v2398 = vpop.f32.mrb[0].mxu0
    %v2399 = vadd.f32 0.0, %v2398
    %v2400 = vpop.f32.mrb[0].mxu0
    %v2401 = vadd.f32 0.0, %v2400
    %2402 = vdwg.mxu0
    %2403 = vmatprep.subr.mxu0 %v138
    %2404 = vmatpush1.msra.mxu0 %v137
    %2405 = vmatprep.subr.mxu0 %v142
    %2406 = vmatpush1.msra.mxu0 %v141
    %2407 = vmatprep.subr.mxu0 %v146
    %2408 = vmatpush1.msra.mxu0 %v145
    %2409 = vmatprep.subr.mxu0 %v150
    %2410 = vmatpush1.msra.mxu0 %v149
    %2411 = vmatprep.subr.mxu0 %v154
    %2412 = vmatpush1.msra.mxu0 %v153
    %2413 = vmatprep.subr.mxu0 %v158
    %2414 = vmatpush1.msra.mxu0 %v157
    %2415 = vmatprep.subr.mxu0 %v162
    %2416 = vmatpush1.msra.mxu0 %v161
    %2417 = vmatprep.subr.mxu0 %v166
    %2418 = vmatpush1.msra.mxu0 %v165
    %2419 = vmatprep.subr.mxu0 %v170
    %2420 = vmatpush1.msra.mxu0 %v169
    %2421 = vmatprep.subr.mxu0 %v174
    %2422 = vmatpush1.msra.mxu0 %v173
    %2423 = vmatprep.subr.mxu0 %v178
    %2424 = vmatpush1.msra.mxu0 %v177
    %2425 = vmatprep.subr.mxu0 %v182
    %2426 = vmatpush1.msra.mxu0 %v181
    %2427 = vmatprep.subr.mxu0 %v186
    %2428 = vmatpush1.msra.mxu0 %v185
    %2429 = vmatprep.subr.mxu0 %v190
    %2430 = vmatpush1.msra.mxu0 %v189
    %2431 = vmatprep.subr.mxu0 %v194
    %2432 = vmatpush1.msra.mxu0 %v193
    %2433 = vmatprep.subr.mxu0 %v198
    %2434 = vmatpush1.msra.mxu0 %v197
    %2435 = vmatprep.subr.mxu0 0.0
    %2436 = vmatpush1.msra.mxu0 0.0
    %2437 = vmatprep.subr.mxu0 0.0
    %2438 = vmatpush1.msra.mxu0 0.0
    %2439 = vmatprep.subr.mxu0 0.0
    %2440 = vmatpush1.msra.mxu0 0.0
    %2441 = vmatprep.subr.mxu0 0.0
    %2442 = vmatpush1.msra.mxu0 0.0
    %2443 = vmatprep.subr.mxu0 0.0
    %2444 = vmatpush1.msra.mxu0 0.0
    %2445 = vmatprep.subr.mxu0 0.0
    %2446 = vmatpush1.msra.mxu0 0.0
    %2447 = vmatprep.subr.mxu0 0.0
    %2448 = vmatpush1.msra.mxu0 0.0
    %2449 = vmatprep.subr.mxu0 0.0
    %2450 = vmatpush1.msra.mxu0 0.0
    %2451 = vmatprep.subr.mxu0 0.0
    %2452 = vmatpush1.msra.mxu0 0.0
    %2453 = vmatprep.subr.mxu0 0.0
    %2454 = vmatpush1.msra.mxu0 0.0
    %2455 = vmatprep.subr.mxu0 0.0
    %2456 = vmatpush1.msra.mxu0 0.0
    %2457 = vmatprep.subr.mxu0 0.0
    %2458 = vmatpush1.msra.mxu0 0.0
    %2459 = vmatprep.subr.mxu0 0.0
    %2460 = vmatpush1.msra.mxu0 0.0
    %2461 = vmatprep.subr.mxu0 0.0
    %2462 = vmatpush1.msra.mxu0 0.0
    %2463 = vmatprep.subr.mxu0 0.0
    %2464 = vmatpush1.msra.mxu0 0.0
    %2465 = vmatprep.subr.mxu0 0.0
    %2466 = vmatpush1.msra.mxu0 0.0
    %2467 = vmatprep.mubr.f32.mxu0 0.0
    %2468 = vmatmul.mubr.f32.gmra.mrb[0].mxu0 %v2327
    %v2469 = vpop.f32.mrb[0].mxu0
    %v2470 = vadd.f32 0.0, %v2469
    %v2471 = vpop.f32.mrb[0].mxu0
    %v2472 = vadd.f32 0.0, %v2471
    %2473 = vdwg.mxu0
    %v2478 = vrot.slane %v2399, 6
    %v2479 = vrot.slane %v2401, 6
    %v2480 = vrot.slane %v2470, 6
    %v2481 = vrot.slane %v2472, 6
    %v2486 = vadd.f32 %v2328, %v2478
    %v2487 = vadd.f32 %v2329, %v2479
    %v2488 = vadd.f32 %v2330, %v2480
    %v2489 = vadd.f32 %v2331, %v2481
    %v2490 = vxor.u32 %v2486, 2147483648
    %v2491 = vmul.f32 %v2490, 1.442695
    %v2492 = vpow.pop %v2491
    %v2493 = vadd.f32 %v2492, 1.0
    %v2494 = vrcp.pop %v2493
    %v2495 = vmul.f32 1.0, %v2494
    %v2496 = vxor.u32 %v2487, 2147483648
    %v2497 = vmul.f32 %v2496, 1.442695
    %v2498 = vpow.pop %v2497
    %v2499 = vadd.f32 %v2498, 1.0
    %v2500 = vrcp.pop %v2499
    %v2501 = vmul.f32 1.0, %v2500
    %v2502 = vtanh.pop %v2488
    %v2503 = vxor.u32 %v2489, 2147483648
    %v2504 = vmul.f32 %v2503, 1.442695
    %v2505 = vpow.pop %v2504
    %v2506 = vadd.f32 %v2505, 1.0
    %v2507 = vrcp.pop %v2506
    %v2508 = vmul.f32 1.0, %v2507
    %v2510 = vrot.slane %v2325, 6
    %v2512 = vmul.f32 %v2501, %v2510
    %v2513 = vmul.f32 %v2495, %v2502
    %v2514 = vadd.f32 %v2512, %v2513
    %v2515 = vtanh.pop %v2514
    %v2516 = vmul.f32 %v2508, %v2515
    %v2517 = vld [vmem:[#allocation2] sm:$0x30]
    %v2518 = vld [vmem:[#allocation2 + $0x8] sm:$0x30]
    %v2519 = vld [vmem:[#allocation2 + $0x10] sm:$0x30]
    %v2520 = vld [vmem:[#allocation2 + $0x18] sm:$0x30]
    %v2522 = vrot.slane %v2516, 2
    %2524 = vmatprep.subr.mxu0 %v136
    %2525 = vmatpush1.msra.mxu0 %v135
    %2526 = vmatprep.subr.mxu0 %v140
    %2527 = vmatpush1.msra.mxu0 %v139
    %2528 = vmatprep.subr.mxu0 %v144
    %2529 = vmatpush1.msra.mxu0 %v143
    %2530 = vmatprep.subr.mxu0 %v148
    %2531 = vmatpush1.msra.mxu0 %v147
    %2532 = vmatprep.subr.mxu0 %v152
    %2533 = vmatpush1.msra.mxu0 %v151
    %2534 = vmatprep.subr.mxu0 %v156
    %2535 = vmatpush1.msra.mxu0 %v155
    %2536 = vmatprep.subr.mxu0 %v160
    %2537 = vmatpush1.msra.mxu0 %v159
    %2538 = vmatprep.subr.mxu0 %v164
    %2539 = vmatpush1.msra.mxu0 %v163
    %2540 = vmatprep.subr.mxu0 %v168
    %2541 = vmatpush1.msra.mxu0 %v167
    %2542 = vmatprep.subr.mxu0 %v172
    %2543 = vmatpush1.msra.mxu0 %v171
    %2544 = vmatprep.subr.mxu0 %v176
    %2545 = vmatpush1.msra.mxu0 %v175
    %2546 = vmatprep.subr.mxu0 %v180
    %2547 = vmatpush1.msra.mxu0 %v179
    %2548 = vmatprep.subr.mxu0 %v184
    %2549 = vmatpush1.msra.mxu0 %v183
    %2550 = vmatprep.subr.mxu0 %v188
    %2551 = vmatpush1.msra.mxu0 %v187
    %2552 = vmatprep.subr.mxu0 %v192
    %2553 = vmatpush1.msra.mxu0 %v191
    %2554 = vmatprep.subr.mxu0 %v196
    %2555 = vmatpush1.msra.mxu0 %v195
    %2556 = vmatprep.subr.mxu0 0.0
    %2557 = vmatpush1.msra.mxu0 0.0
    %2558 = vmatprep.subr.mxu0 0.0
    %2559 = vmatpush1.msra.mxu0 0.0
    %2560 = vmatprep.subr.mxu0 0.0
    %2561 = vmatpush1.msra.mxu0 0.0
    %2562 = vmatprep.subr.mxu0 0.0
    %2563 = vmatpush1.msra.mxu0 0.0
    %2564 = vmatprep.subr.mxu0 0.0
    %2565 = vmatpush1.msra.mxu0 0.0
    %2566 = vmatprep.subr.mxu0 0.0
    %2567 = vmatpush1.msra.mxu0 0.0
    %2568 = vmatprep.subr.mxu0 0.0
    %2569 = vmatpush1.msra.mxu0 0.0
    %2570 = vmatprep.subr.mxu0 0.0
    %2571 = vmatpush1.msra.mxu0 0.0
    %2572 = vmatprep.subr.mxu0 0.0
    %2573 = vmatpush1.msra.mxu0 0.0
    %2574 = vmatprep.subr.mxu0 0.0
    %2575 = vmatpush1.msra.mxu0 0.0
    %2576 = vmatprep.subr.mxu0 0.0
    %2577 = vmatpush1.msra.mxu0 0.0
    %2578 = vmatprep.subr.mxu0 0.0
    %2579 = vmatpush1.msra.mxu0 0.0
    %2580 = vmatprep.subr.mxu0 0.0
    %2581 = vmatpush1.msra.mxu0 0.0
    %2582 = vmatprep.subr.mxu0 0.0
    %2583 = vmatpush1.msra.mxu0 0.0
    %2584 = vmatprep.subr.mxu0 0.0
    %2585 = vmatpush1.msra.mxu0 0.0
    %2586 = vmatprep.subr.mxu0 0.0
    %2587 = vmatpush1.msra.mxu0 0.0
    %2588 = vmatprep.mubr.f32.mxu0 0.0
    %2589 = vmatmul.mubr.f32.gmra.mrb[0].mxu0 %v2522
    %v2590 = vpop.f32.mrb[0].mxu0
    %v2591 = vadd.f32 0.0, %v2590
    %v2592 = vpop.f32.mrb[0].mxu0
    %v2593 = vadd.f32 0.0, %v2592
    %2594 = vdwg.mxu0
    %2595 = vmatprep.subr.mxu0 %v138
    %2596 = vmatpush1.msra.mxu0 %v137
    %2597 = vmatprep.subr.mxu0 %v142
    %2598 = vmatpush1.msra.mxu0 %v141
    %2599 = vmatprep.subr.mxu0 %v146
    %2600 = vmatpush1.msra.mxu0 %v145
    %2601 = vmatprep.subr.mxu0 %v150
    %2602 = vmatpush1.msra.mxu0 %v149
    %2603 = vmatprep.subr.mxu0 %v154
    %2604 = vmatpush1.msra.mxu0 %v153
    %2605 = vmatprep.subr.mxu0 %v158
    %2606 = vmatpush1.msra.mxu0 %v157
    %2607 = vmatprep.subr.mxu0 %v162
    %2608 = vmatpush1.msra.mxu0 %v161
    %2609 = vmatprep.subr.mxu0 %v166
    %2610 = vmatpush1.msra.mxu0 %v165
    %2611 = vmatprep.subr.mxu0 %v170
    %2612 = vmatpush1.msra.mxu0 %v169
    %2613 = vmatprep.subr.mxu0 %v174
    %2614 = vmatpush1.msra.mxu0 %v173
    %2615 = vmatprep.subr.mxu0 %v178
    %2616 = vmatpush1.msra.mxu0 %v177
    %2617 = vmatprep.subr.mxu0 %v182
    %2618 = vmatpush1.msra.mxu0 %v181
    %2619 = vmatprep.subr.mxu0 %v186
    %2620 = vmatpush1.msra.mxu0 %v185
    %2621 = vmatprep.subr.mxu0 %v190
    %2622 = vmatpush1.msra.mxu0 %v189
    %2623 = vmatprep.subr.mxu0 %v194
    %2624 = vmatpush1.msra.mxu0 %v193
    %2625 = vmatprep.subr.mxu0 %v198
    %2626 = vmatpush1.msra.mxu0 %v197
    %2627 = vmatprep.subr.mxu0 0.0
    %2628 = vmatpush1.msra.mxu0 0.0
    %2629 = vmatprep.subr.mxu0 0.0
    %2630 = vmatpush1.msra.mxu0 0.0
    %2631 = vmatprep.subr.mxu0 0.0
    %2632 = vmatpush1.msra.mxu0 0.0
    %2633 = vmatprep.subr.mxu0 0.0
    %2634 = vmatpush1.msra.mxu0 0.0
    %2635 = vmatprep.subr.mxu0 0.0
    %2636 = vmatpush1.msra.mxu0 0.0
    %2637 = vmatprep.subr.mxu0 0.0
    %2638 = vmatpush1.msra.mxu0 0.0
    %2639 = vmatprep.subr.mxu0 0.0
    %2640 = vmatpush1.msra.mxu0 0.0
    %2641 = vmatprep.subr.mxu0 0.0
    %2642 = vmatpush1.msra.mxu0 0.0
    %2643 = vmatprep.subr.mxu0 0.0
    %2644 = vmatpush1.msra.mxu0 0.0
    %2645 = vmatprep.subr.mxu0 0.0
    %2646 = vmatpush1.msra.mxu0 0.0
    %2647 = vmatprep.subr.mxu0 0.0
    %2648 = vmatpush1.msra.mxu0 0.0
    %2649 = vmatprep.subr.mxu0 0.0
    %2650 = vmatpush1.msra.mxu0 0.0
    %2651 = vmatprep.subr.mxu0 0.0
    %2652 = vmatpush1.msra.mxu0 0.0
    %2653 = vmatprep.subr.mxu0 0.0
    %2654 = vmatpush1.msra.mxu0 0.0
    %2655 = vmatprep.subr.mxu0 0.0
    %2656 = vmatpush1.msra.mxu0 0.0
    %2657 = vmatprep.subr.mxu0 0.0
    %2658 = vmatpush1.msra.mxu0 0.0
    %2659 = vmatprep.mubr.f32.mxu0 0.0
    %2660 = vmatmul.mubr.f32.gmra.mrb[0].mxu0 %v2522
    %v2661 = vpop.f32.mrb[0].mxu0
    %v2662 = vadd.f32 0.0, %v2661
    %v2663 = vpop.f32.mrb[0].mxu0
    %v2664 = vadd.f32 0.0, %v2663
    %2665 = vdwg.mxu0
    %v2670 = vrot.slane %v2591, 4
    %v2671 = vrot.slane %v2593, 4
    %v2672 = vrot.slane %v2662, 4
    %v2673 = vrot.slane %v2664, 4
    %v2678 = vadd.f32 %v2517, %v2670
    %v2679 = vadd.f32 %v2518, %v2671
    %v2680 = vadd.f32 %v2519, %v2672
    %v2681 = vadd.f32 %v2520, %v2673
    %v2682 = vxor.u32 %v2678, 2147483648
    %v2683 = vmul.f32 %v2682, 1.442695
    %v2684 = vpow.pop %v2683
    %v2685 = vadd.f32 %v2684, 1.0
    %v2686 = vrcp.pop %v2685
    %v2687 = vmul.f32 1.0, %v2686
    %v2688 = vxor.u32 %v2679, 2147483648
    %v2689 = vmul.f32 %v2688, 1.442695
    %v2690 = vpow.pop %v2689
    %v2691 = vadd.f32 %v2690, 1.0
    %v2692 = vrcp.pop %v2691
    %v2693 = vmul.f32 1.0, %v2692
    %v2694 = vtanh.pop %v2680
    %v2695 = vxor.u32 %v2681, 2147483648
    %v2696 = vmul.f32 %v2695, 1.442695
    %v2697 = vpow.pop %v2696
    %v2698 = vadd.f32 %v2697, 1.0
    %v2699 = vrcp.pop %v2698
    %v2700 = vmul.f32 1.0, %v2699
    %v2702 = vrot.slane %v2514, 6
    %v2704 = vmul.f32 %v2693, %v2702
    %v2705 = vmul.f32 %v2687, %v2694
    %v2706 = vadd.f32 %v2704, %v2705
    %v2707 = vtanh.pop %v2706
    %v2708 = vmul.f32 %v2700, %v2707
    %v2709 = vld [vmem:[#allocation2] sm:$0xc0]
    %v2710 = vld [vmem:[#allocation2 + $0x8] sm:$0xc0]
    %v2711 = vld [vmem:[#allocation2 + $0x10] sm:$0xc0]
    %v2712 = vld [vmem:[#allocation2 + $0x18] sm:$0xc0]
    %v2714 = vrot.slane %v2708, 4
    %2716 = vmatprep.subr.mxu0 %v136
    %2717 = vmatpush1.msra.mxu0 %v135
    %2718 = vmatprep.subr.mxu0 %v140
    %2719 = vmatpush1.msra.mxu0 %v139
    %2720 = vmatprep.subr.mxu0 %v144
    %2721 = vmatpush1.msra.mxu0 %v143
    %2722 = vmatprep.subr.mxu0 %v148
    %2723 = vmatpush1.msra.mxu0 %v147
    %2724 = vmatprep.subr.mxu0 %v152
    %2725 = vmatpush1.msra.mxu0 %v151
    %2726 = vmatprep.subr.mxu0 %v156
    %2727 = vmatpush1.msra.mxu0 %v155
    %2728 = vmatprep.subr.mxu0 %v160
    %2729 = vmatpush1.msra.mxu0 %v159
    %2730 = vmatprep.subr.mxu0 %v164
    %2731 = vmatpush1.msra.mxu0 %v163
    %2732 = vmatprep.subr.mxu0 %v168
    %2733 = vmatpush1.msra.mxu0 %v167
    %2734 = vmatprep.subr.mxu0 %v172
    %2735 = vmatpush1.msra.mxu0 %v171
    %2736 = vmatprep.subr.mxu0 %v176
    %2737 = vmatpush1.msra.mxu0 %v175
    %2738 = vmatprep.subr.mxu0 %v180
    %2739 = vmatpush1.msra.mxu0 %v179
    %2740 = vmatprep.subr.mxu0 %v184
    %2741 = vmatpush1.msra.mxu0 %v183
    %2742 = vmatprep.subr.mxu0 %v188
    %2743 = vmatpush1.msra.mxu0 %v187
    %2744 = vmatprep.subr.mxu0 %v192
    %2745 = vmatpush1.msra.mxu0 %v191
    %2746 = vmatprep.subr.mxu0 %v196
    %2747 = vmatpush1.msra.mxu0 %v195
    %2748 = vmatprep.subr.mxu0 0.0
    %2749 = vmatpush1.msra.mxu0 0.0
    %2750 = vmatprep.subr.mxu0 0.0
    %2751 = vmatpush1.msra.mxu0 0.0
    %2752 = vmatprep.subr.mxu0 0.0
    %2753 = vmatpush1.msra.mxu0 0.0
    %2754 = vmatprep.subr.mxu0 0.0
    %2755 = vmatpush1.msra.mxu0 0.0
    %2756 = vmatprep.subr.mxu0 0.0
    %2757 = vmatpush1.msra.mxu0 0.0
    %2758 = vmatprep.subr.mxu0 0.0
    %2759 = vmatpush1.msra.mxu0 0.0
    %2760 = vmatprep.subr.mxu0 0.0
    %2761 = vmatpush1.msra.mxu0 0.0
    %2762 = vmatprep.subr.mxu0 0.0
    %2763 = vmatpush1.msra.mxu0 0.0
    %2764 = vmatprep.subr.mxu0 0.0
    %2765 = vmatpush1.msra.mxu0 0.0
    %2766 = vmatprep.subr.mxu0 0.0
    %2767 = vmatpush1.msra.mxu0 0.0
    %2768 = vmatprep.subr.mxu0 0.0
    %2769 = vmatpush1.msra.mxu0 0.0
    %2770 = vmatprep.subr.mxu0 0.0
    %2771 = vmatpush1.msra.mxu0 0.0
    %2772 = vmatprep.subr.mxu0 0.0
    %2773 = vmatpush1.msra.mxu0 0.0
    %2774 = vmatprep.subr.mxu0 0.0
    %2775 = vmatpush1.msra.mxu0 0.0
    %2776 = vmatprep.subr.mxu0 0.0
    %2777 = vmatpush1.msra.mxu0 0.0
    %2778 = vmatprep.subr.mxu0 0.0
    %2779 = vmatpush1.msra.mxu0 0.0
    %2780 = vmatprep.mubr.f32.mxu0 0.0
    %2781 = vmatmul.mubr.f32.gmra.mrb[0].mxu0 %v2714
    %v2782 = vpop.f32.mrb[0].mxu0
    %v2783 = vadd.f32 0.0, %v2782
    %v2784 = vpop.f32.mrb[0].mxu0
    %v2785 = vadd.f32 0.0, %v2784
    %2786 = vdwg.mxu0
    %2787 = vmatprep.subr.mxu0 %v138
    %2788 = vmatpush1.msra.mxu0 %v137
    %2789 = vmatprep.subr.mxu0 %v142
    %2790 = vmatpush1.msra.mxu0 %v141
    %2791 = vmatprep.subr.mxu0 %v146
    %2792 = vmatpush1.msra.mxu0 %v145
    %2793 = vmatprep.subr.mxu0 %v150
    %2794 = vmatpush1.msra.mxu0 %v149
    %2795 = vmatprep.subr.mxu0 %v154
    %2796 = vmatpush1.msra.mxu0 %v153
    %2797 = vmatprep.subr.mxu0 %v158
    %2798 = vmatpush1.msra.mxu0 %v157
    %2799 = vmatprep.subr.mxu0 %v162
    %2800 = vmatpush1.msra.mxu0 %v161
    %2801 = vmatprep.subr.mxu0 %v166
    %2802 = vmatpush1.msra.mxu0 %v165
    %2803 = vmatprep.subr.mxu0 %v170
    %2804 = vmatpush1.msra.mxu0 %v169
    %2805 = vmatprep.subr.mxu0 %v174
    %2806 = vmatpush1.msra.mxu0 %v173
    %2807 = vmatprep.subr.mxu0 %v178
    %2808 = vmatpush1.msra.mxu0 %v177
    %2809 = vmatprep.subr.mxu0 %v182
    %2810 = vmatpush1.msra.mxu0 %v181
    %2811 = vmatprep.subr.mxu0 %v186
    %2812 = vmatpush1.msra.mxu0 %v185
    %2813 = vmatprep.subr.mxu0 %v190
    %2814 = vmatpush1.msra.mxu0 %v189
    %2815 = vmatprep.subr.mxu0 %v194
    %2816 = vmatpush1.msra.mxu0 %v193
    %2817 = vmatprep.subr.mxu0 %v198
    %2818 = vmatpush1.msra.mxu0 %v197
    %2819 = vmatprep.subr.mxu0 0.0
    %2820 = vmatpush1.msra.mxu0 0.0
    %2821 = vmatprep.subr.mxu0 0.0
    %2822 = vmatpush1.msra.mxu0 0.0
    %2823 = vmatprep.subr.mxu0 0.0
    %2824 = vmatpush1.msra.mxu0 0.0
    %2825 = vmatprep.subr.mxu0 0.0
    %2826 = vmatpush1.msra.mxu0 0.0
    %2827 = vmatprep.subr.mxu0 0.0
    %2828 = vmatpush1.msra.mxu0 0.0
    %2829 = vmatprep.subr.mxu0 0.0
    %2830 = vmatpush1.msra.mxu0 0.0
    %2831 = vmatprep.subr.mxu0 0.0
    %2832 = vmatpush1.msra.mxu0 0.0
    %2833 = vmatprep.subr.mxu0 0.0
    %2834 = vmatpush1.msra.mxu0 0.0
    %2835 = vmatprep.subr.mxu0 0.0
    %2836 = vmatpush1.msra.mxu0 0.0
    %2837 = vmatprep.subr.mxu0 0.0
    %2838 = vmatpush1.msra.mxu0 0.0
    %2839 = vmatprep.subr.mxu0 0.0
    %2840 = vmatpush1.msra.mxu0 0.0
    %2841 = vmatprep.subr.mxu0 0.0
    %2842 = vmatpush1.msra.mxu0 0.0
    %2843 = vmatprep.subr.mxu0 0.0
    %2844 = vmatpush1.msra.mxu0 0.0
    %2845 = vmatprep.subr.mxu0 0.0
    %2846 = vmatpush1.msra.mxu0 0.0
    %2847 = vmatprep.subr.mxu0 0.0
    %2848 = vmatpush1.msra.mxu0 0.0
    %2849 = vmatprep.subr.mxu0 0.0
    %2850 = vmatpush1.msra.mxu0 0.0
    %2851 = vmatprep.mubr.f32.mxu0 0.0
    %2852 = vmatmul.mubr.f32.gmra.mrb[0].mxu0 %v2714
    %v2853 = vpop.f32.mrb[0].mxu0
    %v2854 = vadd.f32 0.0, %v2853
    %v2855 = vpop.f32.mrb[0].mxu0
    %v2856 = vadd.f32 0.0, %v2855
    %2857 = vdwg.mxu0
    %v2862 = vrot.slane %v2783, 2
    %v2863 = vrot.slane %v2785, 2
    %v2864 = vrot.slane %v2854, 2
    %v2865 = vrot.slane %v2856, 2
    %v2870 = vadd.f32 %v2709, %v2862
    %v2871 = vadd.f32 %v2710, %v2863
    %v2872 = vadd.f32 %v2711, %v2864
    %v2873 = vadd.f32 %v2712, %v2865
    %v2874 = vxor.u32 %v2870, 2147483648
    %v2875 = vmul.f32 %v2874, 1.442695
    %v2876 = vpow.pop %v2875
    %v2877 = vadd.f32 %v2876, 1.0
    %v2878 = vrcp.pop %v2877
    %v2879 = vmul.f32 1.0, %v2878
    %v2880 = vxor.u32 %v2871, 2147483648
    %v2881 = vmul.f32 %v2880, 1.442695
    %v2882 = vpow.pop %v2881
    %v2883 = vadd.f32 %v2882, 1.0
    %v2884 = vrcp.pop %v2883
    %v2885 = vmul.f32 1.0, %v2884
    %v2886 = vtanh.pop %v2872
    %v2887 = vxor.u32 %v2873, 2147483648
    %v2888 = vmul.f32 %v2887, 1.442695
    %v2889 = vpow.pop %v2888
    %v2890 = vadd.f32 %v2889, 1.0
    %v2891 = vrcp.pop %v2890
    %v2892 = vmul.f32 1.0, %v2891
    %v2894 = vrot.slane %v2706, 6
    %v2896 = vmul.f32 %v2885, %v2894
    %v2897 = vmul.f32 %v2879, %v2886
    %v2898 = vadd.f32 %v2896, %v2897
    %v2899 = vtanh.pop %v2898
    %v2900 = vmul.f32 %v2892, %v2899
    %v2901 = vld [vmem:[#allocation2 + $0x20] sm:$0x3]
    %v2902 = vld [vmem:[#allocation2 + $0x28] sm:$0x3]
    %v2903 = vld [vmem:[#allocation2 + $0x30] sm:$0x3]
    %v2904 = vld [vmem:[#allocation2 + $0x38] sm:$0x3]
    %v2906 = vrot.slane %v2900, 6
    %2908 = vmatprep.subr.mxu0 %v136
    %2909 = vmatpush1.msra.mxu0 %v135
    %2910 = vmatprep.subr.mxu0 %v140
    %2911 = vmatpush1.msra.mxu0 %v139
    %2912 = vmatprep.subr.mxu0 %v144
    %2913 = vmatpush1.msra.mxu0 %v143
    %2914 = vmatprep.subr.mxu0 %v148
    %2915 = vmatpush1.msra.mxu0 %v147
    %2916 = vmatprep.subr.mxu0 %v152
    %2917 = vmatpush1.msra.mxu0 %v151
    %2918 = vmatprep.subr.mxu0 %v156
    %2919 = vmatpush1.msra.mxu0 %v155
    %2920 = vmatprep.subr.mxu0 %v160
    %2921 = vmatpush1.msra.mxu0 %v159
    %2922 = vmatprep.subr.mxu0 %v164
    %2923 = vmatpush1.msra.mxu0 %v163
    %2924 = vmatprep.subr.mxu0 %v168
    %2925 = vmatpush1.msra.mxu0 %v167
    %2926 = vmatprep.subr.mxu0 %v172
    %2927 = vmatpush1.msra.mxu0 %v171
    %2928 = vmatprep.subr.mxu0 %v176
    %2929 = vmatpush1.msra.mxu0 %v175
    %2930 = vmatprep.subr.mxu0 %v180
    %2931 = vmatpush1.msra.mxu0 %v179
    %2932 = vmatprep.subr.mxu0 %v184
    %2933 = vmatpush1.msra.mxu0 %v183
    %2934 = vmatprep.subr.mxu0 %v188
    %2935 = vmatpush1.msra.mxu0 %v187
    %2936 = vmatprep.subr.mxu0 %v192
    %2937 = vmatpush1.msra.mxu0 %v191
    %2938 = vmatprep.subr.mxu0 %v196
    %2939 = vmatpush1.msra.mxu0 %v195
    %2940 = vmatprep.subr.mxu0 0.0
    %2941 = vmatpush1.msra.mxu0 0.0
    %2942 = vmatprep.subr.mxu0 0.0
    %2943 = vmatpush1.msra.mxu0 0.0
    %2944 = vmatprep.subr.mxu0 0.0
    %2945 = vmatpush1.msra.mxu0 0.0
    %2946 = vmatprep.subr.mxu0 0.0
    %2947 = vmatpush1.msra.mxu0 0.0
    %2948 = vmatprep.subr.mxu0 0.0
    %2949 = vmatpush1.msra.mxu0 0.0
    %2950 = vmatprep.subr.mxu0 0.0
    %2951 = vmatpush1.msra.mxu0 0.0
    %2952 = vmatprep.subr.mxu0 0.0
    %2953 = vmatpush1.msra.mxu0 0.0
    %2954 = vmatprep.subr.mxu0 0.0
    %2955 = vmatpush1.msra.mxu0 0.0
    %2956 = vmatprep.subr.mxu0 0.0
    %2957 = vmatpush1.msra.mxu0 0.0
    %2958 = vmatprep.subr.mxu0 0.0
    %2959 = vmatpush1.msra.mxu0 0.0
    %2960 = vmatprep.subr.mxu0 0.0
    %2961 = vmatpush1.msra.mxu0 0.0
    %2962 = vmatprep.subr.mxu0 0.0
    %2963 = vmatpush1.msra.mxu0 0.0
    %2964 = vmatprep.subr.mxu0 0.0
    %2965 = vmatpush1.msra.mxu0 0.0
    %2966 = vmatprep.subr.mxu0 0.0
    %2967 = vmatpush1.msra.mxu0 0.0
    %2968 = vmatprep.subr.mxu0 0.0
    %2969 = vmatpush1.msra.mxu0 0.0
    %2970 = vmatprep.subr.mxu0 0.0
    %2971 = vmatpush1.msra.mxu0 0.0
    %2972 = vmatprep.mubr.f32.mxu0 0.0
    %2973 = vmatmul.mubr.f32.gmra.mrb[0].mxu0 %v2906
    %v2974 = vpop.f32.mrb[0].mxu0
    %v2975 = vadd.f32 0.0, %v2974
    %v2976 = vpop.f32.mrb[0].mxu0
    %v2977 = vadd.f32 0.0, %v2976
    %2978 = vdwg.mxu0
    %2979 = vmatprep.subr.mxu0 %v138
    %2980 = vmatpush1.msra.mxu0 %v137
    %2981 = vmatprep.subr.mxu0 %v142
    %2982 = vmatpush1.msra.mxu0 %v141
    %2983 = vmatprep.subr.mxu0 %v146
    %2984 = vmatpush1.msra.mxu0 %v145
    %2985 = vmatprep.subr.mxu0 %v150
    %2986 = vmatpush1.msra.mxu0 %v149
    %2987 = vmatprep.subr.mxu0 %v154
    %2988 = vmatpush1.msra.mxu0 %v153
    %2989 = vmatprep.subr.mxu0 %v158
    %2990 = vmatpush1.msra.mxu0 %v157
    %2991 = vmatprep.subr.mxu0 %v162
    %2992 = vmatpush1.msra.mxu0 %v161
    %2993 = vmatprep.subr.mxu0 %v166
    %2994 = vmatpush1.msra.mxu0 %v165
    %2995 = vmatprep.subr.mxu0 %v170
    %2996 = vmatpush1.msra.mxu0 %v169
    %2997 = vmatprep.subr.mxu0 %v174
    %2998 = vmatpush1.msra.mxu0 %v173
    %2999 = vmatprep.subr.mxu0 %v178
    %3000 = vmatpush1.msra.mxu0 %v177
    %3001 = vmatprep.subr.mxu0 %v182
    %3002 = vmatpush1.msra.mxu0 %v181
    %3003 = vmatprep.subr.mxu0 %v186
    %3004 = vmatpush1.msra.mxu0 %v185
    %3005 = vmatprep.subr.mxu0 %v190
    %3006 = vmatpush1.msra.mxu0 %v189
    %3007 = vmatprep.subr.mxu0 %v194
    %3008 = vmatpush1.msra.mxu0 %v193
    %3009 = vmatprep.subr.mxu0 %v198
    %3010 = vmatpush1.msra.mxu0 %v197
    %3011 = vmatprep.subr.mxu0 0.0
    %3012 = vmatpush1.msra.mxu0 0.0
    %3013 = vmatprep.subr.mxu0 0.0
    %3014 = vmatpush1.msra.mxu0 0.0
    %3015 = vmatprep.subr.mxu0 0.0
    %3016 = vmatpush1.msra.mxu0 0.0
    %3017 = vmatprep.subr.mxu0 0.0
    %3018 = vmatpush1.msra.mxu0 0.0
    %3019 = vmatprep.subr.mxu0 0.0
    %3020 = vmatpush1.msra.mxu0 0.0
    %3021 = vmatprep.subr.mxu0 0.0
    %3022 = vmatpush1.msra.mxu0 0.0
    %3023 = vmatprep.subr.mxu0 0.0
    %3024 = vmatpush1.msra.mxu0 0.0
    %3025 = vmatprep.subr.mxu0 0.0
    %3026 = vmatpush1.msra.mxu0 0.0
    %3027 = vmatprep.subr.mxu0 0.0
    %3028 = vmatpush1.msra.mxu0 0.0
    %3029 = vmatprep.subr.mxu0 0.0
    %3030 = vmatpush1.msra.mxu0 0.0
    %3031 = vmatprep.subr.mxu0 0.0
    %3032 = vmatpush1.msra.mxu0 0.0
    %3033 = vmatprep.subr.mxu0 0.0
    %3034 = vmatpush1.msra.mxu0 0.0
    %3035 = vmatprep.subr.mxu0 0.0
    %3036 = vmatpush1.msra.mxu0 0.0
    %3037 = vmatprep.subr.mxu0 0.0
    %3038 = vmatpush1.msra.mxu0 0.0
    %3039 = vmatprep.subr.mxu0 0.0
    %3040 = vmatpush1.msra.mxu0 0.0
    %3041 = vmatprep.subr.mxu0 0.0
    %3042 = vmatpush1.msra.mxu0 0.0
    %3043 = vmatprep.mubr.f32.mxu0 0.0
    %3044 = vmatmul.mubr.f32.gmra.mrb[0].mxu0 %v2906
    %v3045 = vpop.f32.mrb[0].mxu0
    %v3046 = vadd.f32 0.0, %v3045
    %v3047 = vpop.f32.mrb[0].mxu0
    %v3048 = vadd.f32 0.0, %v3047
    %3049 = vdwg.mxu0
    %v3050 = vadd.f32 %v2901, %v2975
    %v3051 = vadd.f32 %v2902, %v2977
    %v3052 = vadd.f32 %v2903, %v3046
    %v3053 = vadd.f32 %v2904, %v3048
    %v3054 = vxor.u32 %v3050, 2147483648
    %v3055 = vmul.f32 %v3054, 1.442695
    %v3056 = vpow.pop %v3055
    %v3057 = vadd.f32 %v3056, 1.0
    %v3058 = vrcp.pop %v3057
    %v3059 = vmul.f32 1.0, %v3058
    %v3060 = vxor.u32 %v3051, 2147483648
    %v3061 = vmul.f32 %v3060, 1.442695
    %v3062 = vpow.pop %v3061
    %v3063 = vadd.f32 %v3062, 1.0
    %v3064 = vrcp.pop %v3063
    %v3065 = vmul.f32 1.0, %v3064
    %v3066 = vtanh.pop %v3052
    %v3067 = vxor.u32 %v3053, 2147483648
    %v3068 = vmul.f32 %v3067, 1.442695
    %v3069 = vpow.pop %v3068
    %v3070 = vadd.f32 %v3069, 1.0
    %v3071 = vrcp.pop %v3070
    %v3072 = vmul.f32 1.0, %v3071
    %v3074 = vrot.slane %v2898, 6
    %v3076 = vmul.f32 %v3065, %v3074
    %v3077 = vmul.f32 %v3059, %v3066
    %v3078 = vadd.f32 %v3076, %v3077
    %v3079 = vtanh.pop %v3078
    %v3080 = vmul.f32 %v3072, %v3079
    %v3081 = vld [vmem:[#allocation2 + $0x20] sm:$0xc]
    %v3082 = vld [vmem:[#allocation2 + $0x28] sm:$0xc]
    %v3083 = vld [vmem:[#allocation2 + $0x30] sm:$0xc]
    %v3084 = vld [vmem:[#allocation2 + $0x38] sm:$0xc]
    %3085 = vmatprep.subr.mxu0 %v136
    %3086 = vmatpush1.msra.mxu0 %v135
    %3087 = vmatprep.subr.mxu0 %v140
    %3088 = vmatpush1.msra.mxu0 %v139
    %3089 = vmatprep.subr.mxu0 %v144
    %3090 = vmatpush1.msra.mxu0 %v143
    %3091 = vmatprep.subr.mxu0 %v148
    %3092 = vmatpush1.msra.mxu0 %v147
    %3093 = vmatprep.subr.mxu0 %v152
    %3094 = vmatpush1.msra.mxu0 %v151
    %3095 = vmatprep.subr.mxu0 %v156
    %3096 = vmatpush1.msra.mxu0 %v155
    %3097 = vmatprep.subr.mxu0 %v160
    %3098 = vmatpush1.msra.mxu0 %v159
    %3099 = vmatprep.subr.mxu0 %v164
    %3100 = vmatpush1.msra.mxu0 %v163
    %3101 = vmatprep.subr.mxu0 %v168
    %3102 = vmatpush1.msra.mxu0 %v167
    %3103 = vmatprep.subr.mxu0 %v172
    %3104 = vmatpush1.msra.mxu0 %v171
    %3105 = vmatprep.subr.mxu0 %v176
    %3106 = vmatpush1.msra.mxu0 %v175
    %3107 = vmatprep.subr.mxu0 %v180
    %3108 = vmatpush1.msra.mxu0 %v179
    %3109 = vmatprep.subr.mxu0 %v184
    %3110 = vmatpush1.msra.mxu0 %v183
    %3111 = vmatprep.subr.mxu0 %v188
    %3112 = vmatpush1.msra.mxu0 %v187
    %3113 = vmatprep.subr.mxu0 %v192
    %3114 = vmatpush1.msra.mxu0 %v191
    %3115 = vmatprep.subr.mxu0 %v196
    %3116 = vmatpush1.msra.mxu0 %v195
    %3117 = vmatprep.subr.mxu0 0.0
    %3118 = vmatpush1.msra.mxu0 0.0
    %3119 = vmatprep.subr.mxu0 0.0
    %3120 = vmatpush1.msra.mxu0 0.0
    %3121 = vmatprep.subr.mxu0 0.0
    %3122 = vmatpush1.msra.mxu0 0.0
    %3123 = vmatprep.subr.mxu0 0.0
    %3124 = vmatpush1.msra.mxu0 0.0
    %3125 = vmatprep.subr.mxu0 0.0
    %3126 = vmatpush1.msra.mxu0 0.0
    %3127 = vmatprep.subr.mxu0 0.0
    %3128 = vmatpush1.msra.mxu0 0.0
    %3129 = vmatprep.subr.mxu0 0.0
    %3130 = vmatpush1.msra.mxu0 0.0
    %3131 = vmatprep.subr.mxu0 0.0
    %3132 = vmatpush1.msra.mxu0 0.0
    %3133 = vmatprep.subr.mxu0 0.0
    %3134 = vmatpush1.msra.mxu0 0.0
    %3135 = vmatprep.subr.mxu0 0.0
    %3136 = vmatpush1.msra.mxu0 0.0
    %3137 = vmatprep.subr.mxu0 0.0
    %3138 = vmatpush1.msra.mxu0 0.0
    %3139 = vmatprep.subr.mxu0 0.0
    %3140 = vmatpush1.msra.mxu0 0.0
    %3141 = vmatprep.subr.mxu0 0.0
    %3142 = vmatpush1.msra.mxu0 0.0
    %3143 = vmatprep.subr.mxu0 0.0
    %3144 = vmatpush1.msra.mxu0 0.0
    %3145 = vmatprep.subr.mxu0 0.0
    %3146 = vmatpush1.msra.mxu0 0.0
    %3147 = vmatprep.subr.mxu0 0.0
    %3148 = vmatpush1.msra.mxu0 0.0
    %3149 = vmatprep.mubr.f32.mxu0 0.0
    %3150 = vmatmul.mubr.f32.gmra.mrb[0].mxu0 %v3080
    %v3151 = vpop.f32.mrb[0].mxu0
    %v3152 = vadd.f32 0.0, %v3151
    %v3153 = vpop.f32.mrb[0].mxu0
    %v3154 = vadd.f32 0.0, %v3153
    %3155 = vdwg.mxu0
    %3156 = vmatprep.subr.mxu0 %v138
    %3157 = vmatpush1.msra.mxu0 %v137
    %3158 = vmatprep.subr.mxu0 %v142
    %3159 = vmatpush1.msra.mxu0 %v141
    %3160 = vmatprep.subr.mxu0 %v146
    %3161 = vmatpush1.msra.mxu0 %v145
    %3162 = vmatprep.subr.mxu0 %v150
    %3163 = vmatpush1.msra.mxu0 %v149
    %3164 = vmatprep.subr.mxu0 %v154
    %3165 = vmatpush1.msra.mxu0 %v153
    %3166 = vmatprep.subr.mxu0 %v158
    %3167 = vmatpush1.msra.mxu0 %v157
    %3168 = vmatprep.subr.mxu0 %v162
    %3169 = vmatpush1.msra.mxu0 %v161
    %3170 = vmatprep.subr.mxu0 %v166
    %3171 = vmatpush1.msra.mxu0 %v165
    %3172 = vmatprep.subr.mxu0 %v170
    %3173 = vmatpush1.msra.mxu0 %v169
    %3174 = vmatprep.subr.mxu0 %v174
    %3175 = vmatpush1.msra.mxu0 %v173
    %3176 = vmatprep.subr.mxu0 %v178
    %3177 = vmatpush1.msra.mxu0 %v177
    %3178 = vmatprep.subr.mxu0 %v182
    %3179 = vmatpush1.msra.mxu0 %v181
    %3180 = vmatprep.subr.mxu0 %v186
    %3181 = vmatpush1.msra.mxu0 %v185
    %3182 = vmatprep.subr.mxu0 %v190
    %3183 = vmatpush1.msra.mxu0 %v189
    %3184 = vmatprep.subr.mxu0 %v194
    %3185 = vmatpush1.msra.mxu0 %v193
    %3186 = vmatprep.subr.mxu0 %v198
    %3187 = vmatpush1.msra.mxu0 %v197
    %3188 = vmatprep.subr.mxu0 0.0
    %3189 = vmatpush1.msra.mxu0 0.0
    %3190 = vmatprep.subr.mxu0 0.0
    %3191 = vmatpush1.msra.mxu0 0.0
    %3192 = vmatprep.subr.mxu0 0.0
    %3193 = vmatpush1.msra.mxu0 0.0
    %3194 = vmatprep.subr.mxu0 0.0
    %3195 = vmatpush1.msra.mxu0 0.0
    %3196 = vmatprep.subr.mxu0 0.0
    %3197 = vmatpush1.msra.mxu0 0.0
    %3198 = vmatprep.subr.mxu0 0.0
    %3199 = vmatpush1.msra.mxu0 0.0
    %3200 = vmatprep.subr.mxu0 0.0
    %3201 = vmatpush1.msra.mxu0 0.0
    %3202 = vmatprep.subr.mxu0 0.0
    %3203 = vmatpush1.msra.mxu0 0.0
    %3204 = vmatprep.subr.mxu0 0.0
    %3205 = vmatpush1.msra.mxu0 0.0
    %3206 = vmatprep.subr.mxu0 0.0
    %3207 = vmatpush1.msra.mxu0 0.0
    %3208 = vmatprep.subr.mxu0 0.0
    %3209 = vmatpush1.msra.mxu0 0.0
    %3210 = vmatprep.subr.mxu0 0.0
    %3211 = vmatpush1.msra.mxu0 0.0
    %3212 = vmatprep.subr.mxu0 0.0
    %3213 = vmatpush1.msra.mxu0 0.0
    %3214 = vmatprep.subr.mxu0 0.0
    %3215 = vmatpush1.msra.mxu0 0.0
    %3216 = vmatprep.subr.mxu0 0.0
    %3217 = vmatpush1.msra.mxu0 0.0
    %3218 = vmatprep.subr.mxu0 0.0
    %3219 = vmatpush1.msra.mxu0 0.0
    %3220 = vmatprep.mubr.f32.mxu0 0.0
    %3221 = vmatmul.mubr.f32.gmra.mrb[0].mxu0 %v3080
    %v3222 = vpop.f32.mrb[0].mxu0
    %v3223 = vadd.f32 0.0, %v3222
    %v3224 = vpop.f32.mrb[0].mxu0
    %v3225 = vadd.f32 0.0, %v3224
    %3226 = vdwg.mxu0
    %v3231 = vrot.slane %v3152, 6
    %v3232 = vrot.slane %v3154, 6
    %v3233 = vrot.slane %v3223, 6
    %v3234 = vrot.slane %v3225, 6
    %v3239 = vadd.f32 %v3081, %v3231
    %v3240 = vadd.f32 %v3082, %v3232
    %v3241 = vadd.f32 %v3083, %v3233
    %v3242 = vadd.f32 %v3084, %v3234
    %v3243 = vxor.u32 %v3239, 2147483648
    %v3244 = vmul.f32 %v3243, 1.442695
    %v3245 = vpow.pop %v3244
    %v3246 = vadd.f32 %v3245, 1.0
    %v3247 = vrcp.pop %v3246
    %v3248 = vmul.f32 1.0, %v3247
    %v3249 = vxor.u32 %v3240, 2147483648
    %v3250 = vmul.f32 %v3249, 1.442695
    %v3251 = vpow.pop %v3250
    %v3252 = vadd.f32 %v3251, 1.0
    %v3253 = vrcp.pop %v3252
    %v3254 = vmul.f32 1.0, %v3253
    %v3255 = vtanh.pop %v3241
    %v3256 = vxor.u32 %v3242, 2147483648
    %v3257 = vmul.f32 %v3256, 1.442695
    %v3258 = vpow.pop %v3257
    %v3259 = vadd.f32 %v3258, 1.0
    %v3260 = vrcp.pop %v3259
    %v3261 = vmul.f32 1.0, %v3260
    %v3263 = vrot.slane %v3078, 6
    %v3265 = vmul.f32 %v3254, %v3263
    %v3266 = vmul.f32 %v3248, %v3255
    %v3267 = vadd.f32 %v3265, %v3266
    %v3268 = vtanh.pop %v3267
    %v3269 = vmul.f32 %v3261, %v3268
    %v3270 = vld [vmem:[#allocation2 + $0x20] sm:$0x30]
    %v3271 = vld [vmem:[#allocation2 + $0x28] sm:$0x30]
    %v3272 = vld [vmem:[#allocation2 + $0x30] sm:$0x30]
    %v3273 = vld [vmem:[#allocation2 + $0x38] sm:$0x30]
    %v3275 = vrot.slane %v3269, 2
    %3277 = vmatprep.subr.mxu0 %v136
    %3278 = vmatpush1.msra.mxu0 %v135
    %3279 = vmatprep.subr.mxu0 %v140
    %3280 = vmatpush1.msra.mxu0 %v139
    %3281 = vmatprep.subr.mxu0 %v144
    %3282 = vmatpush1.msra.mxu0 %v143
    %3283 = vmatprep.subr.mxu0 %v148
    %3284 = vmatpush1.msra.mxu0 %v147
    %3285 = vmatprep.subr.mxu0 %v152
    %3286 = vmatpush1.msra.mxu0 %v151
    %3287 = vmatprep.subr.mxu0 %v156
    %3288 = vmatpush1.msra.mxu0 %v155
    %3289 = vmatprep.subr.mxu0 %v160
    %3290 = vmatpush1.msra.mxu0 %v159
    %3291 = vmatprep.subr.mxu0 %v164
    %3292 = vmatpush1.msra.mxu0 %v163
    %3293 = vmatprep.subr.mxu0 %v168
    %3294 = vmatpush1.msra.mxu0 %v167
    %3295 = vmatprep.subr.mxu0 %v172
    %3296 = vmatpush1.msra.mxu0 %v171
    %3297 = vmatprep.subr.mxu0 %v176
    %3298 = vmatpush1.msra.mxu0 %v175
    %3299 = vmatprep.subr.mxu0 %v180
    %3300 = vmatpush1.msra.mxu0 %v179
    %3301 = vmatprep.subr.mxu0 %v184
    %3302 = vmatpush1.msra.mxu0 %v183
    %3303 = vmatprep.subr.mxu0 %v188
    %3304 = vmatpush1.msra.mxu0 %v187
    %3305 = vmatprep.subr.mxu0 %v192
    %3306 = vmatpush1.msra.mxu0 %v191
    %3307 = vmatprep.subr.mxu0 %v196
    %3308 = vmatpush1.msra.mxu0 %v195
    %3309 = vmatprep.subr.mxu0 0.0
    %3310 = vmatpush1.msra.mxu0 0.0
    %3311 = vmatprep.subr.mxu0 0.0
    %3312 = vmatpush1.msra.mxu0 0.0
    %3313 = vmatprep.subr.mxu0 0.0
    %3314 = vmatpush1.msra.mxu0 0.0
    %3315 = vmatprep.subr.mxu0 0.0
    %3316 = vmatpush1.msra.mxu0 0.0
    %3317 = vmatprep.subr.mxu0 0.0
    %3318 = vmatpush1.msra.mxu0 0.0
    %3319 = vmatprep.subr.mxu0 0.0
    %3320 = vmatpush1.msra.mxu0 0.0
    %3321 = vmatprep.subr.mxu0 0.0
    %3322 = vmatpush1.msra.mxu0 0.0
    %3323 = vmatprep.subr.mxu0 0.0
    %3324 = vmatpush1.msra.mxu0 0.0
    %3325 = vmatprep.subr.mxu0 0.0
    %3326 = vmatpush1.msra.mxu0 0.0
    %3327 = vmatprep.subr.mxu0 0.0
    %3328 = vmatpush1.msra.mxu0 0.0
    %3329 = vmatprep.subr.mxu0 0.0
    %3330 = vmatpush1.msra.mxu0 0.0
    %3331 = vmatprep.subr.mxu0 0.0
    %3332 = vmatpush1.msra.mxu0 0.0
    %3333 = vmatprep.subr.mxu0 0.0
    %3334 = vmatpush1.msra.mxu0 0.0
    %3335 = vmatprep.subr.mxu0 0.0
    %3336 = vmatpush1.msra.mxu0 0.0
    %3337 = vmatprep.subr.mxu0 0.0
    %3338 = vmatpush1.msra.mxu0 0.0
    %3339 = vmatprep.subr.mxu0 0.0
    %3340 = vmatpush1.msra.mxu0 0.0
    %3341 = vmatprep.mubr.f32.mxu0 0.0
    %3342 = vmatmul.mubr.f32.gmra.mrb[0].mxu0 %v3275
    %v3343 = vpop.f32.mrb[0].mxu0
    %v3344 = vadd.f32 0.0, %v3343
    %v3345 = vpop.f32.mrb[0].mxu0
    %v3346 = vadd.f32 0.0, %v3345
    %3347 = vdwg.mxu0
    %3348 = vmatprep.subr.mxu0 %v138
    %3349 = vmatpush1.msra.mxu0 %v137
    %3350 = vmatprep.subr.mxu0 %v142
    %3351 = vmatpush1.msra.mxu0 %v141
    %3352 = vmatprep.subr.mxu0 %v146
    %3353 = vmatpush1.msra.mxu0 %v145
    %3354 = vmatprep.subr.mxu0 %v150
    %3355 = vmatpush1.msra.mxu0 %v149
    %3356 = vmatprep.subr.mxu0 %v154
    %3357 = vmatpush1.msra.mxu0 %v153
    %3358 = vmatprep.subr.mxu0 %v158
    %3359 = vmatpush1.msra.mxu0 %v157
    %3360 = vmatprep.subr.mxu0 %v162
    %3361 = vmatpush1.msra.mxu0 %v161
    %3362 = vmatprep.subr.mxu0 %v166
    %3363 = vmatpush1.msra.mxu0 %v165
    %3364 = vmatprep.subr.mxu0 %v170
    %3365 = vmatpush1.msra.mxu0 %v169
    %3366 = vmatprep.subr.mxu0 %v174
    %3367 = vmatpush1.msra.mxu0 %v173
    %3368 = vmatprep.subr.mxu0 %v178
    %3369 = vmatpush1.msra.mxu0 %v177
    %3370 = vmatprep.subr.mxu0 %v182
    %3371 = vmatpush1.msra.mxu0 %v181
    %3372 = vmatprep.subr.mxu0 %v186
    %3373 = vmatpush1.msra.mxu0 %v185
    %3374 = vmatprep.subr.mxu0 %v190
    %3375 = vmatpush1.msra.mxu0 %v189
    %3376 = vmatprep.subr.mxu0 %v194
    %3377 = vmatpush1.msra.mxu0 %v193
    %3378 = vmatprep.subr.mxu0 %v198
    %3379 = vmatpush1.msra.mxu0 %v197
    %3380 = vmatprep.subr.mxu0 0.0
    %3381 = vmatpush1.msra.mxu0 0.0
    %3382 = vmatprep.subr.mxu0 0.0
    %3383 = vmatpush1.msra.mxu0 0.0
    %3384 = vmatprep.subr.mxu0 0.0
    %3385 = vmatpush1.msra.mxu0 0.0
    %3386 = vmatprep.subr.mxu0 0.0
    %3387 = vmatpush1.msra.mxu0 0.0
    %3388 = vmatprep.subr.mxu0 0.0
    %3389 = vmatpush1.msra.mxu0 0.0
    %3390 = vmatprep.subr.mxu0 0.0
    %3391 = vmatpush1.msra.mxu0 0.0
    %3392 = vmatprep.subr.mxu0 0.0
    %3393 = vmatpush1.msra.mxu0 0.0
    %3394 = vmatprep.subr.mxu0 0.0
    %3395 = vmatpush1.msra.mxu0 0.0
    %3396 = vmatprep.subr.mxu0 0.0
    %3397 = vmatpush1.msra.mxu0 0.0
    %3398 = vmatprep.subr.mxu0 0.0
    %3399 = vmatpush1.msra.mxu0 0.0
    %3400 = vmatprep.subr.mxu0 0.0
    %3401 = vmatpush1.msra.mxu0 0.0
    %3402 = vmatprep.subr.mxu0 0.0
    %3403 = vmatpush1.msra.mxu0 0.0
    %3404 = vmatprep.subr.mxu0 0.0
    %3405 = vmatpush1.msra.mxu0 0.0
    %3406 = vmatprep.subr.mxu0 0.0
    %3407 = vmatpush1.msra.mxu0 0.0
    %3408 = vmatprep.subr.mxu0 0.0
    %3409 = vmatpush1.msra.mxu0 0.0
    %3410 = vmatprep.subr.mxu0 0.0
    %3411 = vmatpush1.msra.mxu0 0.0
    %3412 = vmatprep.mubr.f32.mxu0 0.0
    %3413 = vmatmul.mubr.f32.gmra.mrb[0].mxu0 %v3275
    %v3414 = vpop.f32.mrb[0].mxu0
    %v3415 = vadd.f32 0.0, %v3414
    %v3416 = vpop.f32.mrb[0].mxu0
    %v3417 = vadd.f32 0.0, %v3416
    %3418 = vdwg.mxu0
    %v3423 = vrot.slane %v3344, 4
    %v3424 = vrot.slane %v3346, 4
    %v3425 = vrot.slane %v3415, 4
    %v3426 = vrot.slane %v3417, 4
    %v3431 = vadd.f32 %v3270, %v3423
    %v3432 = vadd.f32 %v3271, %v3424
    %v3433 = vadd.f32 %v3272, %v3425
    %v3434 = vadd.f32 %v3273, %v3426
    %v3435 = vxor.u32 %v3431, 2147483648
    %v3436 = vmul.f32 %v3435, 1.442695
    %v3437 = vpow.pop %v3436
    %v3438 = vadd.f32 %v3437, 1.0
    %v3439 = vrcp.pop %v3438
    %v3440 = vmul.f32 1.0, %v3439
    %v3441 = vxor.u32 %v3432, 2147483648
    %v3442 = vmul.f32 %v3441, 1.442695
    %v3443 = vpow.pop %v3442
    %v3444 = vadd.f32 %v3443, 1.0
    %v3445 = vrcp.pop %v3444
    %v3446 = vmul.f32 1.0, %v3445
    %v3447 = vtanh.pop %v3433
    %v3448 = vxor.u32 %v3434, 2147483648
    %v3449 = vmul.f32 %v3448, 1.442695
    %v3450 = vpow.pop %v3449
    %v3451 = vadd.f32 %v3450, 1.0
    %v3452 = vrcp.pop %v3451
    %v3453 = vmul.f32 1.0, %v3452
    %v3455 = vrot.slane %v3267, 6
    %v3457 = vmul.f32 %v3446, %v3455
    %v3458 = vmul.f32 %v3440, %v3447
    %v3459 = vadd.f32 %v3457, %v3458
    %v3460 = vtanh.pop %v3459
    %v3461 = vmul.f32 %v3453, %v3460
    %v3462 = vld [vmem:[#allocation2 + $0x20] sm:$0xc0]
    %v3463 = vld [vmem:[#allocation2 + $0x28] sm:$0xc0]
    %v3464 = vld [vmem:[#allocation2 + $0x30] sm:$0xc0]
    %v3465 = vld [vmem:[#allocation2 + $0x38] sm:$0xc0]
    %v3467 = vrot.slane %v3461, 4
    %3469 = vmatprep.subr.mxu0 %v136
    %3470 = vmatpush1.msra.mxu0 %v135
    %3471 = vmatprep.subr.mxu0 %v140
    %3472 = vmatpush1.msra.mxu0 %v139
    %3473 = vmatprep.subr.mxu0 %v144
    %3474 = vmatpush1.msra.mxu0 %v143
    %3475 = vmatprep.subr.mxu0 %v148
    %3476 = vmatpush1.msra.mxu0 %v147
    %3477 = vmatprep.subr.mxu0 %v152
    %3478 = vmatpush1.msra.mxu0 %v151
    %3479 = vmatprep.subr.mxu0 %v156
    %3480 = vmatpush1.msra.mxu0 %v155
    %3481 = vmatprep.subr.mxu0 %v160
    %3482 = vmatpush1.msra.mxu0 %v159
    %3483 = vmatprep.subr.mxu0 %v164
    %3484 = vmatpush1.msra.mxu0 %v163
    %3485 = vmatprep.subr.mxu0 %v168
    %3486 = vmatpush1.msra.mxu0 %v167
    %3487 = vmatprep.subr.mxu0 %v172
    %3488 = vmatpush1.msra.mxu0 %v171
    %3489 = vmatprep.subr.mxu0 %v176
    %3490 = vmatpush1.msra.mxu0 %v175
    %3491 = vmatprep.subr.mxu0 %v180
    %3492 = vmatpush1.msra.mxu0 %v179
    %3493 = vmatprep.subr.mxu0 %v184
    %3494 = vmatpush1.msra.mxu0 %v183
    %3495 = vmatprep.subr.mxu0 %v188
    %3496 = vmatpush1.msra.mxu0 %v187
    %3497 = vmatprep.subr.mxu0 %v192
    %3498 = vmatpush1.msra.mxu0 %v191
    %3499 = vmatprep.subr.mxu0 %v196
    %3500 = vmatpush1.msra.mxu0 %v195
    %3501 = vmatprep.subr.mxu0 0.0
    %3502 = vmatpush1.msra.mxu0 0.0
    %3503 = vmatprep.subr.mxu0 0.0
    %3504 = vmatpush1.msra.mxu0 0.0
    %3505 = vmatprep.subr.mxu0 0.0
    %3506 = vmatpush1.msra.mxu0 0.0
    %3507 = vmatprep.subr.mxu0 0.0
    %3508 = vmatpush1.msra.mxu0 0.0
    %3509 = vmatprep.subr.mxu0 0.0
    %3510 = vmatpush1.msra.mxu0 0.0
    %3511 = vmatprep.subr.mxu0 0.0
    %3512 = vmatpush1.msra.mxu0 0.0
    %3513 = vmatprep.subr.mxu0 0.0
    %3514 = vmatpush1.msra.mxu0 0.0
    %3515 = vmatprep.subr.mxu0 0.0
    %3516 = vmatpush1.msra.mxu0 0.0
    %3517 = vmatprep.subr.mxu0 0.0
    %3518 = vmatpush1.msra.mxu0 0.0
    %3519 = vmatprep.subr.mxu0 0.0
    %3520 = vmatpush1.msra.mxu0 0.0
    %3521 = vmatprep.subr.mxu0 0.0
    %3522 = vmatpush1.msra.mxu0 0.0
    %3523 = vmatprep.subr.mxu0 0.0
    %3524 = vmatpush1.msra.mxu0 0.0
    %3525 = vmatprep.subr.mxu0 0.0
    %3526 = vmatpush1.msra.mxu0 0.0
    %3527 = vmatprep.subr.mxu0 0.0
    %3528 = vmatpush1.msra.mxu0 0.0
    %3529 = vmatprep.subr.mxu0 0.0
    %3530 = vmatpush1.msra.mxu0 0.0
    %3531 = vmatprep.subr.mxu0 0.0
    %3532 = vmatpush1.msra.mxu0 0.0
    %3533 = vmatprep.mubr.f32.mxu0 0.0
    %3534 = vmatmul.mubr.f32.gmra.mrb[0].mxu0 %v3467
    %v3535 = vpop.f32.mrb[0].mxu0
    %v3536 = vadd.f32 0.0, %v3535
    %v3537 = vpop.f32.mrb[0].mxu0
    %v3538 = vadd.f32 0.0, %v3537
    %3539 = vdwg.mxu0
    %3540 = vmatprep.subr.mxu0 %v138
    %3541 = vmatpush1.msra.mxu0 %v137
    %3542 = vmatprep.subr.mxu0 %v142
    %3543 = vmatpush1.msra.mxu0 %v141
    %3544 = vmatprep.subr.mxu0 %v146
    %3545 = vmatpush1.msra.mxu0 %v145
    %3546 = vmatprep.subr.mxu0 %v150
    %3547 = vmatpush1.msra.mxu0 %v149
    %3548 = vmatprep.subr.mxu0 %v154
    %3549 = vmatpush1.msra.mxu0 %v153
    %3550 = vmatprep.subr.mxu0 %v158
    %3551 = vmatpush1.msra.mxu0 %v157
    %3552 = vmatprep.subr.mxu0 %v162
    %3553 = vmatpush1.msra.mxu0 %v161
    %3554 = vmatprep.subr.mxu0 %v166
    %3555 = vmatpush1.msra.mxu0 %v165
    %3556 = vmatprep.subr.mxu0 %v170
    %3557 = vmatpush1.msra.mxu0 %v169
    %3558 = vmatprep.subr.mxu0 %v174
    %3559 = vmatpush1.msra.mxu0 %v173
    %3560 = vmatprep.subr.mxu0 %v178
    %3561 = vmatpush1.msra.mxu0 %v177
    %3562 = vmatprep.subr.mxu0 %v182
    %3563 = vmatpush1.msra.mxu0 %v181
    %3564 = vmatprep.subr.mxu0 %v186
    %3565 = vmatpush1.msra.mxu0 %v185
    %3566 = vmatprep.subr.mxu0 %v190
    %3567 = vmatpush1.msra.mxu0 %v189
    %3568 = vmatprep.subr.mxu0 %v194
    %3569 = vmatpush1.msra.mxu0 %v193
    %3570 = vmatprep.subr.mxu0 %v198
    %3571 = vmatpush1.msra.mxu0 %v197
    %3572 = vmatprep.subr.mxu0 0.0
    %3573 = vmatpush1.msra.mxu0 0.0
    %3574 = vmatprep.subr.mxu0 0.0
    %3575 = vmatpush1.msra.mxu0 0.0
    %3576 = vmatprep.subr.mxu0 0.0
    %3577 = vmatpush1.msra.mxu0 0.0
    %3578 = vmatprep.subr.mxu0 0.0
    %3579 = vmatpush1.msra.mxu0 0.0
    %3580 = vmatprep.subr.mxu0 0.0
    %3581 = vmatpush1.msra.mxu0 0.0
    %3582 = vmatprep.subr.mxu0 0.0
    %3583 = vmatpush1.msra.mxu0 0.0
    %3584 = vmatprep.subr.mxu0 0.0
    %3585 = vmatpush1.msra.mxu0 0.0
    %3586 = vmatprep.subr.mxu0 0.0
    %3587 = vmatpush1.msra.mxu0 0.0
    %3588 = vmatprep.subr.mxu0 0.0
    %3589 = vmatpush1.msra.mxu0 0.0
    %3590 = vmatprep.subr.mxu0 0.0
    %3591 = vmatpush1.msra.mxu0 0.0
    %3592 = vmatprep.subr.mxu0 0.0
    %3593 = vmatpush1.msra.mxu0 0.0
    %3594 = vmatprep.subr.mxu0 0.0
    %3595 = vmatpush1.msra.mxu0 0.0
    %3596 = vmatprep.subr.mxu0 0.0
    %3597 = vmatpush1.msra.mxu0 0.0
    %3598 = vmatprep.subr.mxu0 0.0
    %3599 = vmatpush1.msra.mxu0 0.0
    %3600 = vmatprep.subr.mxu0 0.0
    %3601 = vmatpush1.msra.mxu0 0.0
    %3602 = vmatprep.subr.mxu0 0.0
    %3603 = vmatpush1.msra.mxu0 0.0
    %3604 = vmatprep.mubr.f32.mxu0 0.0
    %3605 = vmatmul.mubr.f32.gmra.mrb[0].mxu0 %v3467
    %v3606 = vpop.f32.mrb[0].mxu0
    %v3607 = vadd.f32 0.0, %v3606
    %v3608 = vpop.f32.mrb[0].mxu0
    %v3609 = vadd.f32 0.0, %v3608
    %3610 = vdwg.mxu0
    %v3615 = vrot.slane %v3536, 2
    %v3616 = vrot.slane %v3538, 2
    %v3617 = vrot.slane %v3607, 2
    %v3618 = vrot.slane %v3609, 2
    %v3623 = vadd.f32 %v3462, %v3615
    %v3624 = vadd.f32 %v3463, %v3616
    %v3625 = vadd.f32 %v3464, %v3617
    %v3626 = vadd.f32 %v3465, %v3618
    %v3627 = vxor.u32 %v3623, 2147483648
    %v3628 = vmul.f32 %v3627, 1.442695
    %v3629 = vpow.pop %v3628
    %v3630 = vadd.f32 %v3629, 1.0
    %v3631 = vrcp.pop %v3630
    %v3632 = vmul.f32 1.0, %v3631
    %v3633 = vxor.u32 %v3624, 2147483648
    %v3634 = vmul.f32 %v3633, 1.442695
    %v3635 = vpow.pop %v3634
    %v3636 = vadd.f32 %v3635, 1.0
    %v3637 = vrcp.pop %v3636
    %v3638 = vmul.f32 1.0, %v3637
    %v3639 = vtanh.pop %v3625
    %v3640 = vxor.u32 %v3626, 2147483648
    %v3641 = vmul.f32 %v3640, 1.442695
    %v3642 = vpow.pop %v3641
    %v3643 = vadd.f32 %v3642, 1.0
    %v3644 = vrcp.pop %v3643
    %v3645 = vmul.f32 1.0, %v3644
    %v3647 = vrot.slane %v3459, 6
    %v3649 = vmul.f32 %v3638, %v3647
    %v3650 = vmul.f32 %v3632, %v3639
    %v3651 = vadd.f32 %v3649, %v3650
    %v3652 = vtanh.pop %v3651
    %v3653 = vmul.f32 %v3645, %v3652
    %vm3654 = vcmask 39942
    %3655 = vst.msk [vmem:[#allocation10 - $0x6] sm:$0xc0] %vm3654, %v1902
    %s3656 = scalar_lea.vmem [#allocation10], 2
    %3657 = vst.msk [vmem:[%s3656 - $0x6] sm:$0xc0] %vm3654, %v3653
    %3658 = vst.msk [vmem:[#allocation11 - $0x6] sm:$0xc0] %vm3654, %v1900
    %s3659 = scalar_lea.vmem [#allocation11], 2
    %3660 = vst.msk [vmem:[%s3659 - $0x6] sm:$0xc0] %vm3654, %v3651
    // Predicated region
    $region42: #{lstm_autoencoder_forward.1} parent=1 // pred_check
      _
    $region43: #{lstm_autoencoder_forward.1} parent=1 // pred_check_branch
      %3662 = sbr.rel (0) target = $region45
    $region44: #{lstm_autoencoder_forward.1} parent=1 // pred_region
      %s3664 = ssub.s32 64, 64
      %3665 = vsyncadd [#allocation6], %s3664
      %s3666 = sshll.u32 [#allocation10], 4
      %s3667 = int_to_ptr.vmem [resolvable:$true] %s3666
      %3672 = dma.vmem_to_hbm [thread:$0]  %s3667, 64, %s7, [#allocation6], 32, 32, 2
    $region45: #{lstm_autoencoder_forward.1} parent=1 // pred_fallthru
      _
    // Predicated region
    $region46: #{lstm_autoencoder_forward.1} parent=1 // pred_check
      _
    $region47: #{lstm_autoencoder_forward.1} parent=1 // pred_check_branch
      %3674 = sbr.rel (0) target = $region49
    $region48: #{lstm_autoencoder_forward.1} parent=1 // pred_region
      %s3676 = ssub.s32 64, 64
      %3677 = vsyncadd [#allocation12], %s3676
      %s3678 = sshll.u32 [#allocation11], 4
      %s3679 = int_to_ptr.vmem [resolvable:$true] %s3678
      %3684 = dma.vmem_to_hbm [thread:$0]  %s3679, 64, %s8, [#allocation12], 32, 32, 2
    $region49: #{lstm_autoencoder_forward.1} parent=1 // pred_fallthru
      _
    // Predicated region
    $region50: #{lstm_autoencoder_forward.1} parent=1 // pred_check
      _
    $region51: #{lstm_autoencoder_forward.1} parent=1 // pred_check_branch
      %3686 = sbr.rel (0) target = $region53
    $region52: #{lstm_autoencoder_forward.1} parent=1 // pred_region
      %3687 = dma.done [#allocation6], 64
    $region53: #{lstm_autoencoder_forward.1} parent=1 // pred_fallthru
      _
    // Predicated region
    $region54: #{lstm_autoencoder_forward.1} parent=1 // pred_check
      _
    $region55: #{lstm_autoencoder_forward.1} parent=1 // pred_check_branch
      %3689 = sbr.rel (0) target = $region57
    $region56: #{lstm_autoencoder_forward.1} parent=1 // pred_region
      %3690 = dma.done [#allocation12], 64
    $region57: #{lstm_autoencoder_forward.1} parent=1 // pred_fallthru
      _
    %3691 = vsyncpa [#allocation5], 1
    %3692 = vsyncpa [#allocation8], 1
    %3693 = vsyncpa [#allocation6], 1
    %3694 = vsyncpa [#allocation12], 1

</llo_original>
